<compile_context>
chip_gen: v7x
topology: tpu7x:2x2x1
jax: 0.10.0
libtpu: 0.0.40
codegen_flags: <defaults>
</compile_context>

<pallas_src>
import math
from functools import partial

import jax
import jax.numpy as jnp
from jax.experimental import pallas as pl
from jax.experimental.pallas import tpu as pltpu


# ----------------------------- in-kernel math -------------------------------

def _gelu(x):
    # tanh-approximate GELU (one EUP tanh + a few VALU ops).
    c = math.sqrt(2.0 / math.pi)
    return 0.5 * x * (1.0 + jnp.tanh(c * (x + 0.044715 * x * x * x)))


def _layernorm(x, gamma, beta, eps=1e-5):
    mu = jnp.mean(x, axis=-1, keepdims=True)
    xc = x - mu
    var = jnp.mean(xc * xc, axis=-1, keepdims=True)
    return xc * jax.lax.rsqrt(var + eps) * gamma + beta


# ------------------------------- fused kernel --------------------------------

def _fused_kernel(series_ref,                       # (1, T, C)   one batch element
                  pos_tok_ref, cls_row_ref,         # (Hch, D), (1, D)
                  w1, b1, w2, b2, w3, b3, w4, b4,   # conv backbone (k=1 convs)
                  wemb,                             # (T, D)  to_embedding.weight^T
                  g1, be1, wqkv, wo, bo,            # stacked per-depth attn params
                  g2, be2, wf1, bf1, wf2, bf2,      # stacked per-depth FF params
                  hg, hb, hw, hbias,                # mlp head
                  out_ref,                          # (1, 1, num_classes)
                  x_scr, oh_scr,                    # VMEM scratch (N, D), (N, inner)
                  *, depth, heads, dim_head):
    inner = heads * dim_head
    hidden_ch = pos_tok_ref.shape[0]

    # ---- prenet: 4 x (Conv1d(k=1) + GELU), then Linear over time (no bias) ----
    s = series_ref[0]                                                  # (T, C)
    # first conv consumes the channels-last tile directly via an NT contraction
    h = _gelu(jnp.einsum('oc,tc->ot', w1[...], s,
                         preferred_element_type=jnp.float32) + b1[...])  # (Hch, T)
    h = _gelu(jnp.dot(w2[...], h, preferred_element_type=jnp.float32) + b2[...])
    h = _gelu(jnp.dot(w3[...], h, preferred_element_type=jnp.float32) + b3[...])
    h = _gelu(jnp.dot(w4[...], h, preferred_element_type=jnp.float32) + b4[...])
    tok = jnp.dot(h, wemb[...], preferred_element_type=jnp.float32)     # (Hch, D)

    # ---- assemble token matrix (cls token stored in the LAST row: aligned) ----
    x_scr[0:hidden_ch, :] = tok + pos_tok_ref[...]      # conv tokens + pos[1:]
    x_scr[hidden_ch:hidden_ch + 1, :] = cls_row_ref[...]  # cls_token + pos[0]
    x = x_scr[...]                                        # (N, D), N = Hch + 1

    # ---- transformer layers (weights stacked over depth, loop unrolled) ----
    for d in range(depth):
        # PreNorm + multi-head self-attention + residual
        xn = _layernorm(x, g1[d], be1[d])
        qkv = jnp.dot(xn, wqkv[d], preferred_element_type=jnp.float32)   # (N, 3*inner)
        for hh in range(heads):
            lo = hh * dim_head
            q = qkv[:, lo:lo + dim_head]                   # scale pre-folded into W_q
            k = qkv[:, inner + lo:inner + lo + dim_head]
            v = qkv[:, 2 * inner + lo:2 * inner + lo + dim_head]
            dots = jnp.einsum('nd,md->nm', q, k,
                              preferred_element_type=jnp.float32)        # (N, N)
            dots = dots - jnp.max(dots, axis=-1, keepdims=True)
            e = jnp.exp(dots)
            attn = e * pl.reciprocal(jnp.sum(e, axis=-1, keepdims=True), approx=True)
            oh_scr[:, lo:lo + dim_head] = jnp.dot(
                attn, v, preferred_element_type=jnp.float32)             # (N, dh)
        x = x + jnp.dot(oh_scr[...], wo[d],
                        preferred_element_type=jnp.float32) + bo[d]
        # PreNorm + feed-forward + residual
        xn2 = _layernorm(x, g2[d], be2[d])
        mid = _gelu(jnp.dot(xn2, wf1[d], preferred_element_type=jnp.float32) + bf1[d])
        x = x + jnp.dot(mid, wf2[d], preferred_element_type=jnp.float32) + bf2[d]

    # ---- mlp head on the cls token (row hidden_ch, tile-aligned) ----
    cls_x = x[hidden_ch:hidden_ch + 1, :]                                # (1, D)
    hn = _layernorm(cls_x, hg[...], hb[...])
    out_ref[0] = jnp.dot(hn, hw[...], preferred_element_type=jnp.float32) + hbias[...]


# ------------------------------ wrapper ---------------------------------------

def _full_spec(arr):
    nd = arr.ndim
    return pl.BlockSpec(arr.shape, lambda b, _nd=nd: (0,) * _nd)


def preconv_transformer_forward(series, params, *, heads, dim_head):
    B, T, C = series.shape
    hidden_ch, D = params["pos_tok"].shape
    depth = params["wqkv"].shape[0]
    inner = heads * dim_head
    ncls = params["head_w"].shape[1]
    N = hidden_ch + 1

    flat = [params[k] for k in (
        "pos_tok", "cls_row",
        "w1", "b1c", "w2", "b2c", "w3", "b3c", "w4", "b4c",
        "w_emb_t",
        "g1", "be1", "wqkv", "wo", "bo", "g2", "be2", "wf1", "bf1", "wf2", "bf2",
        "head_g", "head_b", "head_w", "head_bias")]

    in_specs = [pl.BlockSpec((1, T, C), lambda b: (b, 0, 0))] + \
               [_full_spec(a) for a in flat]

    out = pl.pallas_call(
        partial(_fused_kernel, depth=depth, heads=heads, dim_head=dim_head),
        out_shape=jax.ShapeDtypeStruct((B, 1, ncls), jnp.float32),
        grid=(B,),
        in_specs=in_specs,
        out_specs=pl.BlockSpec((1, 1, ncls), lambda b: (b, 0, 0)),
        scratch_shapes=[pltpu.VMEM((N, D), jnp.float32),
                        pltpu.VMEM((N, inner), jnp.float32)],
        compiler_params=pltpu.CompilerParams(dimension_semantics=("parallel",)),
    )(series, *flat)
    return out.reshape(B, ncls)


# --------------------------- parameter setup ----------------------------------

def init_params(key, *, channels, hidden_ch, input_dim, hidden_dim, depth,
                heads, dim_head, mlp_dim, num_classes):
    inner = heads * dim_head
    scale = dim_head ** (-0.5)
    keys = iter(jax.random.split(key, 128))

    def nrm(shape, s=0.05):
        return (s * jax.random.normal(next(keys), shape)).astype(jnp.float32)

    p = {}
    # ConvBackbone: four Conv1d(k=1); weight (out,in), bias (out,1) broadcast over T
    dims = [channels, hidden_ch, hidden_ch, hidden_ch, hidden_ch]
    for i in range(4):
        p[f"w{i + 1}"] = nrm((dims[i + 1], dims[i]))
        p[f"b{i + 1}c"] = nrm((dims[i + 1], 1))
    # to_embedding: Linear(input_dim, hidden_dim, bias=False) -> pass W^T
    p["w_emb_t"] = nrm((input_dim, hidden_dim))
    # pos_embedding (hidden_ch+1, D) and cls_token (1, D); cls row placed LAST
    pos = nrm((hidden_ch + 1, hidden_dim), 1.0)
    cls = nrm((1, hidden_dim), 1.0)
    p["pos_tok"] = pos[1:, :]
    p["cls_row"] = cls + pos[0:1, :]

    acc = {k: [] for k in ("g1", "be1", "wqkv", "wo", "bo",
                           "g2", "be2", "wf1", "bf1", "wf2", "bf2")}
    for _ in range(depth):
        w_qkv = nrm((3 * inner, hidden_dim))       # to_qkv.weight  (3*inner, D)
        w_out = nrm((hidden_dim, inner))           # to_out[0].weight
        wq_t = w_qkv[:inner, :].T * scale          # fold softmax scale into Q weights
        wk_t = w_qkv[inner:2 * inner, :].T
        wv_t = w_qkv[2 * inner:, :].T
        acc["wqkv"].append(jnp.concatenate([wq_t, wk_t, wv_t], axis=1))  # (D, 3*inner)
        acc["wo"].append(w_out.T)                                        # (inner, D)
        acc["bo"].append(nrm((1, hidden_dim)))
        acc["g1"].append(jnp.ones((1, hidden_dim), jnp.float32))
        acc["be1"].append(jnp.zeros((1, hidden_dim), jnp.float32))
        acc["g2"].append(jnp.ones((1, hidden_dim), jnp.float32))
        acc["be2"].append(jnp.zeros((1, hidden_dim), jnp.float32))
        acc["wf1"].append(nrm((mlp_dim, hidden_dim)).T)   # Linear(dim, mlp_dim).weight^T
        acc["bf1"].append(nrm((1, mlp_dim)))
        acc["wf2"].append(nrm((hidden_dim, mlp_dim)).T)   # Linear(mlp_dim, dim).weight^T
        acc["bf2"].append(nrm((1, hidden_dim)))
    for k, v in acc.items():
        p[k] = jnp.stack(v, axis=0)

    # mlp_head: LayerNorm + Linear(hidden_dim, num_classes)
    p["head_g"] = jnp.ones((1, hidden_dim), jnp.float32)
    p["head_b"] = jnp.zeros((1, hidden_dim), jnp.float32)
    p["head_w"] = nrm((num_classes, hidden_dim)).T
    p["head_bias"] = nrm((1, num_classes))
    return p


# --------------------------------- main ----------------------------------------

if __name__ == "__main__":
    B, T, C = 2, 16, 4            # batch, input_dim (seq length), channels
    hidden_ch, hidden_dim = 8, 32
    depth, heads, dim_head = 2, 4, 8
    mlp_dim, num_classes = 64, 5

    key = jax.random.PRNGKey(0)
    k_series, k_params = jax.random.split(key)
    series = jax.random.normal(k_series, (B, T, C), jnp.float32)

    params = init_params(k_params, channels=C, hidden_ch=hidden_ch, input_dim=T,
                         hidden_dim=hidden_dim, depth=depth, heads=heads,
                         dim_head=dim_head, mlp_dim=mlp_dim, num_classes=num_classes)

    logits = preconv_transformer_forward(series, params, heads=heads, dim_head=dim_head)
    logits = jax.block_until_ready(logits)
    assert logits.shape == (B, num_classes)
    assert bool(jnp.all(jnp.isfinite(logits)))
    print("KERNEL_OK")
</pallas_src>

<mosaic_0001>
module attributes {stable_mosaic.version = 11 : i64} {
  func.func @_fused_kernel(%arg0: i32, %arg1: memref<1x16x4xf32, #tpu.memory_space<vmem>>, %arg2: memref<8x32xf32, #tpu.memory_space<vmem>>, %arg3: memref<1x32xf32, #tpu.memory_space<vmem>>, %arg4: memref<8x4xf32, #tpu.memory_space<vmem>>, %arg5: memref<8x1xf32, #tpu.memory_space<vmem>>, %arg6: memref<8x8xf32, #tpu.memory_space<vmem>>, %arg7: memref<8x1xf32, #tpu.memory_space<vmem>>, %arg8: memref<8x8xf32, #tpu.memory_space<vmem>>, %arg9: memref<8x1xf32, #tpu.memory_space<vmem>>, %arg10: memref<8x8xf32, #tpu.memory_space<vmem>>, %arg11: memref<8x1xf32, #tpu.memory_space<vmem>>, %arg12: memref<16x32xf32, #tpu.memory_space<vmem>>, %arg13: memref<2x1x32xf32, #tpu.memory_space<vmem>>, %arg14: memref<2x1x32xf32, #tpu.memory_space<vmem>>, %arg15: memref<2x32x96xf32, #tpu.memory_space<vmem>>, %arg16: memref<2x32x32xf32, #tpu.memory_space<vmem>>, %arg17: memref<2x1x32xf32, #tpu.memory_space<vmem>>, %arg18: memref<2x1x32xf32, #tpu.memory_space<vmem>>, %arg19: memref<2x1x32xf32, #tpu.memory_space<vmem>>, %arg20: memref<2x32x64xf32, #tpu.memory_space<vmem>>, %arg21: memref<2x1x64xf32, #tpu.memory_space<vmem>>, %arg22: memref<2x64x32xf32, #tpu.memory_space<vmem>>, %arg23: memref<2x1x32xf32, #tpu.memory_space<vmem>>, %arg24: memref<1x32xf32, #tpu.memory_space<vmem>>, %arg25: memref<1x32xf32, #tpu.memory_space<vmem>>, %arg26: memref<32x5xf32, #tpu.memory_space<vmem>>, %arg27: memref<1x5xf32, #tpu.memory_space<vmem>>, %arg28: memref<1x1x5xf32, #tpu.memory_space<vmem>>, %arg29: memref<9x32xf32, #tpu.memory_space<vmem>>, %arg30: memref<9x32xf32, #tpu.memory_space<vmem>>) attributes {dimension_semantics = [#tpu.dimension_semantics<parallel>], iteration_bounds = array<i64: 2>, scalar_prefetch = 0 : i64, scratch_operands = 2 : i64, tpu.core_type = #tpu.core_type<tc>, window_params = [{transform_indices = @transform_0, window_bounds = array<i64: 1, 16, 4>}, {pipeline_mode = #tpu.pipeline_mode<synchronous>, transform_indices = @transform_1, window_bounds = array<i64: 8, 32>}, {pipeline_mode = #tpu.pipeline_mode<synchronous>, transform_indices = @transform_2, window_bounds = array<i64: 1, 32>}, {pipeline_mode = #tpu.pipeline_mode<synchronous>, transform_indices = @transform_3, window_bounds = array<i64: 8, 4>}, {pipeline_mode = #tpu.pipeline_mode<synchronous>, transform_indices = @transform_4, window_bounds = array<i64: 8, 1>}, {pipeline_mode = #tpu.pipeline_mode<synchronous>, transform_indices = @transform_5, window_bounds = array<i64: 8, 8>}, {pipeline_mode = #tpu.pipeline_mode<synchronous>, transform_indices = @transform_6, window_bounds = array<i64: 8, 1>}, {pipeline_mode = #tpu.pipeline_mode<synchronous>, transform_indices = @transform_7, window_bounds = array<i64: 8, 8>}, {pipeline_mode = #tpu.pipeline_mode<synchronous>, transform_indices = @transform_8, window_bounds = array<i64: 8, 1>}, {pipeline_mode = #tpu.pipeline_mode<synchronous>, transform_indices = @transform_9, window_bounds = array<i64: 8, 8>}, {pipeline_mode = #tpu.pipeline_mode<synchronous>, transform_indices = @transform_10, window_bounds = array<i64: 8, 1>}, {pipeline_mode = #tpu.pipeline_mode<synchronous>, transform_indices = @transform_11, window_bounds = array<i64: 16, 32>}, {pipeline_mode = #tpu.pipeline_mode<synchronous>, transform_indices = @transform_12, window_bounds = array<i64: 2, 1, 32>}, {pipeline_mode = #tpu.pipeline_mode<synchronous>, transform_indices = @transform_13, window_bounds = array<i64: 2, 1, 32>}, {pipeline_mode = #tpu.pipeline_mode<synchronous>, transform_indices = @transform_14, window_bounds = array<i64: 2, 32, 96>}, {pipeline_mode = #tpu.pipeline_mode<synchronous>, transform_indices = @transform_15, window_bounds = array<i64: 2, 32, 32>}, {pipeline_mode = #tpu.pipeline_mode<synchronous>, transform_indices = @transform_16, window_bounds = array<i64: 2, 1, 32>}, {pipeline_mode = #tpu.pipeline_mode<synchronous>, transform_indices = @transform_17, window_bounds = array<i64: 2, 1, 32>}, {pipeline_mode = #tpu.pipeline_mode<synchronous>, transform_indices = @transform_18, window_bounds = array<i64: 2, 1, 32>}, {pipeline_mode = #tpu.pipeline_mode<synchronous>, transform_indices = @transform_19, window_bounds = array<i64: 2, 32, 64>}, {pipeline_mode = #tpu.pipeline_mode<synchronous>, transform_indices = @transform_20, window_bounds = array<i64: 2, 1, 64>}, {pipeline_mode = #tpu.pipeline_mode<synchronous>, transform_indices = @transform_21, window_bounds = array<i64: 2, 64, 32>}, {pipeline_mode = #tpu.pipeline_mode<synchronous>, transform_indices = @transform_22, window_bounds = array<i64: 2, 1, 32>}, {pipeline_mode = #tpu.pipeline_mode<synchronous>, transform_indices = @transform_23, window_bounds = array<i64: 1, 32>}, {pipeline_mode = #tpu.pipeline_mode<synchronous>, transform_indices = @transform_24, window_bounds = array<i64: 1, 32>}, {pipeline_mode = #tpu.pipeline_mode<synchronous>, transform_indices = @transform_25, window_bounds = array<i64: 32, 5>}, {pipeline_mode = #tpu.pipeline_mode<synchronous>, transform_indices = @transform_26, window_bounds = array<i64: 1, 5>}, {transform_indices = @transform_27, window_bounds = array<i64: 1, 1, 5>}]} {
    %c0 = arith.constant 0 : index
    %c0_0 = arith.constant 0 : index
    %c0_1 = arith.constant 0 : index
    %0 = vector.load %arg1[%c0, %c0_0, %c0_1] : memref<1x16x4xf32, #tpu.memory_space<vmem>>, vector<1x16x4xf32>
    %1 = vector.shape_cast %0 : vector<1x16x4xf32> to vector<16x4xf32>
    %c0_2 = arith.constant 0 : index
    %c0_3 = arith.constant 0 : index
    %2 = vector.load %arg4[%c0_2, %c0_3] : memref<8x4xf32, #tpu.memory_space<vmem>>, vector<8x4xf32>
    "tpu.trace_start"() <{level = 10 : i32, message = "oc,tc->ot"}> : () -> ()
    %cst = arith.constant dense<0.000000e+00> : vector<8x16xf32>
    %3 = tpu.matmul %2, %1, %cst {dimension_numbers = #tpu.dot_dimension_numbers<[1], [1], [0], [0], [0, 0, 1, 0], [], []>} : vector<8x4xf32>, vector<16x4xf32>, vector<8x16xf32> -> vector<8x16xf32>
    "tpu.trace_stop"() : () -> ()
    %c0_4 = arith.constant 0 : index
    %c0_5 = arith.constant 0 : index
    %4 = vector.load %arg5[%c0_4, %c0_5] : memref<8x1xf32, #tpu.memory_space<vmem>>, vector<8x1xf32>
    %5 = vector.broadcast %4 : vector<8x1xf32> to vector<8x16xf32>
    %6 = arith.addf %3, %5 : vector<8x16xf32>
    %cst_6 = arith.constant 5.000000e-01 : f32
    %7 = vector.broadcast %cst_6 : f32 to vector<8x16xf32>
    %8 = arith.mulf %7, %6 : vector<8x16xf32>
    %cst_7 = arith.constant 4.471500e-02 : f32
    %9 = vector.broadcast %cst_7 : f32 to vector<8x16xf32>
    %10 = arith.mulf %9, %6 : vector<8x16xf32>
    %11 = arith.mulf %10, %6 : vector<8x16xf32>
    %12 = arith.mulf %11, %6 : vector<8x16xf32>
    %13 = arith.addf %6, %12 : vector<8x16xf32>
    %cst_8 = arith.constant 0.797884583 : f32
    %14 = vector.broadcast %cst_8 : f32 to vector<8x16xf32>
    %15 = arith.mulf %14, %13 : vector<8x16xf32>
    %16 = math.tanh %15 : vector<8x16xf32>
    %cst_9 = arith.constant 1.000000e+00 : f32
    %17 = vector.broadcast %cst_9 : f32 to vector<8x16xf32>
    %18 = arith.addf %17, %16 : vector<8x16xf32>
    %19 = arith.mulf %8, %18 : vector<8x16xf32>
    %c0_10 = arith.constant 0 : index
    %c0_11 = arith.constant 0 : index
    %20 = vector.load %arg6[%c0_10, %c0_11] : memref<8x8xf32, #tpu.memory_space<vmem>>, vector<8x8xf32>
    %cst_12 = arith.constant dense<0.000000e+00> : vector<8x16xf32>
    %21 = tpu.matmul %20, %19, %cst_12 {dimension_numbers = #tpu.dot_dimension_numbers<[1], [0], [0], [1], [0, 0, 1, 1], [], []>} : vector<8x8xf32>, vector<8x16xf32>, vector<8x16xf32> -> vector<8x16xf32>
    %c0_13 = arith.constant 0 : index
    %c0_14 = arith.constant 0 : index
    %22 = vector.load %arg7[%c0_13, %c0_14] : memref<8x1xf32, #tpu.memory_space<vmem>>, vector<8x1xf32>
    %23 = vector.broadcast %22 : vector<8x1xf32> to vector<8x16xf32>
    %24 = arith.addf %21, %23 : vector<8x16xf32>
    %cst_15 = arith.constant 5.000000e-01 : f32
    %25 = vector.broadcast %cst_15 : f32 to vector<8x16xf32>
    %26 = arith.mulf %25, %24 : vector<8x16xf32>
    %cst_16 = arith.constant 4.471500e-02 : f32
    %27 = vector.broadcast %cst_16 : f32 to vector<8x16xf32>
    %28 = arith.mulf %27, %24 : vector<8x16xf32>
    %29 = arith.mulf %28, %24 : vector<8x16xf32>
    %30 = arith.mulf %29, %24 : vector<8x16xf32>
    %31 = arith.addf %24, %30 : vector<8x16xf32>
    %cst_17 = arith.constant 0.797884583 : f32
    %32 = vector.broadcast %cst_17 : f32 to vector<8x16xf32>
    %33 = arith.mulf %32, %31 : vector<8x16xf32>
    %34 = math.tanh %33 : vector<8x16xf32>
    %cst_18 = arith.constant 1.000000e+00 : f32
    %35 = vector.broadcast %cst_18 : f32 to vector<8x16xf32>
    %36 = arith.addf %35, %34 : vector<8x16xf32>
    %37 = arith.mulf %26, %36 : vector<8x16xf32>
    %c0_19 = arith.constant 0 : index
    %c0_20 = arith.constant 0 : index
    %38 = vector.load %arg8[%c0_19, %c0_20] : memref<8x8xf32, #tpu.memory_space<vmem>>, vector<8x8xf32>
    %cst_21 = arith.constant dense<0.000000e+00> : vector<8x16xf32>
    %39 = tpu.matmul %38, %37, %cst_21 {dimension_numbers = #tpu.dot_dimension_numbers<[1], [0], [0], [1], [0, 0, 1, 1], [], []>} : vector<8x8xf32>, vector<8x16xf32>, vector<8x16xf32> -> vector<8x16xf32>
    %c0_22 = arith.constant 0 : index
    %c0_23 = arith.constant 0 : index
    %40 = vector.load %arg9[%c0_22, %c0_23] : memref<8x1xf32, #tpu.memory_space<vmem>>, vector<8x1xf32>
    %41 = vector.broadcast %40 : vector<8x1xf32> to vector<8x16xf32>
    %42 = arith.addf %39, %41 : vector<8x16xf32>
    %cst_24 = arith.constant 5.000000e-01 : f32
    %43 = vector.broadcast %cst_24 : f32 to vector<8x16xf32>
    %44 = arith.mulf %43, %42 : vector<8x16xf32>
    %cst_25 = arith.constant 4.471500e-02 : f32
    %45 = vector.broadcast %cst_25 : f32 to vector<8x16xf32>
    %46 = arith.mulf %45, %42 : vector<8x16xf32>
    %47 = arith.mulf %46, %42 : vector<8x16xf32>
    %48 = arith.mulf %47, %42 : vector<8x16xf32>
    %49 = arith.addf %42, %48 : vector<8x16xf32>
    %cst_26 = arith.constant 0.797884583 : f32
    %50 = vector.broadcast %cst_26 : f32 to vector<8x16xf32>
    %51 = arith.mulf %50, %49 : vector<8x16xf32>
    %52 = math.tanh %51 : vector<8x16xf32>
    %cst_27 = arith.constant 1.000000e+00 : f32
    %53 = vector.broadcast %cst_27 : f32 to vector<8x16xf32>
    %54 = arith.addf %53, %52 : vector<8x16xf32>
    %55 = arith.mulf %44, %54 : vector<8x16xf32>
    %c0_28 = arith.constant 0 : index
    %c0_29 = arith.constant 0 : index
    %56 = vector.load %arg10[%c0_28, %c0_29] : memref<8x8xf32, #tpu.memory_space<vmem>>, vector<8x8xf32>
    %cst_30 = arith.constant dense<0.000000e+00> : vector<8x16xf32>
    %57 = tpu.matmul %56, %55, %cst_30 {dimension_numbers = #tpu.dot_dimension_numbers<[1], [0], [0], [1], [0, 0, 1, 1], [], []>} : vector<8x8xf32>, vector<8x16xf32>, vector<8x16xf32> -> vector<8x16xf32>
    %c0_31 = arith.constant 0 : index
    %c0_32 = arith.constant 0 : index
    %58 = vector.load %arg11[%c0_31, %c0_32] : memref<8x1xf32, #tpu.memory_space<vmem>>, vector<8x1xf32>
    %59 = vector.broadcast %58 : vector<8x1xf32> to vector<8x16xf32>
    %60 = arith.addf %57, %59 : vector<8x16xf32>
    %cst_33 = arith.constant 5.000000e-01 : f32
    %61 = vector.broadcast %cst_33 : f32 to vector<8x16xf32>
    %62 = arith.mulf %61, %60 : vector<8x16xf32>
    %cst_34 = arith.constant 4.471500e-02 : f32
    %63 = vector.broadcast %cst_34 : f32 to vector<8x16xf32>
    %64 = arith.mulf %63, %60 : vector<8x16xf32>
    %65 = arith.mulf %64, %60 : vector<8x16xf32>
    %66 = arith.mulf %65, %60 : vector<8x16xf32>
    %67 = arith.addf %60, %66 : vector<8x16xf32>
    %cst_35 = arith.constant 0.797884583 : f32
    %68 = vector.broadcast %cst_35 : f32 to vector<8x16xf32>
    %69 = arith.mulf %68, %67 : vector<8x16xf32>
    %70 = math.tanh %69 : vector<8x16xf32>
    %cst_36 = arith.constant 1.000000e+00 : f32
    %71 = vector.broadcast %cst_36 : f32 to vector<8x16xf32>
    %72 = arith.addf %71, %70 : vector<8x16xf32>
    %73 = arith.mulf %62, %72 : vector<8x16xf32>
    %c0_37 = arith.constant 0 : index
    %c0_38 = arith.constant 0 : index
    %74 = vector.load %arg12[%c0_37, %c0_38] : memref<16x32xf32, #tpu.memory_space<vmem>>, vector<16x32xf32>
    %cst_39 = arith.constant dense<0.000000e+00> : vector<8x32xf32>
    %75 = tpu.matmul %73, %74, %cst_39 {dimension_numbers = #tpu.dot_dimension_numbers<[1], [0], [0], [1], [0, 0, 1, 1], [], []>} : vector<8x16xf32>, vector<16x32xf32>, vector<8x32xf32> -> vector<8x32xf32>
    %c0_40 = arith.constant 0 : index
    %c0_41 = arith.constant 0 : index
    %76 = vector.load %arg2[%c0_40, %c0_41] : memref<8x32xf32, #tpu.memory_space<vmem>>, vector<8x32xf32>
    %77 = arith.addf %75, %76 : vector<8x32xf32>
    %c0_42 = arith.constant 0 : index
    %c0_43 = arith.constant 0 : index
    %78 = vector.load %arg29[%c0_42, %c0_43] : memref<9x32xf32, #tpu.memory_space<vmem>>, vector<8x32xf32>
    tpu.vector_store %arg29[%c0_42, %c0_43], %77 {strides = array<i32>} : memref<9x32xf32, #tpu.memory_space<vmem>>, vector<8x32xf32>,
    %c0_44 = arith.constant 0 : index
    %c0_45 = arith.constant 0 : index
    %79 = vector.load %arg3[%c0_44, %c0_45] : memref<1x32xf32, #tpu.memory_space<vmem>>, vector<1x32xf32>
    %c8 = arith.constant 8 : index
    %c0_46 = arith.constant 0 : index
    %80 = vector.load %arg29[%c8, %c0_46] : memref<9x32xf32, #tpu.memory_space<vmem>>, vector<1x32xf32>
    tpu.vector_store %arg29[%c8, %c0_46], %79 {strides = array<i32>} : memref<9x32xf32, #tpu.memory_space<vmem>>, vector<1x32xf32>,
    %c0_47 = arith.constant 0 : index
    %c0_48 = arith.constant 0 : index
    %81 = vector.load %arg29[%c0_47, %c0_48] : memref<9x32xf32, #tpu.memory_space<vmem>>, vector<9x32xf32>
    %c0_49 = arith.constant 0 : index
    %c0_50 = arith.constant 0 : index
    %c0_51 = arith.constant 0 : index
    %82 = vector.load %arg13[%c0_49, %c0_50, %c0_51] : memref<2x1x32xf32, #tpu.memory_space<vmem>>, vector<1x1x32xf32>
    %83 = vector.shape_cast %82 : vector<1x1x32xf32> to vector<1x32xf32>
    %c0_52 = arith.constant 0 : index
    %c0_53 = arith.constant 0 : index
    %c0_54 = arith.constant 0 : index
    %84 = vector.load %arg14[%c0_52, %c0_53, %c0_54] : memref<2x1x32xf32, #tpu.memory_space<vmem>>, vector<1x1x32xf32>
    %85 = vector.shape_cast %84 : vector<1x1x32xf32> to vector<1x32xf32>
    %cst_55 = arith.constant dense<0.000000e+00> : vector<9xf32>
    %86 = vector.multi_reduction <add>, %81, %cst_55 [1] : vector<9x32xf32> to vector<9xf32>
    %87 = vector.shape_cast %86 : vector<9xf32> to vector<9x1xf32>
    %cst_56 = arith.constant 3.200000e+01 : f32
    %88 = vector.broadcast %cst_56 : f32 to vector<9x1xf32>
    %89 = arith.divf %87, %88 : vector<9x1xf32>
    %90 = vector.broadcast %89 : vector<9x1xf32> to vector<9x32xf32>
    %91 = arith.subf %81, %90 : vector<9x32xf32>
    %92 = arith.mulf %91, %91 : vector<9x32xf32>
    %cst_57 = arith.constant dense<0.000000e+00> : vector<9xf32>
    %93 = vector.multi_reduction <add>, %92, %cst_57 [1] : vector<9x32xf32> to vector<9xf32>
    %94 = vector.shape_cast %93 : vector<9xf32> to vector<9x1xf32>
    %cst_58 = arith.constant 3.200000e+01 : f32
    %95 = vector.broadcast %cst_58 : f32 to vector<9x1xf32>
    %96 = arith.divf %94, %95 : vector<9x1xf32>
    %cst_59 = arith.constant 9.99999974E-6 : f32
    %97 = vector.broadcast %cst_59 : f32 to vector<9x1xf32>
    %98 = arith.addf %96, %97 : vector<9x1xf32>
    %99 = math.rsqrt %98 : vector<9x1xf32>
    %100 = vector.broadcast %99 : vector<9x1xf32> to vector<9x32xf32>
    %101 = arith.mulf %91, %100 : vector<9x32xf32>
    %102 = vector.broadcast %83 : vector<1x32xf32> to vector<9x32xf32>
    %103 = arith.mulf %101, %102 : vector<9x32xf32>
    %104 = vector.broadcast %85 : vector<1x32xf32> to vector<9x32xf32>
    %105 = arith.addf %103, %104 : vector<9x32xf32>
    %c0_60 = arith.constant 0 : index
    %c0_61 = arith.constant 0 : index
    %c0_62 = arith.constant 0 : index
    %106 = vector.load %arg15[%c0_60, %c0_61, %c0_62] : memref<2x32x96xf32, #tpu.memory_space<vmem>>, vector<1x32x96xf32>
    %107 = vector.shape_cast %106 : vector<1x32x96xf32> to vector<32x96xf32>
    %cst_63 = arith.constant dense<0.000000e+00> : vector<9x96xf32>
    %108 = tpu.matmul %105, %107, %cst_63 {dimension_numbers = #tpu.dot_dimension_numbers<[1], [0], [0], [1], [0, 0, 1, 1], [], []>} : vector<9x32xf32>, vector<32x96xf32>, vector<9x96xf32> -> vector<9x96xf32>
    %109 = vector.extract_strided_slice %108 {offsets = [0, 0], sizes = [9, 8], strides = [1, 1]} : vector<9x96xf32> to vector<9x8xf32>
    %110 = vector.extract_strided_slice %108 {offsets = [0, 32], sizes = [9, 8], strides = [1, 1]} : vector<9x96xf32> to vector<9x8xf32>
    %111 = vector.extract_strided_slice %108 {offsets = [0, 64], sizes = [9, 8], strides = [1, 1]} : vector<9x96xf32> to vector<9x8xf32>
    "tpu.trace_start"() <{level = 10 : i32, message = "nd,md->nm"}> : () -> ()
    %cst_64 = arith.constant dense<0.000000e+00> : vector<9x9xf32>
    %112 = tpu.matmul %109, %110, %cst_64 {dimension_numbers = #tpu.dot_dimension_numbers<[1], [1], [0], [0], [0, 0, 1, 0], [], []>} : vector<9x8xf32>, vector<9x8xf32>, vector<9x9xf32> -> vector<9x9xf32>
    "tpu.trace_stop"() : () -> ()
    %cst_65 = arith.constant dense<0xFF800000> : vector<9xf32>
    %113 = vector.multi_reduction <maximumf>, %112, %cst_65 [1] : vector<9x9xf32> to vector<9xf32>
    %114 = vector.shape_cast %113 : vector<9xf32> to vector<9x1xf32>
    %115 = vector.broadcast %114 : vector<9x1xf32> to vector<9x9xf32>
    %116 = arith.subf %112, %115 : vector<9x9xf32>
    %117 = math.exp %116 : vector<9x9xf32>
    %cst_66 = arith.constant dense<0.000000e+00> : vector<9xf32>
    %118 = vector.multi_reduction <add>, %117, %cst_66 [1] : vector<9x9xf32> to vector<9xf32>
    %119 = vector.shape_cast %118 : vector<9xf32> to vector<9x1xf32>
    %120 = tpu.reciprocal %119 {approx = true} : vector<9x1xf32> -> vector<9x1xf32>
    %121 = vector.broadcast %120 : vector<9x1xf32> to vector<9x9xf32>
    %122 = arith.mulf %117, %121 : vector<9x9xf32>
    %cst_67 = arith.constant dense<0.000000e+00> : vector<9x8xf32>
    %123 = tpu.matmul %122, %111, %cst_67 {dimension_numbers = #tpu.dot_dimension_numbers<[1], [0], [0], [1], [0, 0, 1, 1], [], []>} : vector<9x9xf32>, vector<9x8xf32>, vector<9x8xf32> -> vector<9x8xf32>
    %c0_68 = arith.constant 0 : index
    %c0_69 = arith.constant 0 : index
    %124 = vector.load %arg30[%c0_68, %c0_69] : memref<9x32xf32, #tpu.memory_space<vmem>>, vector<9x8xf32>
    tpu.vector_store %arg30[%c0_68, %c0_69], %123 {strides = array<i32>} : memref<9x32xf32, #tpu.memory_space<vmem>>, vector<9x8xf32>,
    %125 = vector.extract_strided_slice %108 {offsets = [0, 8], sizes = [9, 8], strides = [1, 1]} : vector<9x96xf32> to vector<9x8xf32>
    %126 = vector.extract_strided_slice %108 {offsets = [0, 40], sizes = [9, 8], strides = [1, 1]} : vector<9x96xf32> to vector<9x8xf32>
    %127 = vector.extract_strided_slice %108 {offsets = [0, 72], sizes = [9, 8], strides = [1, 1]} : vector<9x96xf32> to vector<9x8xf32>
    "tpu.trace_start"() <{level = 10 : i32, message = "nd,md->nm"}> : () -> ()
    %cst_70 = arith.constant dense<0.000000e+00> : vector<9x9xf32>
    %128 = tpu.matmul %125, %126, %cst_70 {dimension_numbers = #tpu.dot_dimension_numbers<[1], [1], [0], [0], [0, 0, 1, 0], [], []>} : vector<9x8xf32>, vector<9x8xf32>, vector<9x9xf32> -> vector<9x9xf32>
    "tpu.trace_stop"() : () -> ()
    %cst_71 = arith.constant dense<0xFF800000> : vector<9xf32>
    %129 = vector.multi_reduction <maximumf>, %128, %cst_71 [1] : vector<9x9xf32> to vector<9xf32>
    %130 = vector.shape_cast %129 : vector<9xf32> to vector<9x1xf32>
    %131 = vector.broadcast %130 : vector<9x1xf32> to vector<9x9xf32>
    %132 = arith.subf %128, %131 : vector<9x9xf32>
    %133 = math.exp %132 : vector<9x9xf32>
    %cst_72 = arith.constant dense<0.000000e+00> : vector<9xf32>
    %134 = vector.multi_reduction <add>, %133, %cst_72 [1] : vector<9x9xf32> to vector<9xf32>
    %135 = vector.shape_cast %134 : vector<9xf32> to vector<9x1xf32>
    %136 = tpu.reciprocal %135 {approx = true} : vector<9x1xf32> -> vector<9x1xf32>
    %137 = vector.broadcast %136 : vector<9x1xf32> to vector<9x9xf32>
    %138 = arith.mulf %133, %137 : vector<9x9xf32>
    %cst_73 = arith.constant dense<0.000000e+00> : vector<9x8xf32>
    %139 = tpu.matmul %138, %127, %cst_73 {dimension_numbers = #tpu.dot_dimension_numbers<[1], [0], [0], [1], [0, 0, 1, 1], [], []>} : vector<9x9xf32>, vector<9x8xf32>, vector<9x8xf32> -> vector<9x8xf32>
    %c0_74 = arith.constant 0 : index
    %c8_75 = arith.constant 8 : index
    %140 = vector.load %arg30[%c0_74, %c8_75] : memref<9x32xf32, #tpu.memory_space<vmem>>, vector<9x8xf32>
    tpu.vector_store %arg30[%c0_74, %c8_75], %139 {strides = array<i32>} : memref<9x32xf32, #tpu.memory_space<vmem>>, vector<9x8xf32>,
    %141 = vector.extract_strided_slice %108 {offsets = [0, 16], sizes = [9, 8], strides = [1, 1]} : vector<9x96xf32> to vector<9x8xf32>
    %142 = vector.extract_strided_slice %108 {offsets = [0, 48], sizes = [9, 8], strides = [1, 1]} : vector<9x96xf32> to vector<9x8xf32>
    %143 = vector.extract_strided_slice %108 {offsets = [0, 80], sizes = [9, 8], strides = [1, 1]} : vector<9x96xf32> to vector<9x8xf32>
    "tpu.trace_start"() <{level = 10 : i32, message = "nd,md->nm"}> : () -> ()
    %cst_76 = arith.constant dense<0.000000e+00> : vector<9x9xf32>
    %144 = tpu.matmul %141, %142, %cst_76 {dimension_numbers = #tpu.dot_dimension_numbers<[1], [1], [0], [0], [0, 0, 1, 0], [], []>} : vector<9x8xf32>, vector<9x8xf32>, vector<9x9xf32> -> vector<9x9xf32>
    "tpu.trace_stop"() : () -> ()
    %cst_77 = arith.constant dense<0xFF800000> : vector<9xf32>
    %145 = vector.multi_reduction <maximumf>, %144, %cst_77 [1] : vector<9x9xf32> to vector<9xf32>
    %146 = vector.shape_cast %145 : vector<9xf32> to vector<9x1xf32>
    %147 = vector.broadcast %146 : vector<9x1xf32> to vector<9x9xf32>
    %148 = arith.subf %144, %147 : vector<9x9xf32>
    %149 = math.exp %148 : vector<9x9xf32>
    %cst_78 = arith.constant dense<0.000000e+00> : vector<9xf32>
    %150 = vector.multi_reduction <add>, %149, %cst_78 [1] : vector<9x9xf32> to vector<9xf32>
    %151 = vector.shape_cast %150 : vector<9xf32> to vector<9x1xf32>
    %152 = tpu.reciprocal %151 {approx = true} : vector<9x1xf32> -> vector<9x1xf32>
    %153 = vector.broadcast %152 : vector<9x1xf32> to vector<9x9xf32>
    %154 = arith.mulf %149, %153 : vector<9x9xf32>
    %cst_79 = arith.constant dense<0.000000e+00> : vector<9x8xf32>
    %155 = tpu.matmul %154, %143, %cst_79 {dimension_numbers = #tpu.dot_dimension_numbers<[1], [0], [0], [1], [0, 0, 1, 1], [], []>} : vector<9x9xf32>, vector<9x8xf32>, vector<9x8xf32> -> vector<9x8xf32>
    %c0_80 = arith.constant 0 : index
    %c16 = arith.constant 16 : index
    %156 = vector.load %arg30[%c0_80, %c16] : memref<9x32xf32, #tpu.memory_space<vmem>>, vector<9x8xf32>
    tpu.vector_store %arg30[%c0_80, %c16], %155 {strides = array<i32>} : memref<9x32xf32, #tpu.memory_space<vmem>>, vector<9x8xf32>,
    %157 = vector.extract_strided_slice %108 {offsets = [0, 24], sizes = [9, 8], strides = [1, 1]} : vector<9x96xf32> to vector<9x8xf32>
    %158 = vector.extract_strided_slice %108 {offsets = [0, 56], sizes = [9, 8], strides = [1, 1]} : vector<9x96xf32> to vector<9x8xf32>
    %159 = vector.extract_strided_slice %108 {offsets = [0, 88], sizes = [9, 8], strides = [1, 1]} : vector<9x96xf32> to vector<9x8xf32>
    "tpu.trace_start"() <{level = 10 : i32, message = "nd,md->nm"}> : () -> ()
    %cst_81 = arith.constant dense<0.000000e+00> : vector<9x9xf32>
    %160 = tpu.matmul %157, %158, %cst_81 {dimension_numbers = #tpu.dot_dimension_numbers<[1], [1], [0], [0], [0, 0, 1, 0], [], []>} : vector<9x8xf32>, vector<9x8xf32>, vector<9x9xf32> -> vector<9x9xf32>
    "tpu.trace_stop"() : () -> ()
    %cst_82 = arith.constant dense<0xFF800000> : vector<9xf32>
    %161 = vector.multi_reduction <maximumf>, %160, %cst_82 [1] : vector<9x9xf32> to vector<9xf32>
    %162 = vector.shape_cast %161 : vector<9xf32> to vector<9x1xf32>
    %163 = vector.broadcast %162 : vector<9x1xf32> to vector<9x9xf32>
    %164 = arith.subf %160, %163 : vector<9x9xf32>
    %165 = math.exp %164 : vector<9x9xf32>
    %cst_83 = arith.constant dense<0.000000e+00> : vector<9xf32>
    %166 = vector.multi_reduction <add>, %165, %cst_83 [1] : vector<9x9xf32> to vector<9xf32>
    %167 = vector.shape_cast %166 : vector<9xf32> to vector<9x1xf32>
    %168 = tpu.reciprocal %167 {approx = true} : vector<9x1xf32> -> vector<9x1xf32>
    %169 = vector.broadcast %168 : vector<9x1xf32> to vector<9x9xf32>
    %170 = arith.mulf %165, %169 : vector<9x9xf32>
    %cst_84 = arith.constant dense<0.000000e+00> : vector<9x8xf32>
    %171 = tpu.matmul %170, %159, %cst_84 {dimension_numbers = #tpu.dot_dimension_numbers<[1], [0], [0], [1], [0, 0, 1, 1], [], []>} : vector<9x9xf32>, vector<9x8xf32>, vector<9x8xf32> -> vector<9x8xf32>
    %c0_85 = arith.constant 0 : index
    %c24 = arith.constant 24 : index
    %172 = vector.load %arg30[%c0_85, %c24] : memref<9x32xf32, #tpu.memory_space<vmem>>, vector<9x8xf32>
    tpu.vector_store %arg30[%c0_85, %c24], %171 {strides = array<i32>} : memref<9x32xf32, #tpu.memory_space<vmem>>, vector<9x8xf32>,
    %c0_86 = arith.constant 0 : index
    %c0_87 = arith.constant 0 : index
    %173 = vector.load %arg30[%c0_86, %c0_87] : memref<9x32xf32, #tpu.memory_space<vmem>>, vector<9x32xf32>
    %c0_88 = arith.constant 0 : index
    %c0_89 = arith.constant 0 : index
    %c0_90 = arith.constant 0 : index
    %174 = vector.load %arg16[%c0_88, %c0_89, %c0_90] : memref<2x32x32xf32, #tpu.memory_space<vmem>>, vector<1x32x32xf32>
    %175 = vector.shape_cast %174 : vector<1x32x32xf32> to vector<32x32xf32>
    %cst_91 = arith.constant dense<0.000000e+00> : vector<9x32xf32>
    %176 = tpu.matmul %173, %175, %cst_91 {dimension_numbers = #tpu.dot_dimension_numbers<[1], [0], [0], [1], [0, 0, 1, 1], [], []>} : vector<9x32xf32>, vector<32x32xf32>, vector<9x32xf32> -> vector<9x32xf32>
    %177 = arith.addf %81, %176 : vector<9x32xf32>
    %c0_92 = arith.constant 0 : index
    %c0_93 = arith.constant 0 : index
    %c0_94 = arith.constant 0 : index
    %178 = vector.load %arg17[%c0_92, %c0_93, %c0_94] : memref<2x1x32xf32, #tpu.memory_space<vmem>>, vector<1x1x32xf32>
    %179 = vector.shape_cast %178 : vector<1x1x32xf32> to vector<1x32xf32>
    %180 = vector.broadcast %179 : vector<1x32xf32> to vector<9x32xf32>
    %181 = arith.addf %177, %180 : vector<9x32xf32>
    %c0_95 = arith.constant 0 : index
    %c0_96 = arith.constant 0 : index
    %c0_97 = arith.constant 0 : index
    %182 = vector.load %arg18[%c0_95, %c0_96, %c0_97] : memref<2x1x32xf32, #tpu.memory_space<vmem>>, vector<1x1x32xf32>
    %183 = vector.shape_cast %182 : vector<1x1x32xf32> to vector<1x32xf32>
    %c0_98 = arith.constant 0 : index
    %c0_99 = arith.constant 0 : index
    %c0_100 = arith.constant 0 : index
    %184 = vector.load %arg19[%c0_98, %c0_99, %c0_100] : memref<2x1x32xf32, #tpu.memory_space<vmem>>, vector<1x1x32xf32>
    %185 = vector.shape_cast %184 : vector<1x1x32xf32> to vector<1x32xf32>
    %cst_101 = arith.constant dense<0.000000e+00> : vector<9xf32>
    %186 = vector.multi_reduction <add>, %181, %cst_101 [1] : vector<9x32xf32> to vector<9xf32>
    %187 = vector.shape_cast %186 : vector<9xf32> to vector<9x1xf32>
    %cst_102 = arith.constant 3.200000e+01 : f32
    %188 = vector.broadcast %cst_102 : f32 to vector<9x1xf32>
    %189 = arith.divf %187, %188 : vector<9x1xf32>
    %190 = vector.broadcast %189 : vector<9x1xf32> to vector<9x32xf32>
    %191 = arith.subf %181, %190 : vector<9x32xf32>
    %192 = arith.mulf %191, %191 : vector<9x32xf32>
    %cst_103 = arith.constant dense<0.000000e+00> : vector<9xf32>
    %193 = vector.multi_reduction <add>, %192, %cst_103 [1] : vector<9x32xf32> to vector<9xf32>
    %194 = vector.shape_cast %193 : vector<9xf32> to vector<9x1xf32>
    %cst_104 = arith.constant 3.200000e+01 : f32
    %195 = vector.broadcast %cst_104 : f32 to vector<9x1xf32>
    %196 = arith.divf %194, %195 : vector<9x1xf32>
    %cst_105 = arith.constant 9.99999974E-6 : f32
    %197 = vector.broadcast %cst_105 : f32 to vector<9x1xf32>
    %198 = arith.addf %196, %197 : vector<9x1xf32>
    %199 = math.rsqrt %198 : vector<9x1xf32>
    %200 = vector.broadcast %199 : vector<9x1xf32> to vector<9x32xf32>
    %201 = arith.mulf %191, %200 : vector<9x32xf32>
    %202 = vector.broadcast %183 : vector<1x32xf32> to vector<9x32xf32>
    %203 = arith.mulf %201, %202 : vector<9x32xf32>
    %204 = vector.broadcast %185 : vector<1x32xf32> to vector<9x32xf32>
    %205 = arith.addf %203, %204 : vector<9x32xf32>
    %c0_106 = arith.constant 0 : index
    %c0_107 = arith.constant 0 : index
    %c0_108 = arith.constant 0 : index
    %206 = vector.load %arg20[%c0_106, %c0_107, %c0_108] : memref<2x32x64xf32, #tpu.memory_space<vmem>>, vector<1x32x64xf32>
    %207 = vector.shape_cast %206 : vector<1x32x64xf32> to vector<32x64xf32>
    %cst_109 = arith.constant dense<0.000000e+00> : vector<9x64xf32>
    %208 = tpu.matmul %205, %207, %cst_109 {dimension_numbers = #tpu.dot_dimension_numbers<[1], [0], [0], [1], [0, 0, 1, 1], [], []>} : vector<9x32xf32>, vector<32x64xf32>, vector<9x64xf32> -> vector<9x64xf32>
    %c0_110 = arith.constant 0 : index
    %c0_111 = arith.constant 0 : index
    %c0_112 = arith.constant 0 : index
    %209 = vector.load %arg21[%c0_110, %c0_111, %c0_112] : memref<2x1x64xf32, #tpu.memory_space<vmem>>, vector<1x1x64xf32>
    %210 = vector.shape_cast %209 : vector<1x1x64xf32> to vector<1x64xf32>
    %211 = vector.broadcast %210 : vector<1x64xf32> to vector<9x64xf32>
    %212 = arith.addf %208, %211 : vector<9x64xf32>
    %cst_113 = arith.constant 5.000000e-01 : f32
    %213 = vector.broadcast %cst_113 : f32 to vector<9x64xf32>
    %214 = arith.mulf %213, %212 : vector<9x64xf32>
    %cst_114 = arith.constant 4.471500e-02 : f32
    %215 = vector.broadcast %cst_114 : f32 to vector<9x64xf32>
    %216 = arith.mulf %215, %212 : vector<9x64xf32>
    %217 = arith.mulf %216, %212 : vector<9x64xf32>
    %218 = arith.mulf %217, %212 : vector<9x64xf32>
    %219 = arith.addf %212, %218 : vector<9x64xf32>
    %cst_115 = arith.constant 0.797884583 : f32
    %220 = vector.broadcast %cst_115 : f32 to vector<9x64xf32>
    %221 = arith.mulf %220, %219 : vector<9x64xf32>
    %222 = math.tanh %221 : vector<9x64xf32>
    %cst_116 = arith.constant 1.000000e+00 : f32
    %223 = vector.broadcast %cst_116 : f32 to vector<9x64xf32>
    %224 = arith.addf %223, %222 : vector<9x64xf32>
    %225 = arith.mulf %214, %224 : vector<9x64xf32>
    %c0_117 = arith.constant 0 : index
    %c0_118 = arith.constant 0 : index
    %c0_119 = arith.constant 0 : index
    %226 = vector.load %arg22[%c0_117, %c0_118, %c0_119] : memref<2x64x32xf32, #tpu.memory_space<vmem>>, vector<1x64x32xf32>
    %227 = vector.shape_cast %226 : vector<1x64x32xf32> to vector<64x32xf32>
    %cst_120 = arith.constant dense<0.000000e+00> : vector<9x32xf32>
    %228 = tpu.matmul %225, %227, %cst_120 {dimension_numbers = #tpu.dot_dimension_numbers<[1], [0], [0], [1], [0, 0, 1, 1], [], []>} : vector<9x64xf32>, vector<64x32xf32>, vector<9x32xf32> -> vector<9x32xf32>
    %229 = arith.addf %181, %228 : vector<9x32xf32>
    %c0_121 = arith.constant 0 : index
    %c0_122 = arith.constant 0 : index
    %c0_123 = arith.constant 0 : index
    %230 = vector.load %arg23[%c0_121, %c0_122, %c0_123] : memref<2x1x32xf32, #tpu.memory_space<vmem>>, vector<1x1x32xf32>
    %231 = vector.shape_cast %230 : vector<1x1x32xf32> to vector<1x32xf32>
    %232 = vector.broadcast %231 : vector<1x32xf32> to vector<9x32xf32>
    %233 = arith.addf %229, %232 : vector<9x32xf32>
    %c1 = arith.constant 1 : index
    %c0_124 = arith.constant 0 : index
    %c0_125 = arith.constant 0 : index
    %234 = vector.load %arg13[%c1, %c0_124, %c0_125] : memref<2x1x32xf32, #tpu.memory_space<vmem>>, vector<1x1x32xf32>
    %235 = vector.shape_cast %234 : vector<1x1x32xf32> to vector<1x32xf32>
    %c1_126 = arith.constant 1 : index
    %c0_127 = arith.constant 0 : index
    %c0_128 = arith.constant 0 : index
    %236 = vector.load %arg14[%c1_126, %c0_127, %c0_128] : memref<2x1x32xf32, #tpu.memory_space<vmem>>, vector<1x1x32xf32>
    %237 = vector.shape_cast %236 : vector<1x1x32xf32> to vector<1x32xf32>
    %cst_129 = arith.constant dense<0.000000e+00> : vector<9xf32>
    %238 = vector.multi_reduction <add>, %233, %cst_129 [1] : vector<9x32xf32> to vector<9xf32>
    %239 = vector.shape_cast %238 : vector<9xf32> to vector<9x1xf32>
    %cst_130 = arith.constant 3.200000e+01 : f32
    %240 = vector.broadcast %cst_130 : f32 to vector<9x1xf32>
    %241 = arith.divf %239, %240 : vector<9x1xf32>
    %242 = vector.broadcast %241 : vector<9x1xf32> to vector<9x32xf32>
    %243 = arith.subf %233, %242 : vector<9x32xf32>
    %244 = arith.mulf %243, %243 : vector<9x32xf32>
    %cst_131 = arith.constant dense<0.000000e+00> : vector<9xf32>
    %245 = vector.multi_reduction <add>, %244, %cst_131 [1] : vector<9x32xf32> to vector<9xf32>
    %246 = vector.shape_cast %245 : vector<9xf32> to vector<9x1xf32>
    %cst_132 = arith.constant 3.200000e+01 : f32
    %247 = vector.broadcast %cst_132 : f32 to vector<9x1xf32>
    %248 = arith.divf %246, %247 : vector<9x1xf32>
    %cst_133 = arith.constant 9.99999974E-6 : f32
    %249 = vector.broadcast %cst_133 : f32 to vector<9x1xf32>
    %250 = arith.addf %248, %249 : vector<9x1xf32>
    %251 = math.rsqrt %250 : vector<9x1xf32>
    %252 = vector.broadcast %251 : vector<9x1xf32> to vector<9x32xf32>
    %253 = arith.mulf %243, %252 : vector<9x32xf32>
    %254 = vector.broadcast %235 : vector<1x32xf32> to vector<9x32xf32>
    %255 = arith.mulf %253, %254 : vector<9x32xf32>
    %256 = vector.broadcast %237 : vector<1x32xf32> to vector<9x32xf32>
    %257 = arith.addf %255, %256 : vector<9x32xf32>
    %c1_134 = arith.constant 1 : index
    %c0_135 = arith.constant 0 : index
    %c0_136 = arith.constant 0 : index
    %258 = vector.load %arg15[%c1_134, %c0_135, %c0_136] : memref<2x32x96xf32, #tpu.memory_space<vmem>>, vector<1x32x96xf32>
    %259 = vector.shape_cast %258 : vector<1x32x96xf32> to vector<32x96xf32>
    %cst_137 = arith.constant dense<0.000000e+00> : vector<9x96xf32>
    %260 = tpu.matmul %257, %259, %cst_137 {dimension_numbers = #tpu.dot_dimension_numbers<[1], [0], [0], [1], [0, 0, 1, 1], [], []>} : vector<9x32xf32>, vector<32x96xf32>, vector<9x96xf32> -> vector<9x96xf32>
    %261 = vector.extract_strided_slice %260 {offsets = [0, 0], sizes = [9, 8], strides = [1, 1]} : vector<9x96xf32> to vector<9x8xf32>
    %262 = vector.extract_strided_slice %260 {offsets = [0, 32], sizes = [9, 8], strides = [1, 1]} : vector<9x96xf32> to vector<9x8xf32>
    %263 = vector.extract_strided_slice %260 {offsets = [0, 64], sizes = [9, 8], strides = [1, 1]} : vector<9x96xf32> to vector<9x8xf32>
    "tpu.trace_start"() <{level = 10 : i32, message = "nd,md->nm"}> : () -> ()
    %cst_138 = arith.constant dense<0.000000e+00> : vector<9x9xf32>
    %264 = tpu.matmul %261, %262, %cst_138 {dimension_numbers = #tpu.dot_dimension_numbers<[1], [1], [0], [0], [0, 0, 1, 0], [], []>} : vector<9x8xf32>, vector<9x8xf32>, vector<9x9xf32> -> vector<9x9xf32>
    "tpu.trace_stop"() : () -> ()
    %cst_139 = arith.constant dense<0xFF800000> : vector<9xf32>
    %265 = vector.multi_reduction <maximumf>, %264, %cst_139 [1] : vector<9x9xf32> to vector<9xf32>
    %266 = vector.shape_cast %265 : vector<9xf32> to vector<9x1xf32>
    %267 = vector.broadcast %266 : vector<9x1xf32> to vector<9x9xf32>
    %268 = arith.subf %264, %267 : vector<9x9xf32>
    %269 = math.exp %268 : vector<9x9xf32>
    %cst_140 = arith.constant dense<0.000000e+00> : vector<9xf32>
    %270 = vector.multi_reduction <add>, %269, %cst_140 [1] : vector<9x9xf32> to vector<9xf32>
    %271 = vector.shape_cast %270 : vector<9xf32> to vector<9x1xf32>
    %272 = tpu.reciprocal %271 {approx = true} : vector<9x1xf32> -> vector<9x1xf32>
    %273 = vector.broadcast %272 : vector<9x1xf32> to vector<9x9xf32>
    %274 = arith.mulf %269, %273 : vector<9x9xf32>
    %cst_141 = arith.constant dense<0.000000e+00> : vector<9x8xf32>
    %275 = tpu.matmul %274, %263, %cst_141 {dimension_numbers = #tpu.dot_dimension_numbers<[1], [0], [0], [1], [0, 0, 1, 1], [], []>} : vector<9x9xf32>, vector<9x8xf32>, vector<9x8xf32> -> vector<9x8xf32>
    %c0_142 = arith.constant 0 : index
    %c0_143 = arith.constant 0 : index
    %276 = vector.load %arg30[%c0_142, %c0_143] : memref<9x32xf32, #tpu.memory_space<vmem>>, vector<9x8xf32>
    tpu.vector_store %arg30[%c0_142, %c0_143], %275 {strides = array<i32>} : memref<9x32xf32, #tpu.memory_space<vmem>>, vector<9x8xf32>,
    %277 = vector.extract_strided_slice %260 {offsets = [0, 8], sizes = [9, 8], strides = [1, 1]} : vector<9x96xf32> to vector<9x8xf32>
    %278 = vector.extract_strided_slice %260 {offsets = [0, 40], sizes = [9, 8], strides = [1, 1]} : vector<9x96xf32> to vector<9x8xf32>
    %279 = vector.extract_strided_slice %260 {offsets = [0, 72], sizes = [9, 8], strides = [1, 1]} : vector<9x96xf32> to vector<9x8xf32>
    "tpu.trace_start"() <{level = 10 : i32, message = "nd,md->nm"}> : () -> ()
    %cst_144 = arith.constant dense<0.000000e+00> : vector<9x9xf32>
    %280 = tpu.matmul %277, %278, %cst_144 {dimension_numbers = #tpu.dot_dimension_numbers<[1], [1], [0], [0], [0, 0, 1, 0], [], []>} : vector<9x8xf32>, vector<9x8xf32>, vector<9x9xf32> -> vector<9x9xf32>
    "tpu.trace_stop"() : () -> ()
    %cst_145 = arith.constant dense<0xFF800000> : vector<9xf32>
    %281 = vector.multi_reduction <maximumf>, %280, %cst_145 [1] : vector<9x9xf32> to vector<9xf32>
    %282 = vector.shape_cast %281 : vector<9xf32> to vector<9x1xf32>
    %283 = vector.broadcast %282 : vector<9x1xf32> to vector<9x9xf32>
    %284 = arith.subf %280, %283 : vector<9x9xf32>
    %285 = math.exp %284 : vector<9x9xf32>
    %cst_146 = arith.constant dense<0.000000e+00> : vector<9xf32>
    %286 = vector.multi_reduction <add>, %285, %cst_146 [1] : vector<9x9xf32> to vector<9xf32>
    %287 = vector.shape_cast %286 : vector<9xf32> to vector<9x1xf32>
    %288 = tpu.reciprocal %287 {approx = true} : vector<9x1xf32> -> vector<9x1xf32>
    %289 = vector.broadcast %288 : vector<9x1xf32> to vector<9x9xf32>
    %290 = arith.mulf %285, %289 : vector<9x9xf32>
    %cst_147 = arith.constant dense<0.000000e+00> : vector<9x8xf32>
    %291 = tpu.matmul %290, %279, %cst_147 {dimension_numbers = #tpu.dot_dimension_numbers<[1], [0], [0], [1], [0, 0, 1, 1], [], []>} : vector<9x9xf32>, vector<9x8xf32>, vector<9x8xf32> -> vector<9x8xf32>
    %c0_148 = arith.constant 0 : index
    %c8_149 = arith.constant 8 : index
    %292 = vector.load %arg30[%c0_148, %c8_149] : memref<9x32xf32, #tpu.memory_space<vmem>>, vector<9x8xf32>
    tpu.vector_store %arg30[%c0_148, %c8_149], %291 {strides = array<i32>} : memref<9x32xf32, #tpu.memory_space<vmem>>, vector<9x8xf32>,
    %293 = vector.extract_strided_slice %260 {offsets = [0, 16], sizes = [9, 8], strides = [1, 1]} : vector<9x96xf32> to vector<9x8xf32>
    %294 = vector.extract_strided_slice %260 {offsets = [0, 48], sizes = [9, 8], strides = [1, 1]} : vector<9x96xf32> to vector<9x8xf32>
    %295 = vector.extract_strided_slice %260 {offsets = [0, 80], sizes = [9, 8], strides = [1, 1]} : vector<9x96xf32> to vector<9x8xf32>
    "tpu.trace_start"() <{level = 10 : i32, message = "nd,md->nm"}> : () -> ()
    %cst_150 = arith.constant dense<0.000000e+00> : vector<9x9xf32>
    %296 = tpu.matmul %293, %294, %cst_150 {dimension_numbers = #tpu.dot_dimension_numbers<[1], [1], [0], [0], [0, 0, 1, 0], [], []>} : vector<9x8xf32>, vector<9x8xf32>, vector<9x9xf32> -> vector<9x9xf32>
    "tpu.trace_stop"() : () -> ()
    %cst_151 = arith.constant dense<0xFF800000> : vector<9xf32>
    %297 = vector.multi_reduction <maximumf>, %296, %cst_151 [1] : vector<9x9xf32> to vector<9xf32>
    %298 = vector.shape_cast %297 : vector<9xf32> to vector<9x1xf32>
    %299 = vector.broadcast %298 : vector<9x1xf32> to vector<9x9xf32>
    %300 = arith.subf %296, %299 : vector<9x9xf32>
    %301 = math.exp %300 : vector<9x9xf32>
    %cst_152 = arith.constant dense<0.000000e+00> : vector<9xf32>
    %302 = vector.multi_reduction <add>, %301, %cst_152 [1] : vector<9x9xf32> to vector<9xf32>
    %303 = vector.shape_cast %302 : vector<9xf32> to vector<9x1xf32>
    %304 = tpu.reciprocal %303 {approx = true} : vector<9x1xf32> -> vector<9x1xf32>
    %305 = vector.broadcast %304 : vector<9x1xf32> to vector<9x9xf32>
    %306 = arith.mulf %301, %305 : vector<9x9xf32>
    %cst_153 = arith.constant dense<0.000000e+00> : vector<9x8xf32>
    %307 = tpu.matmul %306, %295, %cst_153 {dimension_numbers = #tpu.dot_dimension_numbers<[1], [0], [0], [1], [0, 0, 1, 1], [], []>} : vector<9x9xf32>, vector<9x8xf32>, vector<9x8xf32> -> vector<9x8xf32>
    %c0_154 = arith.constant 0 : index
    %c16_155 = arith.constant 16 : index
    %308 = vector.load %arg30[%c0_154, %c16_155] : memref<9x32xf32, #tpu.memory_space<vmem>>, vector<9x8xf32>
    tpu.vector_store %arg30[%c0_154, %c16_155], %307 {strides = array<i32>} : memref<9x32xf32, #tpu.memory_space<vmem>>, vector<9x8xf32>,
    %309 = vector.extract_strided_slice %260 {offsets = [0, 24], sizes = [9, 8], strides = [1, 1]} : vector<9x96xf32> to vector<9x8xf32>
    %310 = vector.extract_strided_slice %260 {offsets = [0, 56], sizes = [9, 8], strides = [1, 1]} : vector<9x96xf32> to vector<9x8xf32>
    %311 = vector.extract_strided_slice %260 {offsets = [0, 88], sizes = [9, 8], strides = [1, 1]} : vector<9x96xf32> to vector<9x8xf32>
    "tpu.trace_start"() <{level = 10 : i32, message = "nd,md->nm"}> : () -> ()
    %cst_156 = arith.constant dense<0.000000e+00> : vector<9x9xf32>
    %312 = tpu.matmul %309, %310, %cst_156 {dimension_numbers = #tpu.dot_dimension_numbers<[1], [1], [0], [0], [0, 0, 1, 0], [], []>} : vector<9x8xf32>, vector<9x8xf32>, vector<9x9xf32> -> vector<9x9xf32>
    "tpu.trace_stop"() : () -> ()
    %cst_157 = arith.constant dense<0xFF800000> : vector<9xf32>
    %313 = vector.multi_reduction <maximumf>, %312, %cst_157 [1] : vector<9x9xf32> to vector<9xf32>
    %314 = vector.shape_cast %313 : vector<9xf32> to vector<9x1xf32>
    %315 = vector.broadcast %314 : vector<9x1xf32> to vector<9x9xf32>
    %316 = arith.subf %312, %315 : vector<9x9xf32>
    %317 = math.exp %316 : vector<9x9xf32>
    %cst_158 = arith.constant dense<0.000000e+00> : vector<9xf32>
    %318 = vector.multi_reduction <add>, %317, %cst_158 [1] : vector<9x9xf32> to vector<9xf32>
    %319 = vector.shape_cast %318 : vector<9xf32> to vector<9x1xf32>
    %320 = tpu.reciprocal %319 {approx = true} : vector<9x1xf32> -> vector<9x1xf32>
    %321 = vector.broadcast %320 : vector<9x1xf32> to vector<9x9xf32>
    %322 = arith.mulf %317, %321 : vector<9x9xf32>
    %cst_159 = arith.constant dense<0.000000e+00> : vector<9x8xf32>
    %323 = tpu.matmul %322, %311, %cst_159 {dimension_numbers = #tpu.dot_dimension_numbers<[1], [0], [0], [1], [0, 0, 1, 1], [], []>} : vector<9x9xf32>, vector<9x8xf32>, vector<9x8xf32> -> vector<9x8xf32>
    %c0_160 = arith.constant 0 : index
    %c24_161 = arith.constant 24 : index
    %324 = vector.load %arg30[%c0_160, %c24_161] : memref<9x32xf32, #tpu.memory_space<vmem>>, vector<9x8xf32>
    tpu.vector_store %arg30[%c0_160, %c24_161], %323 {strides = array<i32>} : memref<9x32xf32, #tpu.memory_space<vmem>>, vector<9x8xf32>,
    %c0_162 = arith.constant 0 : index
    %c0_163 = arith.constant 0 : index
    %325 = vector.load %arg30[%c0_162, %c0_163] : memref<9x32xf32, #tpu.memory_space<vmem>>, vector<9x32xf32>
    %c1_164 = arith.constant 1 : index
    %c0_165 = arith.constant 0 : index
    %c0_166 = arith.constant 0 : index
    %326 = vector.load %arg16[%c1_164, %c0_165, %c0_166] : memref<2x32x32xf32, #tpu.memory_space<vmem>>, vector<1x32x32xf32>
    %327 = vector.shape_cast %326 : vector<1x32x32xf32> to vector<32x32xf32>
    %cst_167 = arith.constant dense<0.000000e+00> : vector<9x32xf32>
    %328 = tpu.matmul %325, %327, %cst_167 {dimension_numbers = #tpu.dot_dimension_numbers<[1], [0], [0], [1], [0, 0, 1, 1], [], []>} : vector<9x32xf32>, vector<32x32xf32>, vector<9x32xf32> -> vector<9x32xf32>
    %329 = arith.addf %233, %328 : vector<9x32xf32>
    %c1_168 = arith.constant 1 : index
    %c0_169 = arith.constant 0 : index
    %c0_170 = arith.constant 0 : index
    %330 = vector.load %arg17[%c1_168, %c0_169, %c0_170] : memref<2x1x32xf32, #tpu.memory_space<vmem>>, vector<1x1x32xf32>
    %331 = vector.shape_cast %330 : vector<1x1x32xf32> to vector<1x32xf32>
    %332 = vector.broadcast %331 : vector<1x32xf32> to vector<9x32xf32>
    %333 = arith.addf %329, %332 : vector<9x32xf32>
    %c1_171 = arith.constant 1 : index
    %c0_172 = arith.constant 0 : index
    %c0_173 = arith.constant 0 : index
    %334 = vector.load %arg18[%c1_171, %c0_172, %c0_173] : memref<2x1x32xf32, #tpu.memory_space<vmem>>, vector<1x1x32xf32>
    %335 = vector.shape_cast %334 : vector<1x1x32xf32> to vector<1x32xf32>
    %c1_174 = arith.constant 1 : index
    %c0_175 = arith.constant 0 : index
    %c0_176 = arith.constant 0 : index
    %336 = vector.load %arg19[%c1_174, %c0_175, %c0_176] : memref<2x1x32xf32, #tpu.memory_space<vmem>>, vector<1x1x32xf32>
    %337 = vector.shape_cast %336 : vector<1x1x32xf32> to vector<1x32xf32>
    %cst_177 = arith.constant dense<0.000000e+00> : vector<9xf32>
    %338 = vector.multi_reduction <add>, %333, %cst_177 [1] : vector<9x32xf32> to vector<9xf32>
    %339 = vector.shape_cast %338 : vector<9xf32> to vector<9x1xf32>
    %cst_178 = arith.constant 3.200000e+01 : f32
    %340 = vector.broadcast %cst_178 : f32 to vector<9x1xf32>
    %341 = arith.divf %339, %340 : vector<9x1xf32>
    %342 = vector.broadcast %341 : vector<9x1xf32> to vector<9x32xf32>
    %343 = arith.subf %333, %342 : vector<9x32xf32>
    %344 = arith.mulf %343, %343 : vector<9x32xf32>
    %cst_179 = arith.constant dense<0.000000e+00> : vector<9xf32>
    %345 = vector.multi_reduction <add>, %344, %cst_179 [1] : vector<9x32xf32> to vector<9xf32>
    %346 = vector.shape_cast %345 : vector<9xf32> to vector<9x1xf32>
    %cst_180 = arith.constant 3.200000e+01 : f32
    %347 = vector.broadcast %cst_180 : f32 to vector<9x1xf32>
    %348 = arith.divf %346, %347 : vector<9x1xf32>
    %cst_181 = arith.constant 9.99999974E-6 : f32
    %349 = vector.broadcast %cst_181 : f32 to vector<9x1xf32>
    %350 = arith.addf %348, %349 : vector<9x1xf32>
    %351 = math.rsqrt %350 : vector<9x1xf32>
    %352 = vector.broadcast %351 : vector<9x1xf32> to vector<9x32xf32>
    %353 = arith.mulf %343, %352 : vector<9x32xf32>
    %354 = vector.broadcast %335 : vector<1x32xf32> to vector<9x32xf32>
    %355 = arith.mulf %353, %354 : vector<9x32xf32>
    %356 = vector.broadcast %337 : vector<1x32xf32> to vector<9x32xf32>
    %357 = arith.addf %355, %356 : vector<9x32xf32>
    %c1_182 = arith.constant 1 : index
    %c0_183 = arith.constant 0 : index
    %c0_184 = arith.constant 0 : index
    %358 = vector.load %arg20[%c1_182, %c0_183, %c0_184] : memref<2x32x64xf32, #tpu.memory_space<vmem>>, vector<1x32x64xf32>
    %359 = vector.shape_cast %358 : vector<1x32x64xf32> to vector<32x64xf32>
    %cst_185 = arith.constant dense<0.000000e+00> : vector<9x64xf32>
    %360 = tpu.matmul %357, %359, %cst_185 {dimension_numbers = #tpu.dot_dimension_numbers<[1], [0], [0], [1], [0, 0, 1, 1], [], []>} : vector<9x32xf32>, vector<32x64xf32>, vector<9x64xf32> -> vector<9x64xf32>
    %c1_186 = arith.constant 1 : index
    %c0_187 = arith.constant 0 : index
    %c0_188 = arith.constant 0 : index
    %361 = vector.load %arg21[%c1_186, %c0_187, %c0_188] : memref<2x1x64xf32, #tpu.memory_space<vmem>>, vector<1x1x64xf32>
    %362 = vector.shape_cast %361 : vector<1x1x64xf32> to vector<1x64xf32>
    %363 = vector.broadcast %362 : vector<1x64xf32> to vector<9x64xf32>
    %364 = arith.addf %360, %363 : vector<9x64xf32>
    %cst_189 = arith.constant 5.000000e-01 : f32
    %365 = vector.broadcast %cst_189 : f32 to vector<9x64xf32>
    %366 = arith.mulf %365, %364 : vector<9x64xf32>
    %cst_190 = arith.constant 4.471500e-02 : f32
    %367 = vector.broadcast %cst_190 : f32 to vector<9x64xf32>
    %368 = arith.mulf %367, %364 : vector<9x64xf32>
    %369 = arith.mulf %368, %364 : vector<9x64xf32>
    %370 = arith.mulf %369, %364 : vector<9x64xf32>
    %371 = arith.addf %364, %370 : vector<9x64xf32>
    %cst_191 = arith.constant 0.797884583 : f32
    %372 = vector.broadcast %cst_191 : f32 to vector<9x64xf32>
    %373 = arith.mulf %372, %371 : vector<9x64xf32>
    %374 = math.tanh %373 : vector<9x64xf32>
    %cst_192 = arith.constant 1.000000e+00 : f32
    %375 = vector.broadcast %cst_192 : f32 to vector<9x64xf32>
    %376 = arith.addf %375, %374 : vector<9x64xf32>
    %377 = arith.mulf %366, %376 : vector<9x64xf32>
    %c1_193 = arith.constant 1 : index
    %c0_194 = arith.constant 0 : index
    %c0_195 = arith.constant 0 : index
    %378 = vector.load %arg22[%c1_193, %c0_194, %c0_195] : memref<2x64x32xf32, #tpu.memory_space<vmem>>, vector<1x64x32xf32>
    %379 = vector.shape_cast %378 : vector<1x64x32xf32> to vector<64x32xf32>
    %cst_196 = arith.constant dense<0.000000e+00> : vector<9x32xf32>
    %380 = tpu.matmul %377, %379, %cst_196 {dimension_numbers = #tpu.dot_dimension_numbers<[1], [0], [0], [1], [0, 0, 1, 1], [], []>} : vector<9x64xf32>, vector<64x32xf32>, vector<9x32xf32> -> vector<9x32xf32>
    %381 = arith.addf %333, %380 : vector<9x32xf32>
    %c1_197 = arith.constant 1 : index
    %c0_198 = arith.constant 0 : index
    %c0_199 = arith.constant 0 : index
    %382 = vector.load %arg23[%c1_197, %c0_198, %c0_199] : memref<2x1x32xf32, #tpu.memory_space<vmem>>, vector<1x1x32xf32>
    %383 = vector.shape_cast %382 : vector<1x1x32xf32> to vector<1x32xf32>
    %384 = vector.broadcast %383 : vector<1x32xf32> to vector<9x32xf32>
    %385 = arith.addf %381, %384 : vector<9x32xf32>
    %386 = vector.extract_strided_slice %385 {offsets = [8, 0], sizes = [1, 32], strides = [1, 1]} : vector<9x32xf32> to vector<1x32xf32>
    %c0_200 = arith.constant 0 : index
    %c0_201 = arith.constant 0 : index
    %387 = vector.load %arg24[%c0_200, %c0_201] : memref<1x32xf32, #tpu.memory_space<vmem>>, vector<1x32xf32>
    %c0_202 = arith.constant 0 : index
    %c0_203 = arith.constant 0 : index
    %388 = vector.load %arg25[%c0_202, %c0_203] : memref<1x32xf32, #tpu.memory_space<vmem>>, vector<1x32xf32>
    %cst_204 = arith.constant dense<0.000000e+00> : vector<1xf32>
    %389 = vector.multi_reduction <add>, %386, %cst_204 [1] : vector<1x32xf32> to vector<1xf32>
    %390 = vector.shape_cast %389 : vector<1xf32> to vector<1x1xf32>
    %cst_205 = arith.constant 3.200000e+01 : f32
    %391 = vector.broadcast %cst_205 : f32 to vector<1x1xf32>
    %392 = arith.divf %390, %391 : vector<1x1xf32>
    %393 = vector.broadcast %392 : vector<1x1xf32> to vector<1x32xf32>
    %394 = arith.subf %386, %393 : vector<1x32xf32>
    %395 = arith.mulf %394, %394 : vector<1x32xf32>
    %cst_206 = arith.constant dense<0.000000e+00> : vector<1xf32>
    %396 = vector.multi_reduction <add>, %395, %cst_206 [1] : vector<1x32xf32> to vector<1xf32>
    %397 = vector.shape_cast %396 : vector<1xf32> to vector<1x1xf32>
    %cst_207 = arith.constant 3.200000e+01 : f32
    %398 = vector.broadcast %cst_207 : f32 to vector<1x1xf32>
    %399 = arith.divf %397, %398 : vector<1x1xf32>
    %cst_208 = arith.constant 9.99999974E-6 : f32
    %400 = vector.broadcast %cst_208 : f32 to vector<1x1xf32>
    %401 = arith.addf %399, %400 : vector<1x1xf32>
    %402 = math.rsqrt %401 : vector<1x1xf32>
    %403 = vector.broadcast %402 : vector<1x1xf32> to vector<1x32xf32>
    %404 = arith.mulf %394, %403 : vector<1x32xf32>
    %405 = arith.mulf %404, %387 : vector<1x32xf32>
    %406 = arith.addf %405, %388 : vector<1x32xf32>
    %c0_209 = arith.constant 0 : index
    %c0_210 = arith.constant 0 : index
    %407 = vector.load %arg26[%c0_209, %c0_210] : memref<32x5xf32, #tpu.memory_space<vmem>>, vector<32x5xf32>
    %cst_211 = arith.constant dense<0.000000e+00> : vector<1x5xf32>
    %408 = tpu.matmul %406, %407, %cst_211 {dimension_numbers = #tpu.dot_dimension_numbers<[1], [0], [0], [1], [0, 0, 1, 1], [], []>} : vector<1x32xf32>, vector<32x5xf32>, vector<1x5xf32> -> vector<1x5xf32>
    %c0_212 = arith.constant 0 : index
    %c0_213 = arith.constant 0 : index
    %409 = vector.load %arg27[%c0_212, %c0_213] : memref<1x5xf32, #tpu.memory_space<vmem>>, vector<1x5xf32>
    %410 = arith.addf %408, %409 : vector<1x5xf32>
    %c0_214 = arith.constant 0 : index
    %c0_215 = arith.constant 0 : index
    %c0_216 = arith.constant 0 : index
    %411 = vector.load %arg28[%c0_214, %c0_215, %c0_216] : memref<1x1x5xf32, #tpu.memory_space<vmem>>, vector<1x1x5xf32>
    %412 = vector.shape_cast %411 : vector<1x1x5xf32> to vector<1x5xf32>
    %413 = vector.shape_cast %410 : vector<1x5xf32> to vector<1x1x5xf32>
    tpu.vector_store %arg28[%c0_214, %c0_215, %c0_216], %413 {strides = array<i32>} : memref<1x1x5xf32, #tpu.memory_space<vmem>>, vector<1x1x5xf32>,
    return
  }
  func.func @transform_0(%arg0: i32) -> (i32, i32, i32) {
    %c0_i32 = arith.constant 0 : i32
    %c0_i32_0 = arith.constant 0 : i32
    %c0_i32_1 = arith.constant 0 : i32
    return %arg0, %c0_i32, %c0_i32_0 : i32, i32, i32
  }
  func.func @transform_1(%arg0: i32) -> (i32, i32) {
    %c0_i32 = arith.constant 0 : i32
    %c0_i32_0 = arith.constant 0 : i32
    %c0_i32_1 = arith.constant 0 : i32
    return %c0_i32, %c0_i32_0 : i32, i32
  }
  func.func @transform_2(%arg0: i32) -> (i32, i32) {
    %c0_i32 = arith.constant 0 : i32
    %c0_i32_0 = arith.constant 0 : i32
    %c0_i32_1 = arith.constant 0 : i32
    return %c0_i32, %c0_i32_0 : i32, i32
  }
  func.func @transform_3(%arg0: i32) -> (i32, i32) {
    %c0_i32 = arith.constant 0 : i32
    %c0_i32_0 = arith.constant 0 : i32
    %c0_i32_1 = arith.constant 0 : i32
    return %c0_i32, %c0_i32_0 : i32, i32
  }
  func.func @transform_4(%arg0: i32) -> (i32, i32) {
    %c0_i32 = arith.constant 0 : i32
    %c0_i32_0 = arith.constant 0 : i32
    %c0_i32_1 = arith.constant 0 : i32
    return %c0_i32, %c0_i32_0 : i32, i32
  }
  func.func @transform_5(%arg0: i32) -> (i32, i32) {
    %c0_i32 = arith.constant 0 : i32
    %c0_i32_0 = arith.constant 0 : i32
    %c0_i32_1 = arith.constant 0 : i32
    return %c0_i32, %c0_i32_0 : i32, i32
  }
  func.func @transform_6(%arg0: i32) -> (i32, i32) {
    %c0_i32 = arith.constant 0 : i32
    %c0_i32_0 = arith.constant 0 : i32
    %c0_i32_1 = arith.constant 0 : i32
    return %c0_i32, %c0_i32_0 : i32, i32
  }
  func.func @transform_7(%arg0: i32) -> (i32, i32) {
    %c0_i32 = arith.constant 0 : i32
    %c0_i32_0 = arith.constant 0 : i32
    %c0_i32_1 = arith.constant 0 : i32
    return %c0_i32, %c0_i32_0 : i32, i32
  }
  func.func @transform_8(%arg0: i32) -> (i32, i32) {
    %c0_i32 = arith.constant 0 : i32
    %c0_i32_0 = arith.constant 0 : i32
    %c0_i32_1 = arith.constant 0 : i32
    return %c0_i32, %c0_i32_0 : i32, i32
  }
  func.func @transform_9(%arg0: i32) -> (i32, i32) {
    %c0_i32 = arith.constant 0 : i32
    %c0_i32_0 = arith.constant 0 : i32
    %c0_i32_1 = arith.constant 0 : i32
    return %c0_i32, %c0_i32_0 : i32, i32
  }
  func.func @transform_10(%arg0: i32) -> (i32, i32) {
    %c0_i32 = arith.constant 0 : i32
    %c0_i32_0 = arith.constant 0 : i32
    %c0_i32_1 = arith.constant 0 : i32
    return %c0_i32, %c0_i32_0 : i32, i32
  }
  func.func @transform_11(%arg0: i32) -> (i32, i32) {
    %c0_i32 = arith.constant 0 : i32
    %c0_i32_0 = arith.constant 0 : i32
    %c0_i32_1 = arith.constant 0 : i32
    return %c0_i32, %c0_i32_0 : i32, i32
  }
  func.func @transform_12(%arg0: i32) -> (i32, i32, i32) {
    %c0_i32 = arith.constant 0 : i32
    %c0_i32_0 = arith.constant 0 : i32
    %c0_i32_1 = arith.constant 0 : i32
    %c0_i32_2 = arith.constant 0 : i32
    return %c0_i32, %c0_i32_0, %c0_i32_1 : i32, i32, i32
  }
  func.func @transform_13(%arg0: i32) -> (i32, i32, i32) {
    %c0_i32 = arith.constant 0 : i32
    %c0_i32_0 = arith.constant 0 : i32
    %c0_i32_1 = arith.constant 0 : i32
    %c0_i32_2 = arith.constant 0 : i32
    return %c0_i32, %c0_i32_0, %c0_i32_1 : i32, i32, i32
  }
  func.func @transform_14(%arg0: i32) -> (i32, i32, i32) {
    %c0_i32 = arith.constant 0 : i32
    %c0_i32_0 = arith.constant 0 : i32
    %c0_i32_1 = arith.constant 0 : i32
    %c0_i32_2 = arith.constant 0 : i32
    return %c0_i32, %c0_i32_0, %c0_i32_1 : i32, i32, i32
  }
  func.func @transform_15(%arg0: i32) -> (i32, i32, i32) {
    %c0_i32 = arith.constant 0 : i32
    %c0_i32_0 = arith.constant 0 : i32
    %c0_i32_1 = arith.constant 0 : i32
    %c0_i32_2 = arith.constant 0 : i32
    return %c0_i32, %c0_i32_0, %c0_i32_1 : i32, i32, i32
  }
  func.func @transform_16(%arg0: i32) -> (i32, i32, i32) {
    %c0_i32 = arith.constant 0 : i32
    %c0_i32_0 = arith.constant 0 : i32
    %c0_i32_1 = arith.constant 0 : i32
    %c0_i32_2 = arith.constant 0 : i32
    return %c0_i32, %c0_i32_0, %c0_i32_1 : i32, i32, i32
  }
  func.func @transform_17(%arg0: i32) -> (i32, i32, i32) {
    %c0_i32 = arith.constant 0 : i32
    %c0_i32_0 = arith.constant 0 : i32
    %c0_i32_1 = arith.constant 0 : i32
    %c0_i32_2 = arith.constant 0 : i32
    return %c0_i32, %c0_i32_0, %c0_i32_1 : i32, i32, i32
  }
  func.func @transform_18(%arg0: i32) -> (i32, i32, i32) {
    %c0_i32 = arith.constant 0 : i32
    %c0_i32_0 = arith.constant 0 : i32
    %c0_i32_1 = arith.constant 0 : i32
    %c0_i32_2 = arith.constant 0 : i32
    return %c0_i32, %c0_i32_0, %c0_i32_1 : i32, i32, i32
  }
  func.func @transform_19(%arg0: i32) -> (i32, i32, i32) {
    %c0_i32 = arith.constant 0 : i32
    %c0_i32_0 = arith.constant 0 : i32
    %c0_i32_1 = arith.constant 0 : i32
    %c0_i32_2 = arith.constant 0 : i32
    return %c0_i32, %c0_i32_0, %c0_i32_1 : i32, i32, i32
  }
  func.func @transform_20(%arg0: i32) -> (i32, i32, i32) {
    %c0_i32 = arith.constant 0 : i32
    %c0_i32_0 = arith.constant 0 : i32
    %c0_i32_1 = arith.constant 0 : i32
    %c0_i32_2 = arith.constant 0 : i32
    return %c0_i32, %c0_i32_0, %c0_i32_1 : i32, i32, i32
  }
  func.func @transform_21(%arg0: i32) -> (i32, i32, i32) {
    %c0_i32 = arith.constant 0 : i32
    %c0_i32_0 = arith.constant 0 : i32
    %c0_i32_1 = arith.constant 0 : i32
    %c0_i32_2 = arith.constant 0 : i32
    return %c0_i32, %c0_i32_0, %c0_i32_1 : i32, i32, i32
  }
  func.func @transform_22(%arg0: i32) -> (i32, i32, i32) {
    %c0_i32 = arith.constant 0 : i32
    %c0_i32_0 = arith.constant 0 : i32
    %c0_i32_1 = arith.constant 0 : i32
    %c0_i32_2 = arith.constant 0 : i32
    return %c0_i32, %c0_i32_0, %c0_i32_1 : i32, i32, i32
  }
  func.func @transform_23(%arg0: i32) -> (i32, i32) {
    %c0_i32 = arith.constant 0 : i32
    %c0_i32_0 = arith.constant 0 : i32
    %c0_i32_1 = arith.constant 0 : i32
    return %c0_i32, %c0_i32_0 : i32, i32
  }
  func.func @transform_24(%arg0: i32) -> (i32, i32) {
    %c0_i32 = arith.constant 0 : i32
    %c0_i32_0 = arith.constant 0 : i32
    %c0_i32_1 = arith.constant 0 : i32
    return %c0_i32, %c0_i32_0 : i32, i32
  }
  func.func @transform_25(%arg0: i32) -> (i32, i32) {
    %c0_i32 = arith.constant 0 : i32
    %c0_i32_0 = arith.constant 0 : i32
    %c0_i32_1 = arith.constant 0 : i32
    return %c0_i32, %c0_i32_0 : i32, i32
  }
  func.func @transform_26(%arg0: i32) -> (i32, i32) {
    %c0_i32 = arith.constant 0 : i32
    %c0_i32_0 = arith.constant 0 : i32
    %c0_i32_1 = arith.constant 0 : i32
    return %c0_i32, %c0_i32_0 : i32, i32
  }
  func.func @transform_27(%arg0: i32) -> (i32, i32, i32) {
    %c0_i32 = arith.constant 0 : i32
    %c0_i32_0 = arith.constant 0 : i32
    %c0_i32_1 = arith.constant 0 : i32
    return %arg0, %c0_i32, %c0_i32_0 : i32, i32, i32
  }
}

</mosaic_0001>

<llo_original>
// kernel: tpu_custom_call.1
$region0: #{tpu_custom_call.1}
  #allocation0 [shape = 'u32[]', space=smem, size = 0x4, offset = 0x4, fixed_abs, tag = 'smem constant byte address 0x4 - core index']
  #allocation1 [shape = 'u32[144,128]{1,0:T(1,128)}', space=vmem, size = 0x12000, scoped, tag = 'internal scratch']
  #allocation2 [shape = 'f32[9,32]{1,0:T(8,128)}', space=vmem, size = 0x2000, scoped, tag = 'scratch operand']
  #allocation3 [shape = 'f32[9,32]{1,0:T(8,128)}', space=vmem, size = 0x2000, scoped, tag = 'scratch operand']
  %s0 = inlined_call_operand.vmem [shape: f32[2,16,4], index: 0, kind: input, shape index: {}]
  %s1 = inlined_call_operand.vmem [shape: f32[8,32], index: 1, kind: input, shape index: {}]
  %s2 = inlined_call_operand.vmem [shape: f32[1,32], index: 2, kind: input, shape index: {}]
  %s3 = inlined_call_operand.vmem [shape: f32[8,4], index: 3, kind: input, shape index: {}]
  %s4 = inlined_call_operand.vmem [shape: f32[8,1], index: 4, kind: input, shape index: {}]
  %s5 = inlined_call_operand.vmem [shape: f32[8,8], index: 5, kind: input, shape index: {}]
  %s6 = inlined_call_operand.vmem [shape: f32[8,1], index: 6, kind: input, shape index: {}]
  %s7 = inlined_call_operand.vmem [shape: f32[8,8], index: 7, kind: input, shape index: {}]
  %s8 = inlined_call_operand.vmem [shape: f32[8,1], index: 8, kind: input, shape index: {}]
  %s9 = inlined_call_operand.vmem [shape: f32[8,8], index: 9, kind: input, shape index: {}]
  %s10 = inlined_call_operand.vmem [shape: f32[8,1], index: 10, kind: input, shape index: {}]
  %s11 = inlined_call_operand.vmem [shape: f32[16,32], index: 11, kind: input, shape index: {}]
  %s12 = inlined_call_operand.vmem [shape: f32[2,1,32], index: 12, kind: input, shape index: {}]
  %s13 = inlined_call_operand.vmem [shape: f32[2,1,32], index: 13, kind: input, shape index: {}]
  %s14 = inlined_call_operand.vmem [shape: f32[2,32,96], index: 14, kind: input, shape index: {}]
  %s15 = inlined_call_operand.vmem [shape: f32[2,32,32], index: 15, kind: input, shape index: {}]
  %s16 = inlined_call_operand.vmem [shape: f32[2,1,32], index: 16, kind: input, shape index: {}]
  %s17 = inlined_call_operand.vmem [shape: f32[2,1,32], index: 17, kind: input, shape index: {}]
  %s18 = inlined_call_operand.vmem [shape: f32[2,1,32], index: 18, kind: input, shape index: {}]
  %s19 = inlined_call_operand.vmem [shape: f32[2,32,64], index: 19, kind: input, shape index: {}]
  %s20 = inlined_call_operand.vmem [shape: f32[2,1,64], index: 20, kind: input, shape index: {}]
  %s21 = inlined_call_operand.vmem [shape: f32[2,64,32], index: 21, kind: input, shape index: {}]
  %s22 = inlined_call_operand.vmem [shape: f32[2,1,32], index: 22, kind: input, shape index: {}]
  %s23 = inlined_call_operand.vmem [shape: f32[1,32], index: 23, kind: input, shape index: {}]
  %s24 = inlined_call_operand.vmem [shape: f32[1,32], index: 24, kind: input, shape index: {}]
  %s25 = inlined_call_operand.vmem [shape: f32[32,5], index: 25, kind: input, shape index: {}]
  %s26 = inlined_call_operand.vmem [shape: f32[1,5], index: 26, kind: input, shape index: {}]
  %s27 = inlined_call_operand.hbm [shape: f32[2,1,5], index: 27, kind: output, shape index: {}]
  %s28 = sld [smem:[#allocation0]]
  $region141: #{tpu_custom_call.1} parent=0
    _
  %s30 = ssub.s32 1, %s28
  %s31 = scalar_select 0, %s30, %s28
  $region1: #{tpu_custom_call.1} parent=0
    #allocation4 [shape = 'u8[1024]{0}', space=vmem, size = 0x400, scoped, tag = 'output window, operand 0']
    #allocation5 [shape = 's32[2]{0}', space=sflag, size = 0x8, scoped, tag = 'scoped memory for tpu_custom_call.1']
    %32 = vsyncpa [#allocation5], 0
    %s33 = scalar_lea.sflag [#allocation5], 1
    %34 = vsyncpa %s33, 0
    loop: start=0, step=1, limit=4
    $region2: #{tpu_custom_call.1} parent=1 // loop_pre_header
      _
    $region3: #{tpu_custom_call.1} parent=1 // loop_header
      %s36 = sphi 0, %s40
      %p37 = scmp.ge.s32.totalorder %s36, 4
      %s46 = sphi 0, %s48
      %s49 = sphi 0, %s46
      %s50 = sphi 0, %s49
      %s66 = sphi 0, %s50
      %s70 = sphi 0, %s70
      %s72 = sphi 0, %s70
      %s73 = sphi 0, %s72
      %s87 = sphi 0, %s73
      %s91 = sphi 0, %s91
      %s93 = sphi 0, %s91
      %s94 = sphi 0, %s93
      %s108 = sphi 0, %s94
      %s112 = sphi 0, %s112
      %s114 = sphi 0, %s112
      %s115 = sphi 0, %s114
      %s129 = sphi 0, %s115
      %s133 = sphi 0, %s133
      %s135 = sphi 0, %s133
      %s136 = sphi 0, %s135
      %s150 = sphi 0, %s136
      %s154 = sphi 0, %s154
      %s156 = sphi 0, %s154
      %s157 = sphi 0, %s156
      %s171 = sphi 0, %s157
      %s175 = sphi 0, %s175
      %s177 = sphi 0, %s175
      %s178 = sphi 0, %s177
      %s192 = sphi 0, %s178
      %s196 = sphi 0, %s196
      %s198 = sphi 0, %s196
      %s199 = sphi 0, %s198
      %s213 = sphi 0, %s199
      %s217 = sphi 0, %s217
      %s219 = sphi 0, %s217
      %s220 = sphi 0, %s219
      %s234 = sphi 0, %s220
      %s238 = sphi 0, %s238
      %s240 = sphi 0, %s238
      %s241 = sphi 0, %s240
      %s255 = sphi 0, %s241
      %s259 = sphi 0, %s259
      %s261 = sphi 0, %s259
      %s262 = sphi 0, %s261
      %s276 = sphi 0, %s262
      %s280 = sphi 0, %s280
      %s282 = sphi 0, %s280
      %s283 = sphi 0, %s282
      %s297 = sphi 0, %s283
      %s301 = sphi 0, %s301
      %s303 = sphi 0, %s301
      %s304 = sphi 0, %s303
      %s318 = sphi 0, %s304
      %s322 = sphi 0, %s322
      %s324 = sphi 0, %s322
      %s325 = sphi 0, %s324
      %s339 = sphi 0, %s325
      %s343 = sphi 0, %s343
      %s345 = sphi 0, %s343
      %s346 = sphi 0, %s345
      %s360 = sphi 0, %s346
      %s364 = sphi 0, %s364
      %s366 = sphi 0, %s364
      %s367 = sphi 0, %s366
      %s381 = sphi 0, %s367
      %s385 = sphi 0, %s385
      %s387 = sphi 0, %s385
      %s388 = sphi 0, %s387
      %s402 = sphi 0, %s388
      %s406 = sphi 0, %s406
      %s408 = sphi 0, %s406
      %s409 = sphi 0, %s408
      %s423 = sphi 0, %s409
      %s427 = sphi 0, %s427
      %s429 = sphi 0, %s427
      %s430 = sphi 0, %s429
      %s444 = sphi 0, %s430
      %s448 = sphi 0, %s448
      %s450 = sphi 0, %s448
      %s451 = sphi 0, %s450
      %s465 = sphi 0, %s451
      %s469 = sphi 0, %s469
      %s471 = sphi 0, %s469
      %s472 = sphi 0, %s471
      %s486 = sphi 0, %s472
      %s490 = sphi 0, %s490
      %s492 = sphi 0, %s490
      %s493 = sphi 0, %s492
      %s507 = sphi 0, %s493
      %s511 = sphi 0, %s511
      %s513 = sphi 0, %s511
      %s514 = sphi 0, %s513
      %s528 = sphi 0, %s514
      %s532 = sphi 0, %s532
      %s534 = sphi 0, %s532
      %s535 = sphi 0, %s534
      %s549 = sphi 0, %s535
      %s553 = sphi 0, %s553
      %s555 = sphi 0, %s553
      %s556 = sphi 0, %s555
      %s570 = sphi 0, %s556
      %s574 = sphi 0, %s574
      %s576 = sphi 0, %s574
      %s577 = sphi 0, %s576
      %s591 = sphi 0, %s577
      %s595 = sphi 0, %s595
      %s597 = sphi 0, %s595
      %s598 = sphi 0, %s597
      %s612 = sphi 0, %s598
      %s618 = sphi 0, %s620
      %s621 = sphi 0, %s618
      %s622 = sphi 0, %s621
      %s638 = sphi 0, %s622
    $region4: #{tpu_custom_call.1} parent=1 // loop_header_branch
      %39 = sbr.rel (%p37) target = $region8
    $region5: #{tpu_custom_call.1} parent=1 // loop_body
      %s41 = ssub.s32 %s36, 1
      %s42 = ssub.s32 %s36, 2
      %s43 = sadd.s32 %s36, 1
      %s44 = ssub.s32 %s36, %s43
      %p45 = scmp.eq.s32.totalorder %s44, 0
      %s47 = sadd.s32 %s46, 1
      %s48 = scalar_select %p45, %s46, %s47
      %p51 = pneg %p45
      %p52 = scmp.eq.s32.totalorder %s36, 1
      %p53 = por %p51, %p52
      %p54 = scmp.ne.s32.totalorder %s46, %s49
      %p55 = scmp.eq.s32.totalorder %s36, 0
      %p56 = por %p54, %p55
      %p57 = scmp.ne.s32.totalorder %s46, %s49
      %p58 = scmp.eq.s32.totalorder %s41, 1
      %p59 = por %p57, %p58
      %p60 = scmp.ne.s32.totalorder %s49, %s50
      %p61 = scmp.eq.s32.totalorder %s41, 0
      %p62 = por %p60, %p61
      %p63 = scmp.ne.s32.totalorder %s49, %s50
      %p64 = scmp.eq.s32.totalorder %s42, 1
      %p65 = por %p63, %p64
      %p67 = scmp.ne.s32.totalorder %s50, %s66
      %p68 = scmp.eq.s32.totalorder %s42, 0
      %p69 = por %p67, %p68
      %s71 = sadd.s32 %s70, 1
      %p74 = scmp.eq.s32.totalorder %s36, 1
      %p75 = scmp.ne.s32.totalorder %s70, %s72
      %p76 = scmp.eq.s32.totalorder %s36, 0
      %p77 = por %p75, %p76
      %p78 = scmp.ne.s32.totalorder %s70, %s72
      %p79 = scmp.eq.s32.totalorder %s41, 1
      %p80 = por %p78, %p79
      %p81 = scmp.ne.s32.totalorder %s72, %s73
      %p82 = scmp.eq.s32.totalorder %s41, 0
      %p83 = por %p81, %p82
      %p84 = scmp.ne.s32.totalorder %s72, %s73
      %p85 = scmp.eq.s32.totalorder %s42, 1
      %p86 = por %p84, %p85
      %p88 = scmp.ne.s32.totalorder %s73, %s87
      %p89 = scmp.eq.s32.totalorder %s42, 0
      %p90 = por %p88, %p89
      %s92 = sadd.s32 %s91, 1
      %p95 = scmp.eq.s32.totalorder %s36, 1
      %p96 = scmp.ne.s32.totalorder %s91, %s93
      %p97 = scmp.eq.s32.totalorder %s36, 0
      %p98 = por %p96, %p97
      %p99 = scmp.ne.s32.totalorder %s91, %s93
      %p100 = scmp.eq.s32.totalorder %s41, 1
      %p101 = por %p99, %p100
      %p102 = scmp.ne.s32.totalorder %s93, %s94
      %p103 = scmp.eq.s32.totalorder %s41, 0
      %p104 = por %p102, %p103
      %p105 = scmp.ne.s32.totalorder %s93, %s94
      %p106 = scmp.eq.s32.totalorder %s42, 1
      %p107 = por %p105, %p106
      %p109 = scmp.ne.s32.totalorder %s94, %s108
      %p110 = scmp.eq.s32.totalorder %s42, 0
      %p111 = por %p109, %p110
      %s113 = sadd.s32 %s112, 1
      %p116 = scmp.eq.s32.totalorder %s36, 1
      %p117 = scmp.ne.s32.totalorder %s112, %s114
      %p118 = scmp.eq.s32.totalorder %s36, 0
      %p119 = por %p117, %p118
      %p120 = scmp.ne.s32.totalorder %s112, %s114
      %p121 = scmp.eq.s32.totalorder %s41, 1
      %p122 = por %p120, %p121
      %p123 = scmp.ne.s32.totalorder %s114, %s115
      %p124 = scmp.eq.s32.totalorder %s41, 0
      %p125 = por %p123, %p124
      %p126 = scmp.ne.s32.totalorder %s114, %s115
      %p127 = scmp.eq.s32.totalorder %s42, 1
      %p128 = por %p126, %p127
      %p130 = scmp.ne.s32.totalorder %s115, %s129
      %p131 = scmp.eq.s32.totalorder %s42, 0
      %p132 = por %p130, %p131
      %s134 = sadd.s32 %s133, 1
      %p137 = scmp.eq.s32.totalorder %s36, 1
      %p138 = scmp.ne.s32.totalorder %s133, %s135
      %p139 = scmp.eq.s32.totalorder %s36, 0
      %p140 = por %p138, %p139
      %p141 = scmp.ne.s32.totalorder %s133, %s135
      %p142 = scmp.eq.s32.totalorder %s41, 1
      %p143 = por %p141, %p142
      %p144 = scmp.ne.s32.totalorder %s135, %s136
      %p145 = scmp.eq.s32.totalorder %s41, 0
      %p146 = por %p144, %p145
      %p147 = scmp.ne.s32.totalorder %s135, %s136
      %p148 = scmp.eq.s32.totalorder %s42, 1
      %p149 = por %p147, %p148
      %p151 = scmp.ne.s32.totalorder %s136, %s150
      %p152 = scmp.eq.s32.totalorder %s42, 0
      %p153 = por %p151, %p152
      %s155 = sadd.s32 %s154, 1
      %p158 = scmp.eq.s32.totalorder %s36, 1
      %p159 = scmp.ne.s32.totalorder %s154, %s156
      %p160 = scmp.eq.s32.totalorder %s36, 0
      %p161 = por %p159, %p160
      %p162 = scmp.ne.s32.totalorder %s154, %s156
      %p163 = scmp.eq.s32.totalorder %s41, 1
      %p164 = por %p162, %p163
      %p165 = scmp.ne.s32.totalorder %s156, %s157
      %p166 = scmp.eq.s32.totalorder %s41, 0
      %p167 = por %p165, %p166
      %p168 = scmp.ne.s32.totalorder %s156, %s157
      %p169 = scmp.eq.s32.totalorder %s42, 1
      %p170 = por %p168, %p169
      %p172 = scmp.ne.s32.totalorder %s157, %s171
      %p173 = scmp.eq.s32.totalorder %s42, 0
      %p174 = por %p172, %p173
      %s176 = sadd.s32 %s175, 1
      %p179 = scmp.eq.s32.totalorder %s36, 1
      %p180 = scmp.ne.s32.totalorder %s175, %s177
      %p181 = scmp.eq.s32.totalorder %s36, 0
      %p182 = por %p180, %p181
      %p183 = scmp.ne.s32.totalorder %s175, %s177
      %p184 = scmp.eq.s32.totalorder %s41, 1
      %p185 = por %p183, %p184
      %p186 = scmp.ne.s32.totalorder %s177, %s178
      %p187 = scmp.eq.s32.totalorder %s41, 0
      %p188 = por %p186, %p187
      %p189 = scmp.ne.s32.totalorder %s177, %s178
      %p190 = scmp.eq.s32.totalorder %s42, 1
      %p191 = por %p189, %p190
      %p193 = scmp.ne.s32.totalorder %s178, %s192
      %p194 = scmp.eq.s32.totalorder %s42, 0
      %p195 = por %p193, %p194
      %s197 = sadd.s32 %s196, 1
      %p200 = scmp.eq.s32.totalorder %s36, 1
      %p201 = scmp.ne.s32.totalorder %s196, %s198
      %p202 = scmp.eq.s32.totalorder %s36, 0
      %p203 = por %p201, %p202
      %p204 = scmp.ne.s32.totalorder %s196, %s198
      %p205 = scmp.eq.s32.totalorder %s41, 1
      %p206 = por %p204, %p205
      %p207 = scmp.ne.s32.totalorder %s198, %s199
      %p208 = scmp.eq.s32.totalorder %s41, 0
      %p209 = por %p207, %p208
      %p210 = scmp.ne.s32.totalorder %s198, %s199
      %p211 = scmp.eq.s32.totalorder %s42, 1
      %p212 = por %p210, %p211
      %p214 = scmp.ne.s32.totalorder %s199, %s213
      %p215 = scmp.eq.s32.totalorder %s42, 0
      %p216 = por %p214, %p215
      %s218 = sadd.s32 %s217, 1
      %p221 = scmp.eq.s32.totalorder %s36, 1
      %p222 = scmp.ne.s32.totalorder %s217, %s219
      %p223 = scmp.eq.s32.totalorder %s36, 0
      %p224 = por %p222, %p223
      %p225 = scmp.ne.s32.totalorder %s217, %s219
      %p226 = scmp.eq.s32.totalorder %s41, 1
      %p227 = por %p225, %p226
      %p228 = scmp.ne.s32.totalorder %s219, %s220
      %p229 = scmp.eq.s32.totalorder %s41, 0
      %p230 = por %p228, %p229
      %p231 = scmp.ne.s32.totalorder %s219, %s220
      %p232 = scmp.eq.s32.totalorder %s42, 1
      %p233 = por %p231, %p232
      %p235 = scmp.ne.s32.totalorder %s220, %s234
      %p236 = scmp.eq.s32.totalorder %s42, 0
      %p237 = por %p235, %p236
      %s239 = sadd.s32 %s238, 1
      %p242 = scmp.eq.s32.totalorder %s36, 1
      %p243 = scmp.ne.s32.totalorder %s238, %s240
      %p244 = scmp.eq.s32.totalorder %s36, 0
      %p245 = por %p243, %p244
      %p246 = scmp.ne.s32.totalorder %s238, %s240
      %p247 = scmp.eq.s32.totalorder %s41, 1
      %p248 = por %p246, %p247
      %p249 = scmp.ne.s32.totalorder %s240, %s241
      %p250 = scmp.eq.s32.totalorder %s41, 0
      %p251 = por %p249, %p250
      %p252 = scmp.ne.s32.totalorder %s240, %s241
      %p253 = scmp.eq.s32.totalorder %s42, 1
      %p254 = por %p252, %p253
      %p256 = scmp.ne.s32.totalorder %s241, %s255
      %p257 = scmp.eq.s32.totalorder %s42, 0
      %p258 = por %p256, %p257
      %s260 = sadd.s32 %s259, 1
      %p263 = scmp.eq.s32.totalorder %s36, 1
      %p264 = scmp.ne.s32.totalorder %s259, %s261
      %p265 = scmp.eq.s32.totalorder %s36, 0
      %p266 = por %p264, %p265
      %p267 = scmp.ne.s32.totalorder %s259, %s261
      %p268 = scmp.eq.s32.totalorder %s41, 1
      %p269 = por %p267, %p268
      %p270 = scmp.ne.s32.totalorder %s261, %s262
      %p271 = scmp.eq.s32.totalorder %s41, 0
      %p272 = por %p270, %p271
      %p273 = scmp.ne.s32.totalorder %s261, %s262
      %p274 = scmp.eq.s32.totalorder %s42, 1
      %p275 = por %p273, %p274
      %p277 = scmp.ne.s32.totalorder %s262, %s276
      %p278 = scmp.eq.s32.totalorder %s42, 0
      %p279 = por %p277, %p278
      %s281 = sadd.s32 %s280, 1
      %p284 = scmp.eq.s32.totalorder %s36, 1
      %p285 = scmp.ne.s32.totalorder %s280, %s282
      %p286 = scmp.eq.s32.totalorder %s36, 0
      %p287 = por %p285, %p286
      %p288 = scmp.ne.s32.totalorder %s280, %s282
      %p289 = scmp.eq.s32.totalorder %s41, 1
      %p290 = por %p288, %p289
      %p291 = scmp.ne.s32.totalorder %s282, %s283
      %p292 = scmp.eq.s32.totalorder %s41, 0
      %p293 = por %p291, %p292
      %p294 = scmp.ne.s32.totalorder %s282, %s283
      %p295 = scmp.eq.s32.totalorder %s42, 1
      %p296 = por %p294, %p295
      %p298 = scmp.ne.s32.totalorder %s283, %s297
      %p299 = scmp.eq.s32.totalorder %s42, 0
      %p300 = por %p298, %p299
      %s302 = sadd.s32 %s301, 1
      %p305 = scmp.eq.s32.totalorder %s36, 1
      %p306 = scmp.ne.s32.totalorder %s301, %s303
      %p307 = scmp.eq.s32.totalorder %s36, 0
      %p308 = por %p306, %p307
      %p309 = scmp.ne.s32.totalorder %s301, %s303
      %p310 = scmp.eq.s32.totalorder %s41, 1
      %p311 = por %p309, %p310
      %p312 = scmp.ne.s32.totalorder %s303, %s304
      %p313 = scmp.eq.s32.totalorder %s41, 0
      %p314 = por %p312, %p313
      %p315 = scmp.ne.s32.totalorder %s303, %s304
      %p316 = scmp.eq.s32.totalorder %s42, 1
      %p317 = por %p315, %p316
      %p319 = scmp.ne.s32.totalorder %s304, %s318
      %p320 = scmp.eq.s32.totalorder %s42, 0
      %p321 = por %p319, %p320
      %s323 = sadd.s32 %s322, 1
      %p326 = scmp.eq.s32.totalorder %s36, 1
      %p327 = scmp.ne.s32.totalorder %s322, %s324
      %p328 = scmp.eq.s32.totalorder %s36, 0
      %p329 = por %p327, %p328
      %p330 = scmp.ne.s32.totalorder %s322, %s324
      %p331 = scmp.eq.s32.totalorder %s41, 1
      %p332 = por %p330, %p331
      %p333 = scmp.ne.s32.totalorder %s324, %s325
      %p334 = scmp.eq.s32.totalorder %s41, 0
      %p335 = por %p333, %p334
      %p336 = scmp.ne.s32.totalorder %s324, %s325
      %p337 = scmp.eq.s32.totalorder %s42, 1
      %p338 = por %p336, %p337
      %p340 = scmp.ne.s32.totalorder %s325, %s339
      %p341 = scmp.eq.s32.totalorder %s42, 0
      %p342 = por %p340, %p341
      %s344 = sadd.s32 %s343, 1
      %p347 = scmp.eq.s32.totalorder %s36, 1
      %p348 = scmp.ne.s32.totalorder %s343, %s345
      %p349 = scmp.eq.s32.totalorder %s36, 0
      %p350 = por %p348, %p349
      %p351 = scmp.ne.s32.totalorder %s343, %s345
      %p352 = scmp.eq.s32.totalorder %s41, 1
      %p353 = por %p351, %p352
      %p354 = scmp.ne.s32.totalorder %s345, %s346
      %p355 = scmp.eq.s32.totalorder %s41, 0
      %p356 = por %p354, %p355
      %p357 = scmp.ne.s32.totalorder %s345, %s346
      %p358 = scmp.eq.s32.totalorder %s42, 1
      %p359 = por %p357, %p358
      %p361 = scmp.ne.s32.totalorder %s346, %s360
      %p362 = scmp.eq.s32.totalorder %s42, 0
      %p363 = por %p361, %p362
      %s365 = sadd.s32 %s364, 1
      %p368 = scmp.eq.s32.totalorder %s36, 1
      %p369 = scmp.ne.s32.totalorder %s364, %s366
      %p370 = scmp.eq.s32.totalorder %s36, 0
      %p371 = por %p369, %p370
      %p372 = scmp.ne.s32.totalorder %s364, %s366
      %p373 = scmp.eq.s32.totalorder %s41, 1
      %p374 = por %p372, %p373
      %p375 = scmp.ne.s32.totalorder %s366, %s367
      %p376 = scmp.eq.s32.totalorder %s41, 0
      %p377 = por %p375, %p376
      %p378 = scmp.ne.s32.totalorder %s366, %s367
      %p379 = scmp.eq.s32.totalorder %s42, 1
      %p380 = por %p378, %p379
      %p382 = scmp.ne.s32.totalorder %s367, %s381
      %p383 = scmp.eq.s32.totalorder %s42, 0
      %p384 = por %p382, %p383
      %s386 = sadd.s32 %s385, 1
      %p389 = scmp.eq.s32.totalorder %s36, 1
      %p390 = scmp.ne.s32.totalorder %s385, %s387
      %p391 = scmp.eq.s32.totalorder %s36, 0
      %p392 = por %p390, %p391
      %p393 = scmp.ne.s32.totalorder %s385, %s387
      %p394 = scmp.eq.s32.totalorder %s41, 1
      %p395 = por %p393, %p394
      %p396 = scmp.ne.s32.totalorder %s387, %s388
      %p397 = scmp.eq.s32.totalorder %s41, 0
      %p398 = por %p396, %p397
      %p399 = scmp.ne.s32.totalorder %s387, %s388
      %p400 = scmp.eq.s32.totalorder %s42, 1
      %p401 = por %p399, %p400
      %p403 = scmp.ne.s32.totalorder %s388, %s402
      %p404 = scmp.eq.s32.totalorder %s42, 0
      %p405 = por %p403, %p404
      %s407 = sadd.s32 %s406, 1
      %p410 = scmp.eq.s32.totalorder %s36, 1
      %p411 = scmp.ne.s32.totalorder %s406, %s408
      %p412 = scmp.eq.s32.totalorder %s36, 0
      %p413 = por %p411, %p412
      %p414 = scmp.ne.s32.totalorder %s406, %s408
      %p415 = scmp.eq.s32.totalorder %s41, 1
      %p416 = por %p414, %p415
      %p417 = scmp.ne.s32.totalorder %s408, %s409
      %p418 = scmp.eq.s32.totalorder %s41, 0
      %p419 = por %p417, %p418
      %p420 = scmp.ne.s32.totalorder %s408, %s409
      %p421 = scmp.eq.s32.totalorder %s42, 1
      %p422 = por %p420, %p421
      %p424 = scmp.ne.s32.totalorder %s409, %s423
      %p425 = scmp.eq.s32.totalorder %s42, 0
      %p426 = por %p424, %p425
      %s428 = sadd.s32 %s427, 1
      %p431 = scmp.eq.s32.totalorder %s36, 1
      %p432 = scmp.ne.s32.totalorder %s427, %s429
      %p433 = scmp.eq.s32.totalorder %s36, 0
      %p434 = por %p432, %p433
      %p435 = scmp.ne.s32.totalorder %s427, %s429
      %p436 = scmp.eq.s32.totalorder %s41, 1
      %p437 = por %p435, %p436
      %p438 = scmp.ne.s32.totalorder %s429, %s430
      %p439 = scmp.eq.s32.totalorder %s41, 0
      %p440 = por %p438, %p439
      %p441 = scmp.ne.s32.totalorder %s429, %s430
      %p442 = scmp.eq.s32.totalorder %s42, 1
      %p443 = por %p441, %p442
      %p445 = scmp.ne.s32.totalorder %s430, %s444
      %p446 = scmp.eq.s32.totalorder %s42, 0
      %p447 = por %p445, %p446
      %s449 = sadd.s32 %s448, 1
      %p452 = scmp.eq.s32.totalorder %s36, 1
      %p453 = scmp.ne.s32.totalorder %s448, %s450
      %p454 = scmp.eq.s32.totalorder %s36, 0
      %p455 = por %p453, %p454
      %p456 = scmp.ne.s32.totalorder %s448, %s450
      %p457 = scmp.eq.s32.totalorder %s41, 1
      %p458 = por %p456, %p457
      %p459 = scmp.ne.s32.totalorder %s450, %s451
      %p460 = scmp.eq.s32.totalorder %s41, 0
      %p461 = por %p459, %p460
      %p462 = scmp.ne.s32.totalorder %s450, %s451
      %p463 = scmp.eq.s32.totalorder %s42, 1
      %p464 = por %p462, %p463
      %p466 = scmp.ne.s32.totalorder %s451, %s465
      %p467 = scmp.eq.s32.totalorder %s42, 0
      %p468 = por %p466, %p467
      %s470 = sadd.s32 %s469, 1
      %p473 = scmp.eq.s32.totalorder %s36, 1
      %p474 = scmp.ne.s32.totalorder %s469, %s471
      %p475 = scmp.eq.s32.totalorder %s36, 0
      %p476 = por %p474, %p475
      %p477 = scmp.ne.s32.totalorder %s469, %s471
      %p478 = scmp.eq.s32.totalorder %s41, 1
      %p479 = por %p477, %p478
      %p480 = scmp.ne.s32.totalorder %s471, %s472
      %p481 = scmp.eq.s32.totalorder %s41, 0
      %p482 = por %p480, %p481
      %p483 = scmp.ne.s32.totalorder %s471, %s472
      %p484 = scmp.eq.s32.totalorder %s42, 1
      %p485 = por %p483, %p484
      %p487 = scmp.ne.s32.totalorder %s472, %s486
      %p488 = scmp.eq.s32.totalorder %s42, 0
      %p489 = por %p487, %p488
      %s491 = sadd.s32 %s490, 1
      %p494 = scmp.eq.s32.totalorder %s36, 1
      %p495 = scmp.ne.s32.totalorder %s490, %s492
      %p496 = scmp.eq.s32.totalorder %s36, 0
      %p497 = por %p495, %p496
      %p498 = scmp.ne.s32.totalorder %s490, %s492
      %p499 = scmp.eq.s32.totalorder %s41, 1
      %p500 = por %p498, %p499
      %p501 = scmp.ne.s32.totalorder %s492, %s493
      %p502 = scmp.eq.s32.totalorder %s41, 0
      %p503 = por %p501, %p502
      %p504 = scmp.ne.s32.totalorder %s492, %s493
      %p505 = scmp.eq.s32.totalorder %s42, 1
      %p506 = por %p504, %p505
      %p508 = scmp.ne.s32.totalorder %s493, %s507
      %p509 = scmp.eq.s32.totalorder %s42, 0
      %p510 = por %p508, %p509
      %s512 = sadd.s32 %s511, 1
      %p515 = scmp.eq.s32.totalorder %s36, 1
      %p516 = scmp.ne.s32.totalorder %s511, %s513
      %p517 = scmp.eq.s32.totalorder %s36, 0
      %p518 = por %p516, %p517
      %p519 = scmp.ne.s32.totalorder %s511, %s513
      %p520 = scmp.eq.s32.totalorder %s41, 1
      %p521 = por %p519, %p520
      %p522 = scmp.ne.s32.totalorder %s513, %s514
      %p523 = scmp.eq.s32.totalorder %s41, 0
      %p524 = por %p522, %p523
      %p525 = scmp.ne.s32.totalorder %s513, %s514
      %p526 = scmp.eq.s32.totalorder %s42, 1
      %p527 = por %p525, %p526
      %p529 = scmp.ne.s32.totalorder %s514, %s528
      %p530 = scmp.eq.s32.totalorder %s42, 0
      %p531 = por %p529, %p530
      %s533 = sadd.s32 %s532, 1
      %p536 = scmp.eq.s32.totalorder %s36, 1
      %p537 = scmp.ne.s32.totalorder %s532, %s534
      %p538 = scmp.eq.s32.totalorder %s36, 0
      %p539 = por %p537, %p538
      %p540 = scmp.ne.s32.totalorder %s532, %s534
      %p541 = scmp.eq.s32.totalorder %s41, 1
      %p542 = por %p540, %p541
      %p543 = scmp.ne.s32.totalorder %s534, %s535
      %p544 = scmp.eq.s32.totalorder %s41, 0
      %p545 = por %p543, %p544
      %p546 = scmp.ne.s32.totalorder %s534, %s535
      %p547 = scmp.eq.s32.totalorder %s42, 1
      %p548 = por %p546, %p547
      %p550 = scmp.ne.s32.totalorder %s535, %s549
      %p551 = scmp.eq.s32.totalorder %s42, 0
      %p552 = por %p550, %p551
      %s554 = sadd.s32 %s553, 1
      %p557 = scmp.eq.s32.totalorder %s36, 1
      %p558 = scmp.ne.s32.totalorder %s553, %s555
      %p559 = scmp.eq.s32.totalorder %s36, 0
      %p560 = por %p558, %p559
      %p561 = scmp.ne.s32.totalorder %s553, %s555
      %p562 = scmp.eq.s32.totalorder %s41, 1
      %p563 = por %p561, %p562
      %p564 = scmp.ne.s32.totalorder %s555, %s556
      %p565 = scmp.eq.s32.totalorder %s41, 0
      %p566 = por %p564, %p565
      %p567 = scmp.ne.s32.totalorder %s555, %s556
      %p568 = scmp.eq.s32.totalorder %s42, 1
      %p569 = por %p567, %p568
      %p571 = scmp.ne.s32.totalorder %s556, %s570
      %p572 = scmp.eq.s32.totalorder %s42, 0
      %p573 = por %p571, %p572
      %s575 = sadd.s32 %s574, 1
      %p578 = scmp.eq.s32.totalorder %s36, 1
      %p579 = scmp.ne.s32.totalorder %s574, %s576
      %p580 = scmp.eq.s32.totalorder %s36, 0
      %p581 = por %p579, %p580
      %p582 = scmp.ne.s32.totalorder %s574, %s576
      %p583 = scmp.eq.s32.totalorder %s41, 1
      %p584 = por %p582, %p583
      %p585 = scmp.ne.s32.totalorder %s576, %s577
      %p586 = scmp.eq.s32.totalorder %s41, 0
      %p587 = por %p585, %p586
      %p588 = scmp.ne.s32.totalorder %s576, %s577
      %p589 = scmp.eq.s32.totalorder %s42, 1
      %p590 = por %p588, %p589
      %p592 = scmp.ne.s32.totalorder %s577, %s591
      %p593 = scmp.eq.s32.totalorder %s42, 0
      %p594 = por %p592, %p593
      %s596 = sadd.s32 %s595, 1
      %p599 = scmp.eq.s32.totalorder %s36, 1
      %p600 = scmp.ne.s32.totalorder %s595, %s597
      %p601 = scmp.eq.s32.totalorder %s36, 0
      %p602 = por %p600, %p601
      %p603 = scmp.ne.s32.totalorder %s595, %s597
      %p604 = scmp.eq.s32.totalorder %s41, 1
      %p605 = por %p603, %p604
      %p606 = scmp.ne.s32.totalorder %s597, %s598
      %p607 = scmp.eq.s32.totalorder %s41, 0
      %p608 = por %p606, %p607
      %p609 = scmp.ne.s32.totalorder %s597, %s598
      %p610 = scmp.eq.s32.totalorder %s42, 1
      %p611 = por %p609, %p610
      %p613 = scmp.ne.s32.totalorder %s598, %s612
      %p614 = scmp.eq.s32.totalorder %s42, 0
      %p615 = por %p613, %p614
      %s616 = ssub.s32 %s36, %s43
      %p617 = scmp.eq.s32.totalorder %s616, 0
      %s619 = sadd.s32 %s618, 1
      %s620 = scalar_select %p617, %s618, %s619
      %p623 = pneg %p617
      %p624 = scmp.eq.s32.totalorder %s36, 1
      %p625 = por %p623, %p624
      %p626 = scmp.ne.s32.totalorder %s618, %s621
      %p627 = scmp.eq.s32.totalorder %s36, 0
      %p628 = por %p626, %p627
      %p629 = scmp.ne.s32.totalorder %s618, %s621
      %p630 = scmp.eq.s32.totalorder %s41, 1
      %p631 = por %p629, %p630
      %p632 = scmp.ne.s32.totalorder %s621, %s622
      %p633 = scmp.eq.s32.totalorder %s41, 0
      %p634 = por %p632, %p633
      %p635 = scmp.ne.s32.totalorder %s621, %s622
      %p636 = scmp.eq.s32.totalorder %s42, 1
      %p637 = por %p635, %p636
      %p639 = scmp.ne.s32.totalorder %s622, %s638
      %p640 = scmp.eq.s32.totalorder %s42, 0
      %p641 = por %p639, %p640
      %p642 = scmp.le.s32.totalorder 1, %s36
      %p643 = scmp.lt.s32.totalorder %s36, 3
      %p644 = pnand %p642, %p643
      %p645 = pneg %p644
      // Predicated region
      $region9: #{tpu_custom_call.1} parent=5 // pred_check
        _
      $region10: #{tpu_custom_call.1} parent=5 // pred_check_branch
        %647 = sbr.rel (%p644) target = $region12
      $region11: #{tpu_custom_call.1} parent=5 // pred_region
        %s648 = ssub.s32 %s36, 1
        // Predicated region
        $region13: #{tpu_custom_call.1} parent=11 // pred_check
          %p649 = pneg %p83
        $region14: #{tpu_custom_call.1} parent=11 // pred_check_branch
          %651 = sbr.rel (%p649) target = $region16
        $region15: #{tpu_custom_call.1} parent=11 // pred_region
          _
        $region16: #{tpu_custom_call.1} parent=11 // pred_fallthru
          _
        // Predicated region
        $region17: #{tpu_custom_call.1} parent=11 // pred_check
          %p652 = pneg %p104
        $region18: #{tpu_custom_call.1} parent=11 // pred_check_branch
          %654 = sbr.rel (%p652) target = $region20
        $region19: #{tpu_custom_call.1} parent=11 // pred_region
          _
        $region20: #{tpu_custom_call.1} parent=11 // pred_fallthru
          _
        // Predicated region
        $region21: #{tpu_custom_call.1} parent=11 // pred_check
          %p655 = pneg %p125
        $region22: #{tpu_custom_call.1} parent=11 // pred_check_branch
          %657 = sbr.rel (%p655) target = $region24
        $region23: #{tpu_custom_call.1} parent=11 // pred_region
          _
        $region24: #{tpu_custom_call.1} parent=11 // pred_fallthru
          _
        // Predicated region
        $region25: #{tpu_custom_call.1} parent=11 // pred_check
          %p658 = pneg %p146
        $region26: #{tpu_custom_call.1} parent=11 // pred_check_branch
          %660 = sbr.rel (%p658) target = $region28
        $region27: #{tpu_custom_call.1} parent=11 // pred_region
          _
        $region28: #{tpu_custom_call.1} parent=11 // pred_fallthru
          _
        // Predicated region
        $region29: #{tpu_custom_call.1} parent=11 // pred_check
          %p661 = pneg %p167
        $region30: #{tpu_custom_call.1} parent=11 // pred_check_branch
          %663 = sbr.rel (%p661) target = $region32
        $region31: #{tpu_custom_call.1} parent=11 // pred_region
          _
        $region32: #{tpu_custom_call.1} parent=11 // pred_fallthru
          _
        // Predicated region
        $region33: #{tpu_custom_call.1} parent=11 // pred_check
          %p664 = pneg %p188
        $region34: #{tpu_custom_call.1} parent=11 // pred_check_branch
          %666 = sbr.rel (%p664) target = $region36
        $region35: #{tpu_custom_call.1} parent=11 // pred_region
          _
        $region36: #{tpu_custom_call.1} parent=11 // pred_fallthru
          _
        // Predicated region
        $region37: #{tpu_custom_call.1} parent=11 // pred_check
          %p667 = pneg %p209
        $region38: #{tpu_custom_call.1} parent=11 // pred_check_branch
          %669 = sbr.rel (%p667) target = $region40
        $region39: #{tpu_custom_call.1} parent=11 // pred_region
          _
        $region40: #{tpu_custom_call.1} parent=11 // pred_fallthru
          _
        // Predicated region
        $region41: #{tpu_custom_call.1} parent=11 // pred_check
          %p670 = pneg %p230
        $region42: #{tpu_custom_call.1} parent=11 // pred_check_branch
          %672 = sbr.rel (%p670) target = $region44
        $region43: #{tpu_custom_call.1} parent=11 // pred_region
          _
        $region44: #{tpu_custom_call.1} parent=11 // pred_fallthru
          _
        // Predicated region
        $region45: #{tpu_custom_call.1} parent=11 // pred_check
          %p673 = pneg %p251
        $region46: #{tpu_custom_call.1} parent=11 // pred_check_branch
          %675 = sbr.rel (%p673) target = $region48
        $region47: #{tpu_custom_call.1} parent=11 // pred_region
          _
        $region48: #{tpu_custom_call.1} parent=11 // pred_fallthru
          _
        // Predicated region
        $region49: #{tpu_custom_call.1} parent=11 // pred_check
          %p676 = pneg %p272
        $region50: #{tpu_custom_call.1} parent=11 // pred_check_branch
          %678 = sbr.rel (%p676) target = $region52
        $region51: #{tpu_custom_call.1} parent=11 // pred_region
          _
        $region52: #{tpu_custom_call.1} parent=11 // pred_fallthru
          _
        // Predicated region
        $region53: #{tpu_custom_call.1} parent=11 // pred_check
          %p679 = pneg %p293
        $region54: #{tpu_custom_call.1} parent=11 // pred_check_branch
          %681 = sbr.rel (%p679) target = $region56
        $region55: #{tpu_custom_call.1} parent=11 // pred_region
          _
        $region56: #{tpu_custom_call.1} parent=11 // pred_fallthru
          _
        // Predicated region
        $region57: #{tpu_custom_call.1} parent=11 // pred_check
          %p682 = pneg %p314
        $region58: #{tpu_custom_call.1} parent=11 // pred_check_branch
          %684 = sbr.rel (%p682) target = $region60
        $region59: #{tpu_custom_call.1} parent=11 // pred_region
          _
        $region60: #{tpu_custom_call.1} parent=11 // pred_fallthru
          _
        // Predicated region
        $region61: #{tpu_custom_call.1} parent=11 // pred_check
          %p685 = pneg %p335
        $region62: #{tpu_custom_call.1} parent=11 // pred_check_branch
          %687 = sbr.rel (%p685) target = $region64
        $region63: #{tpu_custom_call.1} parent=11 // pred_region
          _
        $region64: #{tpu_custom_call.1} parent=11 // pred_fallthru
          _
        // Predicated region
        $region65: #{tpu_custom_call.1} parent=11 // pred_check
          %p688 = pneg %p356
        $region66: #{tpu_custom_call.1} parent=11 // pred_check_branch
          %690 = sbr.rel (%p688) target = $region68
        $region67: #{tpu_custom_call.1} parent=11 // pred_region
          _
        $region68: #{tpu_custom_call.1} parent=11 // pred_fallthru
          _
        // Predicated region
        $region69: #{tpu_custom_call.1} parent=11 // pred_check
          %p691 = pneg %p377
        $region70: #{tpu_custom_call.1} parent=11 // pred_check_branch
          %693 = sbr.rel (%p691) target = $region72
        $region71: #{tpu_custom_call.1} parent=11 // pred_region
          _
        $region72: #{tpu_custom_call.1} parent=11 // pred_fallthru
          _
        // Predicated region
        $region73: #{tpu_custom_call.1} parent=11 // pred_check
          %p694 = pneg %p398
        $region74: #{tpu_custom_call.1} parent=11 // pred_check_branch
          %696 = sbr.rel (%p694) target = $region76
        $region75: #{tpu_custom_call.1} parent=11 // pred_region
          _
        $region76: #{tpu_custom_call.1} parent=11 // pred_fallthru
          _
        // Predicated region
        $region77: #{tpu_custom_call.1} parent=11 // pred_check
          %p697 = pneg %p419
        $region78: #{tpu_custom_call.1} parent=11 // pred_check_branch
          %699 = sbr.rel (%p697) target = $region80
        $region79: #{tpu_custom_call.1} parent=11 // pred_region
          _
        $region80: #{tpu_custom_call.1} parent=11 // pred_fallthru
          _
        // Predicated region
        $region81: #{tpu_custom_call.1} parent=11 // pred_check
          %p700 = pneg %p440
        $region82: #{tpu_custom_call.1} parent=11 // pred_check_branch
          %702 = sbr.rel (%p700) target = $region84
        $region83: #{tpu_custom_call.1} parent=11 // pred_region
          _
        $region84: #{tpu_custom_call.1} parent=11 // pred_fallthru
          _
        // Predicated region
        $region85: #{tpu_custom_call.1} parent=11 // pred_check
          %p703 = pneg %p461
        $region86: #{tpu_custom_call.1} parent=11 // pred_check_branch
          %705 = sbr.rel (%p703) target = $region88
        $region87: #{tpu_custom_call.1} parent=11 // pred_region
          _
        $region88: #{tpu_custom_call.1} parent=11 // pred_fallthru
          _
        // Predicated region
        $region89: #{tpu_custom_call.1} parent=11 // pred_check
          %p706 = pneg %p482
        $region90: #{tpu_custom_call.1} parent=11 // pred_check_branch
          %708 = sbr.rel (%p706) target = $region92
        $region91: #{tpu_custom_call.1} parent=11 // pred_region
          _
        $region92: #{tpu_custom_call.1} parent=11 // pred_fallthru
          _
        // Predicated region
        $region93: #{tpu_custom_call.1} parent=11 // pred_check
          %p709 = pneg %p503
        $region94: #{tpu_custom_call.1} parent=11 // pred_check_branch
          %711 = sbr.rel (%p709) target = $region96
        $region95: #{tpu_custom_call.1} parent=11 // pred_region
          _
        $region96: #{tpu_custom_call.1} parent=11 // pred_fallthru
          _
        // Predicated region
        $region97: #{tpu_custom_call.1} parent=11 // pred_check
          %p712 = pneg %p524
        $region98: #{tpu_custom_call.1} parent=11 // pred_check_branch
          %714 = sbr.rel (%p712) target = $region100
        $region99: #{tpu_custom_call.1} parent=11 // pred_region
          _
        $region100: #{tpu_custom_call.1} parent=11 // pred_fallthru
          _
        // Predicated region
        $region101: #{tpu_custom_call.1} parent=11 // pred_check
          %p715 = pneg %p545
        $region102: #{tpu_custom_call.1} parent=11 // pred_check_branch
          %717 = sbr.rel (%p715) target = $region104
        $region103: #{tpu_custom_call.1} parent=11 // pred_region
          _
        $region104: #{tpu_custom_call.1} parent=11 // pred_fallthru
          _
        // Predicated region
        $region105: #{tpu_custom_call.1} parent=11 // pred_check
          %p718 = pneg %p566
        $region106: #{tpu_custom_call.1} parent=11 // pred_check_branch
          %720 = sbr.rel (%p718) target = $region108
        $region107: #{tpu_custom_call.1} parent=11 // pred_region
          _
        $region108: #{tpu_custom_call.1} parent=11 // pred_fallthru
          _
        // Predicated region
        $region109: #{tpu_custom_call.1} parent=11 // pred_check
          %p721 = pneg %p587
        $region110: #{tpu_custom_call.1} parent=11 // pred_check_branch
          %723 = sbr.rel (%p721) target = $region112
        $region111: #{tpu_custom_call.1} parent=11 // pred_region
          _
        $region112: #{tpu_custom_call.1} parent=11 // pred_fallthru
          _
        // Predicated region
        $region113: #{tpu_custom_call.1} parent=11 // pred_check
          %p724 = pneg %p608
        $region114: #{tpu_custom_call.1} parent=11 // pred_check_branch
          %726 = sbr.rel (%p724) target = $region116
        $region115: #{tpu_custom_call.1} parent=11 // pred_region
          _
        $region116: #{tpu_custom_call.1} parent=11 // pred_fallthru
          _
      $region12: #{tpu_custom_call.1} parent=5 // pred_fallthru
        _
      %p727 = scmp.lt.s32.totalorder %s36, 2
      // Predicated region
      $region117: #{tpu_custom_call.1} parent=5 // pred_check
        %p728 = pneg %p727
      $region118: #{tpu_custom_call.1} parent=5 // pred_check_branch
        %730 = sbr.rel (%p728) target = $region120
      $region119: #{tpu_custom_call.1} parent=5 // pred_region
        // Predicated region
        $region121: #{tpu_custom_call.1} parent=119 // pred_check
          %p731 = pneg %p56
        $region122: #{tpu_custom_call.1} parent=119 // pred_check_branch
          %733 = sbr.rel (%p731) target = $region124
        $region123: #{tpu_custom_call.1} parent=119 // pred_region
          %p734 = scmp.lt.s32.totalorder %s36, 1
          %s735 = scalar_select %p734, %s36, 1
          %s736 = smul.addr %s735, 2
          %s737 = smul.addr %s736, 8
          %s738 = scalar_lea.vmem %s0, %s737
        $region124: #{tpu_custom_call.1} parent=119 // pred_fallthru
          _
      $region120: #{tpu_custom_call.1} parent=5 // pred_fallthru
        _
      %p739 = scmp.le.s32.totalorder 1, %s36
      %p740 = scmp.lt.s32.totalorder %s36, 3
      %p741 = pnand %p739, %p740
      %p742 = pneg %p741
      // Predicated region
      $region125: #{tpu_custom_call.1} parent=5 // pred_check
        _
      $region126: #{tpu_custom_call.1} parent=5 // pred_check_branch
        %744 = sbr.rel (%p741) target = $region128
      $region127: #{tpu_custom_call.1} parent=5 // pred_region
        %s745 = ssub.s32 %s36, 1
        %p746 = scmp.lt.s32.totalorder %s41, 1
        %s747 = scalar_select %p746, %s41, 1
        %s748 = smul.addr %s747, 2
        %s749 = smul.addr %s748, 8
        %s750 = scalar_lea.vmem %s0, %s749
        %p751 = pneg %p62
        %p752 = pneg %p59
        %p753 = pneg %p83
        %p754 = pneg %p80
        %p755 = pneg %p104
        %p756 = pneg %p101
        %p757 = pneg %p125
        %p758 = pneg %p122
        %p759 = pneg %p146
        %p760 = pneg %p143
        %p761 = pneg %p167
        %p762 = pneg %p164
        %p763 = pneg %p188
        %p764 = pneg %p185
        %p765 = pneg %p209
        %p766 = pneg %p206
        %p767 = pneg %p230
        %p768 = pneg %p227
        %p769 = pneg %p251
        %p770 = pneg %p248
        %p771 = pneg %p272
        %p772 = pneg %p269
        %p773 = pneg %p293
        %p774 = pneg %p290
        %p775 = pneg %p314
        %p776 = pneg %p311
        %p777 = pneg %p335
        %p778 = pneg %p332
        %p779 = pneg %p356
        %p780 = pneg %p353
        %p781 = pneg %p377
        %p782 = pneg %p374
        %p783 = pneg %p398
        %p784 = pneg %p395
        %p785 = pneg %p419
        %p786 = pneg %p416
        %p787 = pneg %p440
        %p788 = pneg %p437
        %p789 = pneg %p461
        %p790 = pneg %p458
        %p791 = pneg %p482
        %p792 = pneg %p479
        %p793 = pneg %p503
        %p794 = pneg %p500
        %p795 = pneg %p524
        %p796 = pneg %p521
        %p797 = pneg %p545
        %p798 = pneg %p542
        %p799 = pneg %p566
        %p800 = pneg %p563
        %p801 = pneg %p587
        %p802 = pneg %p584
        %p803 = pneg %p608
        %p804 = pneg %p605
        %p805 = pneg %p634
        %p806 = pneg %p631
        %s807 = sand.u32 %s621, 1
        %s808 = scalar_lea.sflag [#allocation5], %s807
        %s809 = sand.u32 %s621, 1
        %s810 = scalar_lea.vmem [#allocation4], %s809
        %p811 = scmp.lt.s32.totalorder %s41, 1
        %s812 = scalar_select %p811, %s41, 1
        %s813 = smul.addr %s812, 2
        %s814 = smul.addr %s813, 8
        %s815 = scalar_lea.vmem %s0, %s814
        %v816 = vld [vmem:[%s815] sm:$0xff]
        %v817 = vld [vmem:[%s815 + $0x8] sm:$0xff]
        %v818 = vld [vmem:[%s3] sm:$0xff]
        %v819 = vld [vmem:[%s4] sm:$0xff]
        %821 = vset.pattern.permute.xlu0 0
        %822 = vperm.xlu0 %821, %v819
        %v823 = vpop.permute.xlu0 %822
        %vm825 = vcmask 31744
        %v827 = vsel %vm825, %v818, 0
        %v830 = vsel %vm825, %v816, 0
        %v833 = vsel %vm825, %v817, 0
        %835 = vmatprep.subr.mxu0 0.0
        %836 = vmatpush1.xpose.msra.mxu0 %v830
        %837 = vmatprep.subr.mxu0 0.0
        %838 = vmatpush1.xpose.msra.mxu0 %v833
        %839 = vmatprep.subr.mxu0 0.0
        %840 = vmatpush1.xpose.msra.mxu0 0.0
        %841 = vmatprep.subr.mxu0 0.0
        %842 = vmatpush1.xpose.msra.mxu0 0.0
        %843 = vmatprep.subr.mxu0 0.0
        %844 = vmatpush1.xpose.msra.mxu0 0.0
        %845 = vmatprep.subr.mxu0 0.0
        %846 = vmatpush1.xpose.msra.mxu0 0.0
        %847 = vmatprep.subr.mxu0 0.0
        %848 = vmatpush1.xpose.msra.mxu0 0.0
        %849 = vmatprep.subr.mxu0 0.0
        %850 = vmatpush1.xpose.msra.mxu0 0.0
        %851 = vmatprep.subr.mxu0 0.0
        %852 = vmatpush1.xpose.msra.mxu0 0.0
        %853 = vmatprep.subr.mxu0 0.0
        %854 = vmatpush1.xpose.msra.mxu0 0.0
        %855 = vmatprep.subr.mxu0 0.0
        %856 = vmatpush1.xpose.msra.mxu0 0.0
        %857 = vmatprep.subr.mxu0 0.0
        %858 = vmatpush1.xpose.msra.mxu0 0.0
        %859 = vmatprep.subr.mxu0 0.0
        %860 = vmatpush1.xpose.msra.mxu0 0.0
        %861 = vmatprep.subr.mxu0 0.0
        %862 = vmatpush1.xpose.msra.mxu0 0.0
        %863 = vmatprep.subr.mxu0 0.0
        %864 = vmatpush1.xpose.msra.mxu0 0.0
        %865 = vmatprep.subr.mxu0 0.0
        %866 = vmatpush1.xpose.msra.mxu0 0.0
        %867 = vmatprep.subr.mxu0 0.0
        %868 = vmatpush1.xpose.msra.mxu0 0.0
        %869 = vmatprep.subr.mxu0 0.0
        %870 = vmatpush1.xpose.msra.mxu0 0.0
        %871 = vmatprep.subr.mxu0 0.0
        %872 = vmatpush1.xpose.msra.mxu0 0.0
        %873 = vmatprep.subr.mxu0 0.0
        %874 = vmatpush1.xpose.msra.mxu0 0.0
        %875 = vmatprep.subr.mxu0 0.0
        %876 = vmatpush1.xpose.msra.mxu0 0.0
        %877 = vmatprep.subr.mxu0 0.0
        %878 = vmatpush1.xpose.msra.mxu0 0.0
        %879 = vmatprep.subr.mxu0 0.0
        %880 = vmatpush1.xpose.msra.mxu0 0.0
        %881 = vmatprep.subr.mxu0 0.0
        %882 = vmatpush1.xpose.msra.mxu0 0.0
        %883 = vmatprep.subr.mxu0 0.0
        %884 = vmatpush1.xpose.msra.mxu0 0.0
        %885 = vmatprep.subr.mxu0 0.0
        %886 = vmatpush1.xpose.msra.mxu0 0.0
        %887 = vmatprep.subr.mxu0 0.0
        %888 = vmatpush1.xpose.msra.mxu0 0.0
        %889 = vmatprep.subr.mxu0 0.0
        %890 = vmatpush1.xpose.msra.mxu0 0.0
        %891 = vmatprep.subr.mxu0 0.0
        %892 = vmatpush1.xpose.msra.mxu0 0.0
        %893 = vmatprep.subr.mxu0 0.0
        %894 = vmatpush1.xpose.msra.mxu0 0.0
        %895 = vmatprep.subr.mxu0 0.0
        %896 = vmatpush1.xpose.msra.mxu0 0.0
        %897 = vmatprep.subr.mxu0 0.0
        %898 = vmatpush1.xpose.msra.mxu0 0.0
        %899 = vmatprep.mubr.f32.mxu0 0.0
        %900 = vmatmul.mubr.f32.gmra.mrb[0].mxu0 %v827
        %v901 = vpop.f32.mrb[0].mxu0
        %v902 = vadd.f32 %v823, %v901
        %v903 = vpop.f32.mrb[0].mxu0
        %904 = vdwg.mxu0
        %v905 = vmul.f32 %v902, 0.5
        %v906 = vmul.f32 %v902, 0.044715
        %v907 = vmul.f32 %v906, %v902
        %v908 = vmul.f32 %v907, %v902
        %v909 = vadd.f32 %v902, %v908
        %v910 = vmul.f32 %v909, 0.7978846
        %v911 = vtanh.pop %v910
        %v912 = vadd.f32 %v911, 1.0
        %v913 = vmul.f32 %v905, %v912
        %v914 = vld [vmem:[%s5] sm:$0xff]
        %v915 = vld [vmem:[%s6] sm:$0xff]
        %917 = vset.pattern.permute.xlu0 0
        %918 = vperm.xlu0 %917, %v915
        %v919 = vpop.permute.xlu0 %918
        %vm921 = vcmask 64512
        %v923 = vsel %vm921, %v914, 0
        %925 = vmatprep.subr.mxu0 0.0
        %926 = vmatpush1.msra.mxu0 %v913
        %927 = vmatprep.subr.mxu0 0.0
        %928 = vmatpush1.msra.mxu0 0.0
        %929 = vmatprep.subr.mxu0 0.0
        %930 = vmatpush1.msra.mxu0 0.0
        %931 = vmatprep.subr.mxu0 0.0
        %932 = vmatpush1.msra.mxu0 0.0
        %933 = vmatprep.subr.mxu0 0.0
        %934 = vmatpush1.msra.mxu0 0.0
        %935 = vmatprep.subr.mxu0 0.0
        %936 = vmatpush1.msra.mxu0 0.0
        %937 = vmatprep.subr.mxu0 0.0
        %938 = vmatpush1.msra.mxu0 0.0
        %939 = vmatprep.subr.mxu0 0.0
        %940 = vmatpush1.msra.mxu0 0.0
        %941 = vmatprep.subr.mxu0 0.0
        %942 = vmatpush1.msra.mxu0 0.0
        %943 = vmatprep.subr.mxu0 0.0
        %944 = vmatpush1.msra.mxu0 0.0
        %945 = vmatprep.subr.mxu0 0.0
        %946 = vmatpush1.msra.mxu0 0.0
        %947 = vmatprep.subr.mxu0 0.0
        %948 = vmatpush1.msra.mxu0 0.0
        %949 = vmatprep.subr.mxu0 0.0
        %950 = vmatpush1.msra.mxu0 0.0
        %951 = vmatprep.subr.mxu0 0.0
        %952 = vmatpush1.msra.mxu0 0.0
        %953 = vmatprep.subr.mxu0 0.0
        %954 = vmatpush1.msra.mxu0 0.0
        %955 = vmatprep.subr.mxu0 0.0
        %956 = vmatpush1.msra.mxu0 0.0
        %957 = vmatprep.subr.mxu0 0.0
        %958 = vmatpush1.msra.mxu0 0.0
        %959 = vmatprep.subr.mxu0 0.0
        %960 = vmatpush1.msra.mxu0 0.0
        %961 = vmatprep.subr.mxu0 0.0
        %962 = vmatpush1.msra.mxu0 0.0
        %963 = vmatprep.subr.mxu0 0.0
        %964 = vmatpush1.msra.mxu0 0.0
        %965 = vmatprep.subr.mxu0 0.0
        %966 = vmatpush1.msra.mxu0 0.0
        %967 = vmatprep.subr.mxu0 0.0
        %968 = vmatpush1.msra.mxu0 0.0
        %969 = vmatprep.subr.mxu0 0.0
        %970 = vmatpush1.msra.mxu0 0.0
        %971 = vmatprep.subr.mxu0 0.0
        %972 = vmatpush1.msra.mxu0 0.0
        %973 = vmatprep.subr.mxu0 0.0
        %974 = vmatpush1.msra.mxu0 0.0
        %975 = vmatprep.subr.mxu0 0.0
        %976 = vmatpush1.msra.mxu0 0.0
        %977 = vmatprep.subr.mxu0 0.0
        %978 = vmatpush1.msra.mxu0 0.0
        %979 = vmatprep.subr.mxu0 0.0
        %980 = vmatpush1.msra.mxu0 0.0
        %981 = vmatprep.subr.mxu0 0.0
        %982 = vmatpush1.msra.mxu0 0.0
        %983 = vmatprep.subr.mxu0 0.0
        %984 = vmatpush1.msra.mxu0 0.0
        %985 = vmatprep.subr.mxu0 0.0
        %986 = vmatpush1.msra.mxu0 0.0
        %987 = vmatprep.subr.mxu0 0.0
        %988 = vmatpush1.msra.mxu0 0.0
        %989 = vmatprep.mubr.f32.mxu0 0.0
        %990 = vmatmul.mubr.f32.gmra.mrb[0].mxu0 %v923
        %v991 = vpop.f32.mrb[0].mxu0
        %v992 = vadd.f32 %v919, %v991
        %v993 = vpop.f32.mrb[0].mxu0
        %994 = vdwg.mxu0
        %v995 = vmul.f32 %v992, 0.5
        %v996 = vmul.f32 %v992, 0.044715
        %v997 = vmul.f32 %v996, %v992
        %v998 = vmul.f32 %v997, %v992
        %v999 = vadd.f32 %v992, %v998
        %v1000 = vmul.f32 %v999, 0.7978846
        %v1001 = vtanh.pop %v1000
        %v1002 = vadd.f32 %v1001, 1.0
        %v1003 = vmul.f32 %v995, %v1002
        %v1004 = vld [vmem:[%s7] sm:$0xff]
        %v1005 = vld [vmem:[%s8] sm:$0xff]
        %1007 = vset.pattern.permute.xlu0 0
        %1008 = vperm.xlu0 %1007, %v1005
        %v1009 = vpop.permute.xlu0 %1008
        %v1012 = vsel %vm921, %v1004, 0
        %1014 = vmatprep.subr.mxu0 0.0
        %1015 = vmatpush1.msra.mxu0 %v1003
        %1016 = vmatprep.subr.mxu0 0.0
        %1017 = vmatpush1.msra.mxu0 0.0
        %1018 = vmatprep.subr.mxu0 0.0
        %1019 = vmatpush1.msra.mxu0 0.0
        %1020 = vmatprep.subr.mxu0 0.0
        %1021 = vmatpush1.msra.mxu0 0.0
        %1022 = vmatprep.subr.mxu0 0.0
        %1023 = vmatpush1.msra.mxu0 0.0
        %1024 = vmatprep.subr.mxu0 0.0
        %1025 = vmatpush1.msra.mxu0 0.0
        %1026 = vmatprep.subr.mxu0 0.0
        %1027 = vmatpush1.msra.mxu0 0.0
        %1028 = vmatprep.subr.mxu0 0.0
        %1029 = vmatpush1.msra.mxu0 0.0
        %1030 = vmatprep.subr.mxu0 0.0
        %1031 = vmatpush1.msra.mxu0 0.0
        %1032 = vmatprep.subr.mxu0 0.0
        %1033 = vmatpush1.msra.mxu0 0.0
        %1034 = vmatprep.subr.mxu0 0.0
        %1035 = vmatpush1.msra.mxu0 0.0
        %1036 = vmatprep.subr.mxu0 0.0
        %1037 = vmatpush1.msra.mxu0 0.0
        %1038 = vmatprep.subr.mxu0 0.0
        %1039 = vmatpush1.msra.mxu0 0.0
        %1040 = vmatprep.subr.mxu0 0.0
        %1041 = vmatpush1.msra.mxu0 0.0
        %1042 = vmatprep.subr.mxu0 0.0
        %1043 = vmatpush1.msra.mxu0 0.0
        %1044 = vmatprep.subr.mxu0 0.0
        %1045 = vmatpush1.msra.mxu0 0.0
        %1046 = vmatprep.subr.mxu0 0.0
        %1047 = vmatpush1.msra.mxu0 0.0
        %1048 = vmatprep.subr.mxu0 0.0
        %1049 = vmatpush1.msra.mxu0 0.0
        %1050 = vmatprep.subr.mxu0 0.0
        %1051 = vmatpush1.msra.mxu0 0.0
        %1052 = vmatprep.subr.mxu0 0.0
        %1053 = vmatpush1.msra.mxu0 0.0
        %1054 = vmatprep.subr.mxu0 0.0
        %1055 = vmatpush1.msra.mxu0 0.0
        %1056 = vmatprep.subr.mxu0 0.0
        %1057 = vmatpush1.msra.mxu0 0.0
        %1058 = vmatprep.subr.mxu0 0.0
        %1059 = vmatpush1.msra.mxu0 0.0
        %1060 = vmatprep.subr.mxu0 0.0
        %1061 = vmatpush1.msra.mxu0 0.0
        %1062 = vmatprep.subr.mxu0 0.0
        %1063 = vmatpush1.msra.mxu0 0.0
        %1064 = vmatprep.subr.mxu0 0.0
        %1065 = vmatpush1.msra.mxu0 0.0
        %1066 = vmatprep.subr.mxu0 0.0
        %1067 = vmatpush1.msra.mxu0 0.0
        %1068 = vmatprep.subr.mxu0 0.0
        %1069 = vmatpush1.msra.mxu0 0.0
        %1070 = vmatprep.subr.mxu0 0.0
        %1071 = vmatpush1.msra.mxu0 0.0
        %1072 = vmatprep.subr.mxu0 0.0
        %1073 = vmatpush1.msra.mxu0 0.0
        %1074 = vmatprep.subr.mxu0 0.0
        %1075 = vmatpush1.msra.mxu0 0.0
        %1076 = vmatprep.subr.mxu0 0.0
        %1077 = vmatpush1.msra.mxu0 0.0
        %1078 = vmatprep.mubr.f32.mxu0 0.0
        %1079 = vmatmul.mubr.f32.gmra.mrb[0].mxu0 %v1012
        %v1080 = vpop.f32.mrb[0].mxu0
        %v1081 = vadd.f32 %v1009, %v1080
        %v1082 = vpop.f32.mrb[0].mxu0
        %1083 = vdwg.mxu0
        %v1084 = vmul.f32 %v1081, 0.5
        %v1085 = vmul.f32 %v1081, 0.044715
        %v1086 = vmul.f32 %v1085, %v1081
        %v1087 = vmul.f32 %v1086, %v1081
        %v1088 = vadd.f32 %v1081, %v1087
        %v1089 = vmul.f32 %v1088, 0.7978846
        %v1090 = vtanh.pop %v1089
        %v1091 = vadd.f32 %v1090, 1.0
        %v1092 = vmul.f32 %v1084, %v1091
        %v1093 = vld [vmem:[%s9] sm:$0xff]
        %v1094 = vld [vmem:[%s10] sm:$0xff]
        %1096 = vset.pattern.permute.xlu0 0
        %1097 = vperm.xlu0 %1096, %v1094
        %v1098 = vpop.permute.xlu0 %1097
        %v1101 = vsel %vm921, %v1093, 0
        %1103 = vmatprep.subr.mxu0 0.0
        %1104 = vmatpush1.msra.mxu0 %v1092
        %1105 = vmatprep.subr.mxu0 0.0
        %1106 = vmatpush1.msra.mxu0 0.0
        %1107 = vmatprep.subr.mxu0 0.0
        %1108 = vmatpush1.msra.mxu0 0.0
        %1109 = vmatprep.subr.mxu0 0.0
        %1110 = vmatpush1.msra.mxu0 0.0
        %1111 = vmatprep.subr.mxu0 0.0
        %1112 = vmatpush1.msra.mxu0 0.0
        %1113 = vmatprep.subr.mxu0 0.0
        %1114 = vmatpush1.msra.mxu0 0.0
        %1115 = vmatprep.subr.mxu0 0.0
        %1116 = vmatpush1.msra.mxu0 0.0
        %1117 = vmatprep.subr.mxu0 0.0
        %1118 = vmatpush1.msra.mxu0 0.0
        %1119 = vmatprep.subr.mxu0 0.0
        %1120 = vmatpush1.msra.mxu0 0.0
        %1121 = vmatprep.subr.mxu0 0.0
        %1122 = vmatpush1.msra.mxu0 0.0
        %1123 = vmatprep.subr.mxu0 0.0
        %1124 = vmatpush1.msra.mxu0 0.0
        %1125 = vmatprep.subr.mxu0 0.0
        %1126 = vmatpush1.msra.mxu0 0.0
        %1127 = vmatprep.subr.mxu0 0.0
        %1128 = vmatpush1.msra.mxu0 0.0
        %1129 = vmatprep.subr.mxu0 0.0
        %1130 = vmatpush1.msra.mxu0 0.0
        %1131 = vmatprep.subr.mxu0 0.0
        %1132 = vmatpush1.msra.mxu0 0.0
        %1133 = vmatprep.subr.mxu0 0.0
        %1134 = vmatpush1.msra.mxu0 0.0
        %1135 = vmatprep.subr.mxu0 0.0
        %1136 = vmatpush1.msra.mxu0 0.0
        %1137 = vmatprep.subr.mxu0 0.0
        %1138 = vmatpush1.msra.mxu0 0.0
        %1139 = vmatprep.subr.mxu0 0.0
        %1140 = vmatpush1.msra.mxu0 0.0
        %1141 = vmatprep.subr.mxu0 0.0
        %1142 = vmatpush1.msra.mxu0 0.0
        %1143 = vmatprep.subr.mxu0 0.0
        %1144 = vmatpush1.msra.mxu0 0.0
        %1145 = vmatprep.subr.mxu0 0.0
        %1146 = vmatpush1.msra.mxu0 0.0
        %1147 = vmatprep.subr.mxu0 0.0
        %1148 = vmatpush1.msra.mxu0 0.0
        %1149 = vmatprep.subr.mxu0 0.0
        %1150 = vmatpush1.msra.mxu0 0.0
        %1151 = vmatprep.subr.mxu0 0.0
        %1152 = vmatpush1.msra.mxu0 0.0
        %1153 = vmatprep.subr.mxu0 0.0
        %1154 = vmatpush1.msra.mxu0 0.0
        %1155 = vmatprep.subr.mxu0 0.0
        %1156 = vmatpush1.msra.mxu0 0.0
        %1157 = vmatprep.subr.mxu0 0.0
        %1158 = vmatpush1.msra.mxu0 0.0
        %1159 = vmatprep.subr.mxu0 0.0
        %1160 = vmatpush1.msra.mxu0 0.0
        %1161 = vmatprep.subr.mxu0 0.0
        %1162 = vmatpush1.msra.mxu0 0.0
        %1163 = vmatprep.subr.mxu0 0.0
        %1164 = vmatpush1.msra.mxu0 0.0
        %1165 = vmatprep.subr.mxu0 0.0
        %1166 = vmatpush1.msra.mxu0 0.0
        %1167 = vmatprep.mubr.f32.mxu0 0.0
        %1168 = vmatmul.mubr.f32.gmra.mrb[0].mxu0 %v1101
        %v1169 = vpop.f32.mrb[0].mxu0
        %v1170 = vadd.f32 %v1098, %v1169
        %v1171 = vpop.f32.mrb[0].mxu0
        %1172 = vdwg.mxu0
        %v1173 = vmul.f32 %v1170, 0.5
        %v1174 = vmul.f32 %v1170, 0.044715
        %v1175 = vmul.f32 %v1174, %v1170
        %v1176 = vmul.f32 %v1175, %v1170
        %v1177 = vadd.f32 %v1170, %v1176
        %v1178 = vmul.f32 %v1177, 0.7978846
        %v1179 = vtanh.pop %v1178
        %v1180 = vadd.f32 %v1179, 1.0
        %v1181 = vmul.f32 %v1173, %v1180
        %v1182 = vld [vmem:[%s11] sm:$0xff]
        %v1183 = vld [vmem:[%s11 + $0x8] sm:$0xff]
        %v1184 = vld [vmem:[%s1] sm:$0xff]
        %vm1185 = vcmask 130048
        %v1187 = vsel %vm1185, %v1181, 0
        %1189 = vmatprep.subr.mxu0 0.0
        %1190 = vmatpush1.msra.mxu0 %v1182
        %1191 = vmatprep.subr.mxu0 0.0
        %1192 = vmatpush1.msra.mxu0 %v1183
        %1193 = vmatprep.subr.mxu0 0.0
        %1194 = vmatpush1.msra.mxu0 0.0
        %1195 = vmatprep.subr.mxu0 0.0
        %1196 = vmatpush1.msra.mxu0 0.0
        %1197 = vmatprep.subr.mxu0 0.0
        %1198 = vmatpush1.msra.mxu0 0.0
        %1199 = vmatprep.subr.mxu0 0.0
        %1200 = vmatpush1.msra.mxu0 0.0
        %1201 = vmatprep.subr.mxu0 0.0
        %1202 = vmatpush1.msra.mxu0 0.0
        %1203 = vmatprep.subr.mxu0 0.0
        %1204 = vmatpush1.msra.mxu0 0.0
        %1205 = vmatprep.subr.mxu0 0.0
        %1206 = vmatpush1.msra.mxu0 0.0
        %1207 = vmatprep.subr.mxu0 0.0
        %1208 = vmatpush1.msra.mxu0 0.0
        %1209 = vmatprep.subr.mxu0 0.0
        %1210 = vmatpush1.msra.mxu0 0.0
        %1211 = vmatprep.subr.mxu0 0.0
        %1212 = vmatpush1.msra.mxu0 0.0
        %1213 = vmatprep.subr.mxu0 0.0
        %1214 = vmatpush1.msra.mxu0 0.0
        %1215 = vmatprep.subr.mxu0 0.0
        %1216 = vmatpush1.msra.mxu0 0.0
        %1217 = vmatprep.subr.mxu0 0.0
        %1218 = vmatpush1.msra.mxu0 0.0
        %1219 = vmatprep.subr.mxu0 0.0
        %1220 = vmatpush1.msra.mxu0 0.0
        %1221 = vmatprep.subr.mxu0 0.0
        %1222 = vmatpush1.msra.mxu0 0.0
        %1223 = vmatprep.subr.mxu0 0.0
        %1224 = vmatpush1.msra.mxu0 0.0
        %1225 = vmatprep.subr.mxu0 0.0
        %1226 = vmatpush1.msra.mxu0 0.0
        %1227 = vmatprep.subr.mxu0 0.0
        %1228 = vmatpush1.msra.mxu0 0.0
        %1229 = vmatprep.subr.mxu0 0.0
        %1230 = vmatpush1.msra.mxu0 0.0
        %1231 = vmatprep.subr.mxu0 0.0
        %1232 = vmatpush1.msra.mxu0 0.0
        %1233 = vmatprep.subr.mxu0 0.0
        %1234 = vmatpush1.msra.mxu0 0.0
        %1235 = vmatprep.subr.mxu0 0.0
        %1236 = vmatpush1.msra.mxu0 0.0
        %1237 = vmatprep.subr.mxu0 0.0
        %1238 = vmatpush1.msra.mxu0 0.0
        %1239 = vmatprep.subr.mxu0 0.0
        %1240 = vmatpush1.msra.mxu0 0.0
        %1241 = vmatprep.subr.mxu0 0.0
        %1242 = vmatpush1.msra.mxu0 0.0
        %1243 = vmatprep.subr.mxu0 0.0
        %1244 = vmatpush1.msra.mxu0 0.0
        %1245 = vmatprep.subr.mxu0 0.0
        %1246 = vmatpush1.msra.mxu0 0.0
        %1247 = vmatprep.subr.mxu0 0.0
        %1248 = vmatpush1.msra.mxu0 0.0
        %1249 = vmatprep.subr.mxu0 0.0
        %1250 = vmatpush1.msra.mxu0 0.0
        %1251 = vmatprep.subr.mxu0 0.0
        %1252 = vmatpush1.msra.mxu0 0.0
        %1253 = vmatprep.mubr.f32.mxu0 0.0
        %1254 = vmatmul.mubr.f32.gmra.mrb[0].mxu0 %v1187
        %v1255 = vpop.f32.mrb[0].mxu0
        %v1256 = vadd.f32 %v1184, %v1255
        %v1257 = vpop.f32.mrb[0].mxu0
        %1258 = vdwg.mxu0
        %vm1259 = vcmask 261120
        %1260 = vst.msk [vmem:[#allocation2] sm:$0xff] %vm1259, %v1256
        %v1261 = vld [vmem:[%s2] sm:$0x1]
        %vm1262 = vcmask 253952
        %1263 = vst.msk [vmem:[#allocation2 + $0x8] sm:$0x1] %vm1262, %v1261
        %v1264 = vld [vmem:[#allocation2] sm:$0xff]
        %v1265 = vld [vmem:[#allocation2 + $0x8] sm:$0x1]
        %v1266 = vld [vmem:[%s12] sm:$0x1]
        %v1267 = vld [vmem:[%s13] sm:$0x1]
        %v1268 = vsel %vm1259, %v1264, 0.0
        %1269 = vadd.xlane.f32.xlu0 %v1268
        %v1270 = vpop.xlane.xlu0 %1269
        %v1271 = vsel %vm1262, %v1265, 0.0
        %1272 = vadd.xlane.f32.xlu0 %v1271
        %v1273 = vpop.xlane.xlu0 %1272
        %v1274 = vrcp.pop 32.0
        %v1275 = vmul.f32 %v1270, %v1274
        %v1276 = vmul.f32 %v1273, %v1274
        %v1277 = vsub.f32 %v1264, %v1275
        %v1278 = vsub.f32 %v1265, %v1276
        %v1279 = vmul.f32 %v1277, %v1277
        %v1280 = vmul.f32 %v1278, %v1278
        %v1281 = vsel %vm1259, %v1279, 0.0
        %1282 = vadd.xlane.f32.xlu0 %v1281
        %v1283 = vpop.xlane.xlu0 %1282
        %v1284 = vsel %vm1262, %v1280, 0.0
        %1285 = vadd.xlane.f32.xlu0 %v1284
        %v1286 = vpop.xlane.xlu0 %1285
        %v1287 = vmul.f32 %v1283, %v1274
        %v1288 = vmul.f32 %v1286, %v1274
        %v1289 = vadd.f32 %v1287, 1e-05
        %v1290 = vadd.f32 %v1288, 1e-05
        %v1291 = vrsqrt.pop %v1289
        %v1292 = vrsqrt.pop %v1290
        %v1293 = vmul.f32 %v1277, %v1291
        %v1294 = vmul.f32 %v1278, %v1292
        %v1296 = vlaneseq
        %v1297 = vshrl.u32 %v1296, 7
        %v1298 = vsub.s32 0, %v1297
        %v1299 = vrot.slane %v1266, %v1298
        %v1301 = vmul.f32 %v1293, %v1299
        %v1302 = vmul.f32 %v1294, %v1299
        %v1304 = vlaneseq
        %v1305 = vshrl.u32 %v1304, 7
        %v1306 = vsub.s32 0, %v1305
        %v1307 = vrot.slane %v1267, %v1306
        %v1309 = vadd.f32 %v1301, %v1307
        %v1310 = vadd.f32 %v1302, %v1307
        %v1311 = vld [vmem:[%s14] sm:$0xff]
        %v1312 = vld [vmem:[%s14 + $0x8] sm:$0xff]
        %v1313 = vld [vmem:[%s14 + $0x10] sm:$0xff]
        %v1314 = vld [vmem:[%s14 + $0x18] sm:$0xff]
        %v1316 = vsel %vm1259, %v1309, 0
        %v1319 = vsel %vm1259, %v1310, 0
        %1321 = vmatprep.subr.mxu0 0.0
        %1322 = vmatpush1.msra.mxu0 %v1311
        %1323 = vmatprep.subr.mxu0 0.0
        %1324 = vmatpush1.msra.mxu0 %v1312
        %1325 = vmatprep.subr.mxu0 0.0
        %1326 = vmatpush1.msra.mxu0 %v1313
        %1327 = vmatprep.subr.mxu0 0.0
        %1328 = vmatpush1.msra.mxu0 %v1314
        %1329 = vmatprep.subr.mxu0 0.0
        %1330 = vmatpush1.msra.mxu0 0.0
        %1331 = vmatprep.subr.mxu0 0.0
        %1332 = vmatpush1.msra.mxu0 0.0
        %1333 = vmatprep.subr.mxu0 0.0
        %1334 = vmatpush1.msra.mxu0 0.0
        %1335 = vmatprep.subr.mxu0 0.0
        %1336 = vmatpush1.msra.mxu0 0.0
        %1337 = vmatprep.subr.mxu0 0.0
        %1338 = vmatpush1.msra.mxu0 0.0
        %1339 = vmatprep.subr.mxu0 0.0
        %1340 = vmatpush1.msra.mxu0 0.0
        %1341 = vmatprep.subr.mxu0 0.0
        %1342 = vmatpush1.msra.mxu0 0.0
        %1343 = vmatprep.subr.mxu0 0.0
        %1344 = vmatpush1.msra.mxu0 0.0
        %1345 = vmatprep.subr.mxu0 0.0
        %1346 = vmatpush1.msra.mxu0 0.0
        %1347 = vmatprep.subr.mxu0 0.0
        %1348 = vmatpush1.msra.mxu0 0.0
        %1349 = vmatprep.subr.mxu0 0.0
        %1350 = vmatpush1.msra.mxu0 0.0
        %1351 = vmatprep.subr.mxu0 0.0
        %1352 = vmatpush1.msra.mxu0 0.0
        %1353 = vmatprep.subr.mxu0 0.0
        %1354 = vmatpush1.msra.mxu0 0.0
        %1355 = vmatprep.subr.mxu0 0.0
        %1356 = vmatpush1.msra.mxu0 0.0
        %1357 = vmatprep.subr.mxu0 0.0
        %1358 = vmatpush1.msra.mxu0 0.0
        %1359 = vmatprep.subr.mxu0 0.0
        %1360 = vmatpush1.msra.mxu0 0.0
        %1361 = vmatprep.subr.mxu0 0.0
        %1362 = vmatpush1.msra.mxu0 0.0
        %1363 = vmatprep.subr.mxu0 0.0
        %1364 = vmatpush1.msra.mxu0 0.0
        %1365 = vmatprep.subr.mxu0 0.0
        %1366 = vmatpush1.msra.mxu0 0.0
        %1367 = vmatprep.subr.mxu0 0.0
        %1368 = vmatpush1.msra.mxu0 0.0
        %1369 = vmatprep.subr.mxu0 0.0
        %1370 = vmatpush1.msra.mxu0 0.0
        %1371 = vmatprep.subr.mxu0 0.0
        %1372 = vmatpush1.msra.mxu0 0.0
        %1373 = vmatprep.subr.mxu0 0.0
        %1374 = vmatpush1.msra.mxu0 0.0
        %1375 = vmatprep.subr.mxu0 0.0
        %1376 = vmatpush1.msra.mxu0 0.0
        %1377 = vmatprep.subr.mxu0 0.0
        %1378 = vmatpush1.msra.mxu0 0.0
        %1379 = vmatprep.subr.mxu0 0.0
        %1380 = vmatpush1.msra.mxu0 0.0
        %1381 = vmatprep.subr.mxu0 0.0
        %1382 = vmatpush1.msra.mxu0 0.0
        %1383 = vmatprep.subr.mxu0 0.0
        %1384 = vmatpush1.msra.mxu0 0.0
        %1385 = vmatprep.mubr.f32.mxu0 0.0
        %1386 = vmatmul.mubr.f32.gmra.mrb[0].mxu0 %v1316
        %v1387 = vpop.f32.mrb[0].mxu0
        %v1388 = vadd.f32 0.0, %v1387
        %v1389 = vpop.f32.mrb[0].mxu0
        %1390 = vmatprep.mubr.f32.mxu0 0.0
        %1391 = vmatmul.mubr.f32.gmra.mrb[0].mxu0 %v1319
        %v1392 = vpop.f32.mrb[0].mxu0
        %v1393 = vadd.f32 0.0, %v1392
        %v1394 = vpop.f32.mrb[0].mxu0
        %1395 = vdwg.mxu0
        %1398 = vrot.lane.b32.xlu0 %v1388, 96
        %v1399 = vpop.permute.xlu0 %1398
        %1400 = vrot.lane.b32.xlu0 %v1393, 96
        %v1401 = vpop.permute.xlu0 %1400
        %v1402 = vsel %vm921, %v1388, 0
        %v1404 = vsel %vm921, %v1393, 0
        %v1406 = vsel %vm921, %v1399, 0
        %v1408 = vsel %vm921, %v1401, 0
        %1410 = vmatprep.subr.mxu0 0.0
        %1411 = vmatpush1.xpose.msra.mxu0 %v1406
        %1412 = vmatprep.subr.mxu0 0.0
        %1413 = vmatpush1.xpose.msra.mxu0 %v1408
        %1414 = vmatprep.subr.mxu0 0.0
        %1415 = vmatpush1.xpose.msra.mxu0 0.0
        %1416 = vmatprep.subr.mxu0 0.0
        %1417 = vmatpush1.xpose.msra.mxu0 0.0
        %1418 = vmatprep.subr.mxu0 0.0
        %1419 = vmatpush1.xpose.msra.mxu0 0.0
        %1420 = vmatprep.subr.mxu0 0.0
        %1421 = vmatpush1.xpose.msra.mxu0 0.0
        %1422 = vmatprep.subr.mxu0 0.0
        %1423 = vmatpush1.xpose.msra.mxu0 0.0
        %1424 = vmatprep.subr.mxu0 0.0
        %1425 = vmatpush1.xpose.msra.mxu0 0.0
        %1426 = vmatprep.subr.mxu0 0.0
        %1427 = vmatpush1.xpose.msra.mxu0 0.0
        %1428 = vmatprep.subr.mxu0 0.0
        %1429 = vmatpush1.xpose.msra.mxu0 0.0
        %1430 = vmatprep.subr.mxu0 0.0
        %1431 = vmatpush1.xpose.msra.mxu0 0.0
        %1432 = vmatprep.subr.mxu0 0.0
        %1433 = vmatpush1.xpose.msra.mxu0 0.0
        %1434 = vmatprep.subr.mxu0 0.0
        %1435 = vmatpush1.xpose.msra.mxu0 0.0
        %1436 = vmatprep.subr.mxu0 0.0
        %1437 = vmatpush1.xpose.msra.mxu0 0.0
        %1438 = vmatprep.subr.mxu0 0.0
        %1439 = vmatpush1.xpose.msra.mxu0 0.0
        %1440 = vmatprep.subr.mxu0 0.0
        %1441 = vmatpush1.xpose.msra.mxu0 0.0
        %1442 = vmatprep.subr.mxu0 0.0
        %1443 = vmatpush1.xpose.msra.mxu0 0.0
        %1444 = vmatprep.subr.mxu0 0.0
        %1445 = vmatpush1.xpose.msra.mxu0 0.0
        %1446 = vmatprep.subr.mxu0 0.0
        %1447 = vmatpush1.xpose.msra.mxu0 0.0
        %1448 = vmatprep.subr.mxu0 0.0
        %1449 = vmatpush1.xpose.msra.mxu0 0.0
        %1450 = vmatprep.subr.mxu0 0.0
        %1451 = vmatpush1.xpose.msra.mxu0 0.0
        %1452 = vmatprep.subr.mxu0 0.0
        %1453 = vmatpush1.xpose.msra.mxu0 0.0
        %1454 = vmatprep.subr.mxu0 0.0
        %1455 = vmatpush1.xpose.msra.mxu0 0.0
        %1456 = vmatprep.subr.mxu0 0.0
        %1457 = vmatpush1.xpose.msra.mxu0 0.0
        %1458 = vmatprep.subr.mxu0 0.0
        %1459 = vmatpush1.xpose.msra.mxu0 0.0
        %1460 = vmatprep.subr.mxu0 0.0
        %1461 = vmatpush1.xpose.msra.mxu0 0.0
        %1462 = vmatprep.subr.mxu0 0.0
        %1463 = vmatpush1.xpose.msra.mxu0 0.0
        %1464 = vmatprep.subr.mxu0 0.0
        %1465 = vmatpush1.xpose.msra.mxu0 0.0
        %1466 = vmatprep.subr.mxu0 0.0
        %1467 = vmatpush1.xpose.msra.mxu0 0.0
        %1468 = vmatprep.subr.mxu0 0.0
        %1469 = vmatpush1.xpose.msra.mxu0 0.0
        %1470 = vmatprep.subr.mxu0 0.0
        %1471 = vmatpush1.xpose.msra.mxu0 0.0
        %1472 = vmatprep.subr.mxu0 0.0
        %1473 = vmatpush1.xpose.msra.mxu0 0.0
        %1474 = vmatprep.mubr.f32.mxu0 0.0
        %1475 = vmatmul.mubr.f32.gmra.mrb[0].mxu0 %v1402
        %v1476 = vpop.f32.mrb[0].mxu0
        %v1477 = vadd.f32 0.0, %v1476
        %v1478 = vpop.f32.mrb[0].mxu0
        %1479 = vmatprep.mubr.f32.mxu0 0.0
        %1480 = vmatmul.mubr.f32.gmra.mrb[0].mxu0 %v1404
        %v1481 = vpop.f32.mrb[0].mxu0
        %v1482 = vadd.f32 0.0, %v1481
        %v1483 = vpop.f32.mrb[0].mxu0
        %1484 = vdwg.mxu0
        %vm1485 = vcmask 72704
        %v1486 = vsel %vm1485, %v1477, -inf
        %1487 = vmax.xlane.f32.xlu0 %v1486
        %v1488 = vpop.xlane.xlu0 %1487
        %vm1489 = vcmask 65536
        %v1490 = vsel %vm1489, %v1482, -inf
        %1491 = vmax.xlane.f32.xlu0 %v1490
        %v1492 = vpop.xlane.xlu0 %1491
        %v1493 = vsub.f32 %v1477, %v1488
        %v1494 = vsub.f32 %v1482, %v1492
        %v1495 = vmul.f32 %v1493, 1.442695
        %v1496 = vpow.pop %v1495
        %v1497 = vmul.f32 %v1494, 1.442695
        %v1498 = vpow.pop %v1497
        %v1499 = vsel %vm1485, %v1496, 0.0
        %1500 = vadd.xlane.f32.xlu0 %v1499
        %v1501 = vpop.xlane.xlu0 %1500
        %v1502 = vsel %vm1489, %v1498, 0.0
        %1503 = vadd.xlane.f32.xlu0 %v1502
        %v1504 = vpop.xlane.xlu0 %1503
        %v1505 = vrcp.pop %v1501
        %v1506 = vrcp.pop %v1504
        %v1507 = vmul.f32 %v1496, %v1505
        %v1508 = vmul.f32 %v1498, %v1506
        %1509 = vrot.lane.b32.xlu0 %v1388, 64
        %v1510 = vpop.permute.xlu0 %1509
        %1511 = vrot.lane.b32.xlu0 %v1393, 64
        %v1512 = vpop.permute.xlu0 %1511
        %v1515 = vsel %vm1485, %v1507, 0
        %v1518 = vsel %vm1485, %v1508, 0
        %vm1520 = vcmask 1040384
        %v1521 = vsel %vm1520, %v1512, 0
        %1523 = vmatprep.subr.mxu0 0.0
        %1524 = vmatpush1.msra.mxu0 %v1510
        %1525 = vmatprep.subr.mxu0 0.0
        %1526 = vmatpush1.msra.mxu0 %v1521
        %1527 = vmatprep.subr.mxu0 0.0
        %1528 = vmatpush1.msra.mxu0 0.0
        %1529 = vmatprep.subr.mxu0 0.0
        %1530 = vmatpush1.msra.mxu0 0.0
        %1531 = vmatprep.subr.mxu0 0.0
        %1532 = vmatpush1.msra.mxu0 0.0
        %1533 = vmatprep.subr.mxu0 0.0
        %1534 = vmatpush1.msra.mxu0 0.0
        %1535 = vmatprep.subr.mxu0 0.0
        %1536 = vmatpush1.msra.mxu0 0.0
        %1537 = vmatprep.subr.mxu0 0.0
        %1538 = vmatpush1.msra.mxu0 0.0
        %1539 = vmatprep.subr.mxu0 0.0
        %1540 = vmatpush1.msra.mxu0 0.0
        %1541 = vmatprep.subr.mxu0 0.0
        %1542 = vmatpush1.msra.mxu0 0.0
        %1543 = vmatprep.subr.mxu0 0.0
        %1544 = vmatpush1.msra.mxu0 0.0
        %1545 = vmatprep.subr.mxu0 0.0
        %1546 = vmatpush1.msra.mxu0 0.0
        %1547 = vmatprep.subr.mxu0 0.0
        %1548 = vmatpush1.msra.mxu0 0.0
        %1549 = vmatprep.subr.mxu0 0.0
        %1550 = vmatpush1.msra.mxu0 0.0
        %1551 = vmatprep.subr.mxu0 0.0
        %1552 = vmatpush1.msra.mxu0 0.0
        %1553 = vmatprep.subr.mxu0 0.0
        %1554 = vmatpush1.msra.mxu0 0.0
        %1555 = vmatprep.subr.mxu0 0.0
        %1556 = vmatpush1.msra.mxu0 0.0
        %1557 = vmatprep.subr.mxu0 0.0
        %1558 = vmatpush1.msra.mxu0 0.0
        %1559 = vmatprep.subr.mxu0 0.0
        %1560 = vmatpush1.msra.mxu0 0.0
        %1561 = vmatprep.subr.mxu0 0.0
        %1562 = vmatpush1.msra.mxu0 0.0
        %1563 = vmatprep.subr.mxu0 0.0
        %1564 = vmatpush1.msra.mxu0 0.0
        %1565 = vmatprep.subr.mxu0 0.0
        %1566 = vmatpush1.msra.mxu0 0.0
        %1567 = vmatprep.subr.mxu0 0.0
        %1568 = vmatpush1.msra.mxu0 0.0
        %1569 = vmatprep.subr.mxu0 0.0
        %1570 = vmatpush1.msra.mxu0 0.0
        %1571 = vmatprep.subr.mxu0 0.0
        %1572 = vmatpush1.msra.mxu0 0.0
        %1573 = vmatprep.subr.mxu0 0.0
        %1574 = vmatpush1.msra.mxu0 0.0
        %1575 = vmatprep.subr.mxu0 0.0
        %1576 = vmatpush1.msra.mxu0 0.0
        %1577 = vmatprep.subr.mxu0 0.0
        %1578 = vmatpush1.msra.mxu0 0.0
        %1579 = vmatprep.subr.mxu0 0.0
        %1580 = vmatpush1.msra.mxu0 0.0
        %1581 = vmatprep.subr.mxu0 0.0
        %1582 = vmatpush1.msra.mxu0 0.0
        %1583 = vmatprep.subr.mxu0 0.0
        %1584 = vmatpush1.msra.mxu0 0.0
        %1585 = vmatprep.subr.mxu0 0.0
        %1586 = vmatpush1.msra.mxu0 0.0
        %1587 = vmatprep.mubr.f32.mxu0 0.0
        %1588 = vmatmul.mubr.f32.gmra.mrb[0].mxu0 %v1515
        %v1589 = vpop.f32.mrb[0].mxu0
        %v1590 = vadd.f32 0.0, %v1589
        %v1591 = vpop.f32.mrb[0].mxu0
        %1592 = vmatprep.mubr.f32.mxu0 0.0
        %1593 = vmatmul.mubr.f32.gmra.mrb[0].mxu0 %v1518
        %v1594 = vpop.f32.mrb[0].mxu0
        %v1595 = vadd.f32 0.0, %v1594
        %v1596 = vpop.f32.mrb[0].mxu0
        %1597 = vdwg.mxu0
        %1598 = vst.msk [vmem:[#allocation3] sm:$0xff] %vm921, %v1590
        %vm1599 = vcmask 57344
        %1600 = vst.msk [vmem:[#allocation3 + $0x8] sm:$0x1] %vm1599, %v1595
        %1601 = vrot.lane.b32.xlu0 %v1388, 120
        %v1602 = vpop.permute.xlu0 %1601
        %1603 = vrot.lane.b32.xlu0 %v1393, 120
        %v1604 = vpop.permute.xlu0 %1603
        %1605 = vrot.lane.b32.xlu0 %v1388, 88
        %v1606 = vpop.permute.xlu0 %1605
        %1607 = vrot.lane.b32.xlu0 %v1393, 88
        %v1608 = vpop.permute.xlu0 %1607
        %v1609 = vsel %vm921, %v1602, 0
        %v1611 = vsel %vm921, %v1604, 0
        %v1613 = vsel %vm921, %v1606, 0
        %v1615 = vsel %vm921, %v1608, 0
        %1617 = vmatprep.subr.mxu0 0.0
        %1618 = vmatpush1.xpose.msra.mxu0 %v1613
        %1619 = vmatprep.subr.mxu0 0.0
        %1620 = vmatpush1.xpose.msra.mxu0 %v1615
        %1621 = vmatprep.subr.mxu0 0.0
        %1622 = vmatpush1.xpose.msra.mxu0 0.0
        %1623 = vmatprep.subr.mxu0 0.0
        %1624 = vmatpush1.xpose.msra.mxu0 0.0
        %1625 = vmatprep.subr.mxu0 0.0
        %1626 = vmatpush1.xpose.msra.mxu0 0.0
        %1627 = vmatprep.subr.mxu0 0.0
        %1628 = vmatpush1.xpose.msra.mxu0 0.0
        %1629 = vmatprep.subr.mxu0 0.0
        %1630 = vmatpush1.xpose.msra.mxu0 0.0
        %1631 = vmatprep.subr.mxu0 0.0
        %1632 = vmatpush1.xpose.msra.mxu0 0.0
        %1633 = vmatprep.subr.mxu0 0.0
        %1634 = vmatpush1.xpose.msra.mxu0 0.0
        %1635 = vmatprep.subr.mxu0 0.0
        %1636 = vmatpush1.xpose.msra.mxu0 0.0
        %1637 = vmatprep.subr.mxu0 0.0
        %1638 = vmatpush1.xpose.msra.mxu0 0.0
        %1639 = vmatprep.subr.mxu0 0.0
        %1640 = vmatpush1.xpose.msra.mxu0 0.0
        %1641 = vmatprep.subr.mxu0 0.0
        %1642 = vmatpush1.xpose.msra.mxu0 0.0
        %1643 = vmatprep.subr.mxu0 0.0
        %1644 = vmatpush1.xpose.msra.mxu0 0.0
        %1645 = vmatprep.subr.mxu0 0.0
        %1646 = vmatpush1.xpose.msra.mxu0 0.0
        %1647 = vmatprep.subr.mxu0 0.0
        %1648 = vmatpush1.xpose.msra.mxu0 0.0
        %1649 = vmatprep.subr.mxu0 0.0
        %1650 = vmatpush1.xpose.msra.mxu0 0.0
        %1651 = vmatprep.subr.mxu0 0.0
        %1652 = vmatpush1.xpose.msra.mxu0 0.0
        %1653 = vmatprep.subr.mxu0 0.0
        %1654 = vmatpush1.xpose.msra.mxu0 0.0
        %1655 = vmatprep.subr.mxu0 0.0
        %1656 = vmatpush1.xpose.msra.mxu0 0.0
        %1657 = vmatprep.subr.mxu0 0.0
        %1658 = vmatpush1.xpose.msra.mxu0 0.0
        %1659 = vmatprep.subr.mxu0 0.0
        %1660 = vmatpush1.xpose.msra.mxu0 0.0
        %1661 = vmatprep.subr.mxu0 0.0
        %1662 = vmatpush1.xpose.msra.mxu0 0.0
        %1663 = vmatprep.subr.mxu0 0.0
        %1664 = vmatpush1.xpose.msra.mxu0 0.0
        %1665 = vmatprep.subr.mxu0 0.0
        %1666 = vmatpush1.xpose.msra.mxu0 0.0
        %1667 = vmatprep.subr.mxu0 0.0
        %1668 = vmatpush1.xpose.msra.mxu0 0.0
        %1669 = vmatprep.subr.mxu0 0.0
        %1670 = vmatpush1.xpose.msra.mxu0 0.0
        %1671 = vmatprep.subr.mxu0 0.0
        %1672 = vmatpush1.xpose.msra.mxu0 0.0
        %1673 = vmatprep.subr.mxu0 0.0
        %1674 = vmatpush1.xpose.msra.mxu0 0.0
        %1675 = vmatprep.subr.mxu0 0.0
        %1676 = vmatpush1.xpose.msra.mxu0 0.0
        %1677 = vmatprep.subr.mxu0 0.0
        %1678 = vmatpush1.xpose.msra.mxu0 0.0
        %1679 = vmatprep.subr.mxu0 0.0
        %1680 = vmatpush1.xpose.msra.mxu0 0.0
        %1681 = vmatprep.mubr.f32.mxu0 0.0
        %1682 = vmatmul.mubr.f32.gmra.mrb[0].mxu0 %v1609
        %v1683 = vpop.f32.mrb[0].mxu0
        %v1684 = vadd.f32 0.0, %v1683
        %v1685 = vpop.f32.mrb[0].mxu0
        %1686 = vmatprep.mubr.f32.mxu0 0.0
        %1687 = vmatmul.mubr.f32.gmra.mrb[0].mxu0 %v1611
        %v1688 = vpop.f32.mrb[0].mxu0
        %v1689 = vadd.f32 0.0, %v1688
        %v1690 = vpop.f32.mrb[0].mxu0
        %1691 = vdwg.mxu0
        %v1692 = vsel %vm1485, %v1684, -inf
        %1693 = vmax.xlane.f32.xlu0 %v1692
        %v1694 = vpop.xlane.xlu0 %1693
        %v1695 = vsel %vm1489, %v1689, -inf
        %1696 = vmax.xlane.f32.xlu0 %v1695
        %v1697 = vpop.xlane.xlu0 %1696
        %v1698 = vsub.f32 %v1684, %v1694
        %v1699 = vsub.f32 %v1689, %v1697
        %v1700 = vmul.f32 %v1698, 1.442695
        %v1701 = vpow.pop %v1700
        %v1702 = vmul.f32 %v1699, 1.442695
        %v1703 = vpow.pop %v1702
        %v1704 = vsel %vm1485, %v1701, 0.0
        %1705 = vadd.xlane.f32.xlu0 %v1704
        %v1706 = vpop.xlane.xlu0 %1705
        %v1707 = vsel %vm1489, %v1703, 0.0
        %1708 = vadd.xlane.f32.xlu0 %v1707
        %v1709 = vpop.xlane.xlu0 %1708
        %v1710 = vrcp.pop %v1706
        %v1711 = vrcp.pop %v1709
        %v1712 = vmul.f32 %v1701, %v1710
        %v1713 = vmul.f32 %v1703, %v1711
        %1714 = vrot.lane.b32.xlu0 %v1388, 56
        %v1715 = vpop.permute.xlu0 %1714
        %1716 = vrot.lane.b32.xlu0 %v1393, 56
        %v1717 = vpop.permute.xlu0 %1716
        %v1720 = vsel %vm1485, %v1712, 0
        %v1723 = vsel %vm1485, %v1713, 0
        %v1725 = vsel %vm1520, %v1717, 0
        %1727 = vmatprep.subr.mxu0 0.0
        %1728 = vmatpush1.msra.mxu0 %v1715
        %1729 = vmatprep.subr.mxu0 0.0
        %1730 = vmatpush1.msra.mxu0 %v1725
        %1731 = vmatprep.subr.mxu0 0.0
        %1732 = vmatpush1.msra.mxu0 0.0
        %1733 = vmatprep.subr.mxu0 0.0
        %1734 = vmatpush1.msra.mxu0 0.0
        %1735 = vmatprep.subr.mxu0 0.0
        %1736 = vmatpush1.msra.mxu0 0.0
        %1737 = vmatprep.subr.mxu0 0.0
        %1738 = vmatpush1.msra.mxu0 0.0
        %1739 = vmatprep.subr.mxu0 0.0
        %1740 = vmatpush1.msra.mxu0 0.0
        %1741 = vmatprep.subr.mxu0 0.0
        %1742 = vmatpush1.msra.mxu0 0.0
        %1743 = vmatprep.subr.mxu0 0.0
        %1744 = vmatpush1.msra.mxu0 0.0
        %1745 = vmatprep.subr.mxu0 0.0
        %1746 = vmatpush1.msra.mxu0 0.0
        %1747 = vmatprep.subr.mxu0 0.0
        %1748 = vmatpush1.msra.mxu0 0.0
        %1749 = vmatprep.subr.mxu0 0.0
        %1750 = vmatpush1.msra.mxu0 0.0
        %1751 = vmatprep.subr.mxu0 0.0
        %1752 = vmatpush1.msra.mxu0 0.0
        %1753 = vmatprep.subr.mxu0 0.0
        %1754 = vmatpush1.msra.mxu0 0.0
        %1755 = vmatprep.subr.mxu0 0.0
        %1756 = vmatpush1.msra.mxu0 0.0
        %1757 = vmatprep.subr.mxu0 0.0
        %1758 = vmatpush1.msra.mxu0 0.0
        %1759 = vmatprep.subr.mxu0 0.0
        %1760 = vmatpush1.msra.mxu0 0.0
        %1761 = vmatprep.subr.mxu0 0.0
        %1762 = vmatpush1.msra.mxu0 0.0
        %1763 = vmatprep.subr.mxu0 0.0
        %1764 = vmatpush1.msra.mxu0 0.0
        %1765 = vmatprep.subr.mxu0 0.0
        %1766 = vmatpush1.msra.mxu0 0.0
        %1767 = vmatprep.subr.mxu0 0.0
        %1768 = vmatpush1.msra.mxu0 0.0
        %1769 = vmatprep.subr.mxu0 0.0
        %1770 = vmatpush1.msra.mxu0 0.0
        %1771 = vmatprep.subr.mxu0 0.0
        %1772 = vmatpush1.msra.mxu0 0.0
        %1773 = vmatprep.subr.mxu0 0.0
        %1774 = vmatpush1.msra.mxu0 0.0
        %1775 = vmatprep.subr.mxu0 0.0
        %1776 = vmatpush1.msra.mxu0 0.0
        %1777 = vmatprep.subr.mxu0 0.0
        %1778 = vmatpush1.msra.mxu0 0.0
        %1779 = vmatprep.subr.mxu0 0.0
        %1780 = vmatpush1.msra.mxu0 0.0
        %1781 = vmatprep.subr.mxu0 0.0
        %1782 = vmatpush1.msra.mxu0 0.0
        %1783 = vmatprep.subr.mxu0 0.0
        %1784 = vmatpush1.msra.mxu0 0.0
        %1785 = vmatprep.subr.mxu0 0.0
        %1786 = vmatpush1.msra.mxu0 0.0
        %1787 = vmatprep.subr.mxu0 0.0
        %1788 = vmatpush1.msra.mxu0 0.0
        %1789 = vmatprep.subr.mxu0 0.0
        %1790 = vmatpush1.msra.mxu0 0.0
        %1791 = vmatprep.mubr.f32.mxu0 0.0
        %1792 = vmatmul.mubr.f32.gmra.mrb[0].mxu0 %v1720
        %v1793 = vpop.f32.mrb[0].mxu0
        %v1794 = vadd.f32 0.0, %v1793
        %v1795 = vpop.f32.mrb[0].mxu0
        %1796 = vmatprep.mubr.f32.mxu0 0.0
        %1797 = vmatmul.mubr.f32.gmra.mrb[0].mxu0 %v1723
        %v1798 = vpop.f32.mrb[0].mxu0
        %v1799 = vadd.f32 0.0, %v1798
        %v1800 = vpop.f32.mrb[0].mxu0
        %1801 = vdwg.mxu0
        %1804 = vrot.lane.b32.xlu0 %v1794, 8
        %v1805 = vpop.permute.xlu0 %1804
        %1806 = vrot.lane.b32.xlu0 %v1799, 8
        %v1807 = vpop.permute.xlu0 %1806
        %vm1810 = vcmask 130112
        %1811 = vst.msk [vmem:[#allocation3] sm:$0xff] %vm1810, %v1805
        %vm1812 = vcmask 122944
        %1813 = vst.msk [vmem:[#allocation3 + $0x8] sm:$0x1] %vm1812, %v1807
        %1814 = vrot.lane.b32.xlu0 %v1388, 112
        %v1815 = vpop.permute.xlu0 %1814
        %1816 = vrot.lane.b32.xlu0 %v1393, 112
        %v1817 = vpop.permute.xlu0 %1816
        %1818 = vrot.lane.b32.xlu0 %v1388, 80
        %v1819 = vpop.permute.xlu0 %1818
        %1820 = vrot.lane.b32.xlu0 %v1393, 80
        %v1821 = vpop.permute.xlu0 %1820
        %v1822 = vsel %vm921, %v1815, 0
        %v1824 = vsel %vm921, %v1817, 0
        %v1826 = vsel %vm921, %v1819, 0
        %v1828 = vsel %vm921, %v1821, 0
        %1830 = vmatprep.subr.mxu0 0.0
        %1831 = vmatpush1.xpose.msra.mxu0 %v1826
        %1832 = vmatprep.subr.mxu0 0.0
        %1833 = vmatpush1.xpose.msra.mxu0 %v1828
        %1834 = vmatprep.subr.mxu0 0.0
        %1835 = vmatpush1.xpose.msra.mxu0 0.0
        %1836 = vmatprep.subr.mxu0 0.0
        %1837 = vmatpush1.xpose.msra.mxu0 0.0
        %1838 = vmatprep.subr.mxu0 0.0
        %1839 = vmatpush1.xpose.msra.mxu0 0.0
        %1840 = vmatprep.subr.mxu0 0.0
        %1841 = vmatpush1.xpose.msra.mxu0 0.0
        %1842 = vmatprep.subr.mxu0 0.0
        %1843 = vmatpush1.xpose.msra.mxu0 0.0
        %1844 = vmatprep.subr.mxu0 0.0
        %1845 = vmatpush1.xpose.msra.mxu0 0.0
        %1846 = vmatprep.subr.mxu0 0.0
        %1847 = vmatpush1.xpose.msra.mxu0 0.0
        %1848 = vmatprep.subr.mxu0 0.0
        %1849 = vmatpush1.xpose.msra.mxu0 0.0
        %1850 = vmatprep.subr.mxu0 0.0
        %1851 = vmatpush1.xpose.msra.mxu0 0.0
        %1852 = vmatprep.subr.mxu0 0.0
        %1853 = vmatpush1.xpose.msra.mxu0 0.0
        %1854 = vmatprep.subr.mxu0 0.0
        %1855 = vmatpush1.xpose.msra.mxu0 0.0
        %1856 = vmatprep.subr.mxu0 0.0
        %1857 = vmatpush1.xpose.msra.mxu0 0.0
        %1858 = vmatprep.subr.mxu0 0.0
        %1859 = vmatpush1.xpose.msra.mxu0 0.0
        %1860 = vmatprep.subr.mxu0 0.0
        %1861 = vmatpush1.xpose.msra.mxu0 0.0
        %1862 = vmatprep.subr.mxu0 0.0
        %1863 = vmatpush1.xpose.msra.mxu0 0.0
        %1864 = vmatprep.subr.mxu0 0.0
        %1865 = vmatpush1.xpose.msra.mxu0 0.0
        %1866 = vmatprep.subr.mxu0 0.0
        %1867 = vmatpush1.xpose.msra.mxu0 0.0
        %1868 = vmatprep.subr.mxu0 0.0
        %1869 = vmatpush1.xpose.msra.mxu0 0.0
        %1870 = vmatprep.subr.mxu0 0.0
        %1871 = vmatpush1.xpose.msra.mxu0 0.0
        %1872 = vmatprep.subr.mxu0 0.0
        %1873 = vmatpush1.xpose.msra.mxu0 0.0
        %1874 = vmatprep.subr.mxu0 0.0
        %1875 = vmatpush1.xpose.msra.mxu0 0.0
        %1876 = vmatprep.subr.mxu0 0.0
        %1877 = vmatpush1.xpose.msra.mxu0 0.0
        %1878 = vmatprep.subr.mxu0 0.0
        %1879 = vmatpush1.xpose.msra.mxu0 0.0
        %1880 = vmatprep.subr.mxu0 0.0
        %1881 = vmatpush1.xpose.msra.mxu0 0.0
        %1882 = vmatprep.subr.mxu0 0.0
        %1883 = vmatpush1.xpose.msra.mxu0 0.0
        %1884 = vmatprep.subr.mxu0 0.0
        %1885 = vmatpush1.xpose.msra.mxu0 0.0
        %1886 = vmatprep.subr.mxu0 0.0
        %1887 = vmatpush1.xpose.msra.mxu0 0.0
        %1888 = vmatprep.subr.mxu0 0.0
        %1889 = vmatpush1.xpose.msra.mxu0 0.0
        %1890 = vmatprep.subr.mxu0 0.0
        %1891 = vmatpush1.xpose.msra.mxu0 0.0
        %1892 = vmatprep.subr.mxu0 0.0
        %1893 = vmatpush1.xpose.msra.mxu0 0.0
        %1894 = vmatprep.mubr.f32.mxu0 0.0
        %1895 = vmatmul.mubr.f32.gmra.mrb[0].mxu0 %v1822
        %v1896 = vpop.f32.mrb[0].mxu0
        %v1897 = vadd.f32 0.0, %v1896
        %v1898 = vpop.f32.mrb[0].mxu0
        %1899 = vmatprep.mubr.f32.mxu0 0.0
        %1900 = vmatmul.mubr.f32.gmra.mrb[0].mxu0 %v1824
        %v1901 = vpop.f32.mrb[0].mxu0
        %v1902 = vadd.f32 0.0, %v1901
        %v1903 = vpop.f32.mrb[0].mxu0
        %1904 = vdwg.mxu0
        %v1905 = vsel %vm1485, %v1897, -inf
        %1906 = vmax.xlane.f32.xlu0 %v1905
        %v1907 = vpop.xlane.xlu0 %1906
        %v1908 = vsel %vm1489, %v1902, -inf
        %1909 = vmax.xlane.f32.xlu0 %v1908
        %v1910 = vpop.xlane.xlu0 %1909
        %v1911 = vsub.f32 %v1897, %v1907
        %v1912 = vsub.f32 %v1902, %v1910
        %v1913 = vmul.f32 %v1911, 1.442695
        %v1914 = vpow.pop %v1913
        %v1915 = vmul.f32 %v1912, 1.442695
        %v1916 = vpow.pop %v1915
        %v1917 = vsel %vm1485, %v1914, 0.0
        %1918 = vadd.xlane.f32.xlu0 %v1917
        %v1919 = vpop.xlane.xlu0 %1918
        %v1920 = vsel %vm1489, %v1916, 0.0
        %1921 = vadd.xlane.f32.xlu0 %v1920
        %v1922 = vpop.xlane.xlu0 %1921
        %v1923 = vrcp.pop %v1919
        %v1924 = vrcp.pop %v1922
        %v1925 = vmul.f32 %v1914, %v1923
        %v1926 = vmul.f32 %v1916, %v1924
        %1927 = vrot.lane.b32.xlu0 %v1388, 48
        %v1928 = vpop.permute.xlu0 %1927
        %1929 = vrot.lane.b32.xlu0 %v1393, 48
        %v1930 = vpop.permute.xlu0 %1929
        %v1933 = vsel %vm1485, %v1925, 0
        %v1936 = vsel %vm1485, %v1926, 0
        %v1938 = vsel %vm1520, %v1930, 0
        %1940 = vmatprep.subr.mxu0 0.0
        %1941 = vmatpush1.msra.mxu0 %v1928
        %1942 = vmatprep.subr.mxu0 0.0
        %1943 = vmatpush1.msra.mxu0 %v1938
        %1944 = vmatprep.subr.mxu0 0.0
        %1945 = vmatpush1.msra.mxu0 0.0
        %1946 = vmatprep.subr.mxu0 0.0
        %1947 = vmatpush1.msra.mxu0 0.0
        %1948 = vmatprep.subr.mxu0 0.0
        %1949 = vmatpush1.msra.mxu0 0.0
        %1950 = vmatprep.subr.mxu0 0.0
        %1951 = vmatpush1.msra.mxu0 0.0
        %1952 = vmatprep.subr.mxu0 0.0
        %1953 = vmatpush1.msra.mxu0 0.0
        %1954 = vmatprep.subr.mxu0 0.0
        %1955 = vmatpush1.msra.mxu0 0.0
        %1956 = vmatprep.subr.mxu0 0.0
        %1957 = vmatpush1.msra.mxu0 0.0
        %1958 = vmatprep.subr.mxu0 0.0
        %1959 = vmatpush1.msra.mxu0 0.0
        %1960 = vmatprep.subr.mxu0 0.0
        %1961 = vmatpush1.msra.mxu0 0.0
        %1962 = vmatprep.subr.mxu0 0.0
        %1963 = vmatpush1.msra.mxu0 0.0
        %1964 = vmatprep.subr.mxu0 0.0
        %1965 = vmatpush1.msra.mxu0 0.0
        %1966 = vmatprep.subr.mxu0 0.0
        %1967 = vmatpush1.msra.mxu0 0.0
        %1968 = vmatprep.subr.mxu0 0.0
        %1969 = vmatpush1.msra.mxu0 0.0
        %1970 = vmatprep.subr.mxu0 0.0
        %1971 = vmatpush1.msra.mxu0 0.0
        %1972 = vmatprep.subr.mxu0 0.0
        %1973 = vmatpush1.msra.mxu0 0.0
        %1974 = vmatprep.subr.mxu0 0.0
        %1975 = vmatpush1.msra.mxu0 0.0
        %1976 = vmatprep.subr.mxu0 0.0
        %1977 = vmatpush1.msra.mxu0 0.0
        %1978 = vmatprep.subr.mxu0 0.0
        %1979 = vmatpush1.msra.mxu0 0.0
        %1980 = vmatprep.subr.mxu0 0.0
        %1981 = vmatpush1.msra.mxu0 0.0
        %1982 = vmatprep.subr.mxu0 0.0
        %1983 = vmatpush1.msra.mxu0 0.0
        %1984 = vmatprep.subr.mxu0 0.0
        %1985 = vmatpush1.msra.mxu0 0.0
        %1986 = vmatprep.subr.mxu0 0.0
        %1987 = vmatpush1.msra.mxu0 0.0
        %1988 = vmatprep.subr.mxu0 0.0
        %1989 = vmatpush1.msra.mxu0 0.0
        %1990 = vmatprep.subr.mxu0 0.0
        %1991 = vmatpush1.msra.mxu0 0.0
        %1992 = vmatprep.subr.mxu0 0.0
        %1993 = vmatpush1.msra.mxu0 0.0
        %1994 = vmatprep.subr.mxu0 0.0
        %1995 = vmatpush1.msra.mxu0 0.0
        %1996 = vmatprep.subr.mxu0 0.0
        %1997 = vmatpush1.msra.mxu0 0.0
        %1998 = vmatprep.subr.mxu0 0.0
        %1999 = vmatpush1.msra.mxu0 0.0
        %2000 = vmatprep.subr.mxu0 0.0
        %2001 = vmatpush1.msra.mxu0 0.0
        %2002 = vmatprep.subr.mxu0 0.0
        %2003 = vmatpush1.msra.mxu0 0.0
        %2004 = vmatprep.mubr.f32.mxu0 0.0
        %2005 = vmatmul.mubr.f32.gmra.mrb[0].mxu0 %v1933
        %v2006 = vpop.f32.mrb[0].mxu0
        %v2007 = vadd.f32 0.0, %v2006
        %v2008 = vpop.f32.mrb[0].mxu0
        %2009 = vmatprep.mubr.f32.mxu0 0.0
        %2010 = vmatmul.mubr.f32.gmra.mrb[0].mxu0 %v1936
        %v2011 = vpop.f32.mrb[0].mxu0
        %v2012 = vadd.f32 0.0, %v2011
        %v2013 = vpop.f32.mrb[0].mxu0
        %2014 = vdwg.mxu0
        %2017 = vrot.lane.b32.xlu0 %v2007, 16
        %v2018 = vpop.permute.xlu0 %2017
        %2019 = vrot.lane.b32.xlu0 %v2012, 16
        %v2020 = vpop.permute.xlu0 %2019
        %vm2023 = vcmask 195712
        %2024 = vst.msk [vmem:[#allocation3] sm:$0xff] %vm2023, %v2018
        %vm2025 = vcmask 188544
        %2026 = vst.msk [vmem:[#allocation3 + $0x8] sm:$0x1] %vm2025, %v2020
        %2027 = vrot.lane.b32.xlu0 %v1388, 104
        %v2028 = vpop.permute.xlu0 %2027
        %2029 = vrot.lane.b32.xlu0 %v1393, 104
        %v2030 = vpop.permute.xlu0 %2029
        %2031 = vrot.lane.b32.xlu0 %v1388, 72
        %v2032 = vpop.permute.xlu0 %2031
        %2033 = vrot.lane.b32.xlu0 %v1393, 72
        %v2034 = vpop.permute.xlu0 %2033
        %v2035 = vsel %vm921, %v2028, 0
        %v2037 = vsel %vm921, %v2030, 0
        %v2039 = vsel %vm921, %v2032, 0
        %v2041 = vsel %vm921, %v2034, 0
        %2043 = vmatprep.subr.mxu0 0.0
        %2044 = vmatpush1.xpose.msra.mxu0 %v2039
        %2045 = vmatprep.subr.mxu0 0.0
        %2046 = vmatpush1.xpose.msra.mxu0 %v2041
        %2047 = vmatprep.subr.mxu0 0.0
        %2048 = vmatpush1.xpose.msra.mxu0 0.0
        %2049 = vmatprep.subr.mxu0 0.0
        %2050 = vmatpush1.xpose.msra.mxu0 0.0
        %2051 = vmatprep.subr.mxu0 0.0
        %2052 = vmatpush1.xpose.msra.mxu0 0.0
        %2053 = vmatprep.subr.mxu0 0.0
        %2054 = vmatpush1.xpose.msra.mxu0 0.0
        %2055 = vmatprep.subr.mxu0 0.0
        %2056 = vmatpush1.xpose.msra.mxu0 0.0
        %2057 = vmatprep.subr.mxu0 0.0
        %2058 = vmatpush1.xpose.msra.mxu0 0.0
        %2059 = vmatprep.subr.mxu0 0.0
        %2060 = vmatpush1.xpose.msra.mxu0 0.0
        %2061 = vmatprep.subr.mxu0 0.0
        %2062 = vmatpush1.xpose.msra.mxu0 0.0
        %2063 = vmatprep.subr.mxu0 0.0
        %2064 = vmatpush1.xpose.msra.mxu0 0.0
        %2065 = vmatprep.subr.mxu0 0.0
        %2066 = vmatpush1.xpose.msra.mxu0 0.0
        %2067 = vmatprep.subr.mxu0 0.0
        %2068 = vmatpush1.xpose.msra.mxu0 0.0
        %2069 = vmatprep.subr.mxu0 0.0
        %2070 = vmatpush1.xpose.msra.mxu0 0.0
        %2071 = vmatprep.subr.mxu0 0.0
        %2072 = vmatpush1.xpose.msra.mxu0 0.0
        %2073 = vmatprep.subr.mxu0 0.0
        %2074 = vmatpush1.xpose.msra.mxu0 0.0
        %2075 = vmatprep.subr.mxu0 0.0
        %2076 = vmatpush1.xpose.msra.mxu0 0.0
        %2077 = vmatprep.subr.mxu0 0.0
        %2078 = vmatpush1.xpose.msra.mxu0 0.0
        %2079 = vmatprep.subr.mxu0 0.0
        %2080 = vmatpush1.xpose.msra.mxu0 0.0
        %2081 = vmatprep.subr.mxu0 0.0
        %2082 = vmatpush1.xpose.msra.mxu0 0.0
        %2083 = vmatprep.subr.mxu0 0.0
        %2084 = vmatpush1.xpose.msra.mxu0 0.0
        %2085 = vmatprep.subr.mxu0 0.0
        %2086 = vmatpush1.xpose.msra.mxu0 0.0
        %2087 = vmatprep.subr.mxu0 0.0
        %2088 = vmatpush1.xpose.msra.mxu0 0.0
        %2089 = vmatprep.subr.mxu0 0.0
        %2090 = vmatpush1.xpose.msra.mxu0 0.0
        %2091 = vmatprep.subr.mxu0 0.0
        %2092 = vmatpush1.xpose.msra.mxu0 0.0
        %2093 = vmatprep.subr.mxu0 0.0
        %2094 = vmatpush1.xpose.msra.mxu0 0.0
        %2095 = vmatprep.subr.mxu0 0.0
        %2096 = vmatpush1.xpose.msra.mxu0 0.0
        %2097 = vmatprep.subr.mxu0 0.0
        %2098 = vmatpush1.xpose.msra.mxu0 0.0
        %2099 = vmatprep.subr.mxu0 0.0
        %2100 = vmatpush1.xpose.msra.mxu0 0.0
        %2101 = vmatprep.subr.mxu0 0.0
        %2102 = vmatpush1.xpose.msra.mxu0 0.0
        %2103 = vmatprep.subr.mxu0 0.0
        %2104 = vmatpush1.xpose.msra.mxu0 0.0
        %2105 = vmatprep.subr.mxu0 0.0
        %2106 = vmatpush1.xpose.msra.mxu0 0.0
        %2107 = vmatprep.mubr.f32.mxu0 0.0
        %2108 = vmatmul.mubr.f32.gmra.mrb[0].mxu0 %v2035
        %v2109 = vpop.f32.mrb[0].mxu0
        %v2110 = vadd.f32 0.0, %v2109
        %v2111 = vpop.f32.mrb[0].mxu0
        %2112 = vmatprep.mubr.f32.mxu0 0.0
        %2113 = vmatmul.mubr.f32.gmra.mrb[0].mxu0 %v2037
        %v2114 = vpop.f32.mrb[0].mxu0
        %v2115 = vadd.f32 0.0, %v2114
        %v2116 = vpop.f32.mrb[0].mxu0
        %2117 = vdwg.mxu0
        %v2118 = vsel %vm1485, %v2110, -inf
        %2119 = vmax.xlane.f32.xlu0 %v2118
        %v2120 = vpop.xlane.xlu0 %2119
        %v2121 = vsel %vm1489, %v2115, -inf
        %2122 = vmax.xlane.f32.xlu0 %v2121
        %v2123 = vpop.xlane.xlu0 %2122
        %v2124 = vsub.f32 %v2110, %v2120
        %v2125 = vsub.f32 %v2115, %v2123
        %v2126 = vmul.f32 %v2124, 1.442695
        %v2127 = vpow.pop %v2126
        %v2128 = vmul.f32 %v2125, 1.442695
        %v2129 = vpow.pop %v2128
        %v2130 = vsel %vm1485, %v2127, 0.0
        %2131 = vadd.xlane.f32.xlu0 %v2130
        %v2132 = vpop.xlane.xlu0 %2131
        %v2133 = vsel %vm1489, %v2129, 0.0
        %2134 = vadd.xlane.f32.xlu0 %v2133
        %v2135 = vpop.xlane.xlu0 %2134
        %v2136 = vrcp.pop %v2132
        %v2137 = vrcp.pop %v2135
        %v2138 = vmul.f32 %v2127, %v2136
        %v2139 = vmul.f32 %v2129, %v2137
        %2140 = vrot.lane.b32.xlu0 %v1388, 40
        %v2141 = vpop.permute.xlu0 %2140
        %2142 = vrot.lane.b32.xlu0 %v1393, 40
        %v2143 = vpop.permute.xlu0 %2142
        %v2146 = vsel %vm1485, %v2138, 0
        %v2149 = vsel %vm1485, %v2139, 0
        %v2151 = vsel %vm1520, %v2143, 0
        %2153 = vmatprep.subr.mxu0 0.0
        %2154 = vmatpush1.msra.mxu0 %v2141
        %2155 = vmatprep.subr.mxu0 0.0
        %2156 = vmatpush1.msra.mxu0 %v2151
        %2157 = vmatprep.subr.mxu0 0.0
        %2158 = vmatpush1.msra.mxu0 0.0
        %2159 = vmatprep.subr.mxu0 0.0
        %2160 = vmatpush1.msra.mxu0 0.0
        %2161 = vmatprep.subr.mxu0 0.0
        %2162 = vmatpush1.msra.mxu0 0.0
        %2163 = vmatprep.subr.mxu0 0.0
        %2164 = vmatpush1.msra.mxu0 0.0
        %2165 = vmatprep.subr.mxu0 0.0
        %2166 = vmatpush1.msra.mxu0 0.0
        %2167 = vmatprep.subr.mxu0 0.0
        %2168 = vmatpush1.msra.mxu0 0.0
        %2169 = vmatprep.subr.mxu0 0.0
        %2170 = vmatpush1.msra.mxu0 0.0
        %2171 = vmatprep.subr.mxu0 0.0
        %2172 = vmatpush1.msra.mxu0 0.0
        %2173 = vmatprep.subr.mxu0 0.0
        %2174 = vmatpush1.msra.mxu0 0.0
        %2175 = vmatprep.subr.mxu0 0.0
        %2176 = vmatpush1.msra.mxu0 0.0
        %2177 = vmatprep.subr.mxu0 0.0
        %2178 = vmatpush1.msra.mxu0 0.0
        %2179 = vmatprep.subr.mxu0 0.0
        %2180 = vmatpush1.msra.mxu0 0.0
        %2181 = vmatprep.subr.mxu0 0.0
        %2182 = vmatpush1.msra.mxu0 0.0
        %2183 = vmatprep.subr.mxu0 0.0
        %2184 = vmatpush1.msra.mxu0 0.0
        %2185 = vmatprep.subr.mxu0 0.0
        %2186 = vmatpush1.msra.mxu0 0.0
        %2187 = vmatprep.subr.mxu0 0.0
        %2188 = vmatpush1.msra.mxu0 0.0
        %2189 = vmatprep.subr.mxu0 0.0
        %2190 = vmatpush1.msra.mxu0 0.0
        %2191 = vmatprep.subr.mxu0 0.0
        %2192 = vmatpush1.msra.mxu0 0.0
        %2193 = vmatprep.subr.mxu0 0.0
        %2194 = vmatpush1.msra.mxu0 0.0
        %2195 = vmatprep.subr.mxu0 0.0
        %2196 = vmatpush1.msra.mxu0 0.0
        %2197 = vmatprep.subr.mxu0 0.0
        %2198 = vmatpush1.msra.mxu0 0.0
        %2199 = vmatprep.subr.mxu0 0.0
        %2200 = vmatpush1.msra.mxu0 0.0
        %2201 = vmatprep.subr.mxu0 0.0
        %2202 = vmatpush1.msra.mxu0 0.0
        %2203 = vmatprep.subr.mxu0 0.0
        %2204 = vmatpush1.msra.mxu0 0.0
        %2205 = vmatprep.subr.mxu0 0.0
        %2206 = vmatpush1.msra.mxu0 0.0
        %2207 = vmatprep.subr.mxu0 0.0
        %2208 = vmatpush1.msra.mxu0 0.0
        %2209 = vmatprep.subr.mxu0 0.0
        %2210 = vmatpush1.msra.mxu0 0.0
        %2211 = vmatprep.subr.mxu0 0.0
        %2212 = vmatpush1.msra.mxu0 0.0
        %2213 = vmatprep.subr.mxu0 0.0
        %2214 = vmatpush1.msra.mxu0 0.0
        %2215 = vmatprep.subr.mxu0 0.0
        %2216 = vmatpush1.msra.mxu0 0.0
        %2217 = vmatprep.mubr.f32.mxu0 0.0
        %2218 = vmatmul.mubr.f32.gmra.mrb[0].mxu0 %v2146
        %v2219 = vpop.f32.mrb[0].mxu0
        %v2220 = vadd.f32 0.0, %v2219
        %v2221 = vpop.f32.mrb[0].mxu0
        %2222 = vmatprep.mubr.f32.mxu0 0.0
        %2223 = vmatmul.mubr.f32.gmra.mrb[0].mxu0 %v2149
        %v2224 = vpop.f32.mrb[0].mxu0
        %v2225 = vadd.f32 0.0, %v2224
        %v2226 = vpop.f32.mrb[0].mxu0
        %2227 = vdwg.mxu0
        %2230 = vrot.lane.b32.xlu0 %v2220, 24
        %v2231 = vpop.permute.xlu0 %2230
        %2232 = vrot.lane.b32.xlu0 %v2225, 24
        %v2233 = vpop.permute.xlu0 %2232
        %vm2236 = vcmask 261312
        %2237 = vst.msk [vmem:[#allocation3] sm:$0xff] %vm2236, %v2231
        %vm2238 = vcmask 254144
        %2239 = vst.msk [vmem:[#allocation3 + $0x8] sm:$0x1] %vm2238, %v2233
        %v2240 = vld [vmem:[#allocation3] sm:$0xff]
        %v2241 = vld [vmem:[#allocation3 + $0x8] sm:$0x1]
        %v2242 = vld [vmem:[%s15] sm:$0xff]
        %v2243 = vld [vmem:[%s15 + $0x8] sm:$0xff]
        %v2244 = vld [vmem:[%s15 + $0x10] sm:$0xff]
        %v2245 = vld [vmem:[%s15 + $0x18] sm:$0xff]
        %v2247 = vsel %vm1259, %v2240, 0
        %v2250 = vsel %vm1259, %v2241, 0
        %2252 = vmatprep.subr.mxu0 0.0
        %2253 = vmatpush1.msra.mxu0 %v2242
        %2254 = vmatprep.subr.mxu0 0.0
        %2255 = vmatpush1.msra.mxu0 %v2243
        %2256 = vmatprep.subr.mxu0 0.0
        %2257 = vmatpush1.msra.mxu0 %v2244
        %2258 = vmatprep.subr.mxu0 0.0
        %2259 = vmatpush1.msra.mxu0 %v2245
        %2260 = vmatprep.subr.mxu0 0.0
        %2261 = vmatpush1.msra.mxu0 0.0
        %2262 = vmatprep.subr.mxu0 0.0
        %2263 = vmatpush1.msra.mxu0 0.0
        %2264 = vmatprep.subr.mxu0 0.0
        %2265 = vmatpush1.msra.mxu0 0.0
        %2266 = vmatprep.subr.mxu0 0.0
        %2267 = vmatpush1.msra.mxu0 0.0
        %2268 = vmatprep.subr.mxu0 0.0
        %2269 = vmatpush1.msra.mxu0 0.0
        %2270 = vmatprep.subr.mxu0 0.0
        %2271 = vmatpush1.msra.mxu0 0.0
        %2272 = vmatprep.subr.mxu0 0.0
        %2273 = vmatpush1.msra.mxu0 0.0
        %2274 = vmatprep.subr.mxu0 0.0
        %2275 = vmatpush1.msra.mxu0 0.0
        %2276 = vmatprep.subr.mxu0 0.0
        %2277 = vmatpush1.msra.mxu0 0.0
        %2278 = vmatprep.subr.mxu0 0.0
        %2279 = vmatpush1.msra.mxu0 0.0
        %2280 = vmatprep.subr.mxu0 0.0
        %2281 = vmatpush1.msra.mxu0 0.0
        %2282 = vmatprep.subr.mxu0 0.0
        %2283 = vmatpush1.msra.mxu0 0.0
        %2284 = vmatprep.subr.mxu0 0.0
        %2285 = vmatpush1.msra.mxu0 0.0
        %2286 = vmatprep.subr.mxu0 0.0
        %2287 = vmatpush1.msra.mxu0 0.0
        %2288 = vmatprep.subr.mxu0 0.0
        %2289 = vmatpush1.msra.mxu0 0.0
        %2290 = vmatprep.subr.mxu0 0.0
        %2291 = vmatpush1.msra.mxu0 0.0
        %2292 = vmatprep.subr.mxu0 0.0
        %2293 = vmatpush1.msra.mxu0 0.0
        %2294 = vmatprep.subr.mxu0 0.0
        %2295 = vmatpush1.msra.mxu0 0.0
        %2296 = vmatprep.subr.mxu0 0.0
        %2297 = vmatpush1.msra.mxu0 0.0
        %2298 = vmatprep.subr.mxu0 0.0
        %2299 = vmatpush1.msra.mxu0 0.0
        %2300 = vmatprep.subr.mxu0 0.0
        %2301 = vmatpush1.msra.mxu0 0.0
        %2302 = vmatprep.subr.mxu0 0.0
        %2303 = vmatpush1.msra.mxu0 0.0
        %2304 = vmatprep.subr.mxu0 0.0
        %2305 = vmatpush1.msra.mxu0 0.0
        %2306 = vmatprep.subr.mxu0 0.0
        %2307 = vmatpush1.msra.mxu0 0.0
        %2308 = vmatprep.subr.mxu0 0.0
        %2309 = vmatpush1.msra.mxu0 0.0
        %2310 = vmatprep.subr.mxu0 0.0
        %2311 = vmatpush1.msra.mxu0 0.0
        %2312 = vmatprep.subr.mxu0 0.0
        %2313 = vmatpush1.msra.mxu0 0.0
        %2314 = vmatprep.subr.mxu0 0.0
        %2315 = vmatpush1.msra.mxu0 0.0
        %2316 = vmatprep.mubr.f32.mxu0 0.0
        %2317 = vmatmul.mubr.f32.gmra.mrb[0].mxu0 %v2247
        %v2318 = vpop.f32.mrb[0].mxu0
        %v2319 = vadd.f32 0.0, %v2318
        %v2320 = vpop.f32.mrb[0].mxu0
        %2321 = vmatprep.mubr.f32.mxu0 0.0
        %2322 = vmatmul.mubr.f32.gmra.mrb[0].mxu0 %v2250
        %v2323 = vpop.f32.mrb[0].mxu0
        %v2324 = vadd.f32 0.0, %v2323
        %v2325 = vpop.f32.mrb[0].mxu0
        %2326 = vdwg.mxu0
        %v2327 = vadd.f32 %v1264, %v2319
        %v2328 = vadd.f32 %v1265, %v2324
        %v2329 = vld [vmem:[%s16] sm:$0x1]
        %v2331 = vlaneseq
        %v2332 = vshrl.u32 %v2331, 7
        %v2333 = vsub.s32 0, %v2332
        %v2334 = vrot.slane %v2329, %v2333
        %v2336 = vadd.f32 %v2327, %v2334
        %v2337 = vadd.f32 %v2328, %v2334
        %v2338 = vld [vmem:[%s17] sm:$0x1]
        %v2339 = vld [vmem:[%s18] sm:$0x1]
        %v2340 = vsel %vm1259, %v2336, 0.0
        %2341 = vadd.xlane.f32.xlu0 %v2340
        %v2342 = vpop.xlane.xlu0 %2341
        %v2343 = vsel %vm1262, %v2337, 0.0
        %2344 = vadd.xlane.f32.xlu0 %v2343
        %v2345 = vpop.xlane.xlu0 %2344
        %v2346 = vmul.f32 %v2342, %v1274
        %v2347 = vmul.f32 %v2345, %v1274
        %v2348 = vsub.f32 %v2336, %v2346
        %v2349 = vsub.f32 %v2337, %v2347
        %v2350 = vmul.f32 %v2348, %v2348
        %v2351 = vmul.f32 %v2349, %v2349
        %v2352 = vsel %vm1259, %v2350, 0.0
        %2353 = vadd.xlane.f32.xlu0 %v2352
        %v2354 = vpop.xlane.xlu0 %2353
        %v2355 = vsel %vm1262, %v2351, 0.0
        %2356 = vadd.xlane.f32.xlu0 %v2355
        %v2357 = vpop.xlane.xlu0 %2356
        %v2358 = vmul.f32 %v2354, %v1274
        %v2359 = vmul.f32 %v2357, %v1274
        %v2360 = vadd.f32 %v2358, 1e-05
        %v2361 = vadd.f32 %v2359, 1e-05
        %v2362 = vrsqrt.pop %v2360
        %v2363 = vrsqrt.pop %v2361
        %v2364 = vmul.f32 %v2348, %v2362
        %v2365 = vmul.f32 %v2349, %v2363
        %v2367 = vlaneseq
        %v2368 = vshrl.u32 %v2367, 7
        %v2369 = vsub.s32 0, %v2368
        %v2370 = vrot.slane %v2338, %v2369
        %v2372 = vmul.f32 %v2364, %v2370
        %v2373 = vmul.f32 %v2365, %v2370
        %v2375 = vlaneseq
        %v2376 = vshrl.u32 %v2375, 7
        %v2377 = vsub.s32 0, %v2376
        %v2378 = vrot.slane %v2339, %v2377
        %v2380 = vadd.f32 %v2372, %v2378
        %v2381 = vadd.f32 %v2373, %v2378
        %v2382 = vld [vmem:[%s19] sm:$0xff]
        %v2383 = vld [vmem:[%s19 + $0x8] sm:$0xff]
        %v2384 = vld [vmem:[%s19 + $0x10] sm:$0xff]
        %v2385 = vld [vmem:[%s19 + $0x18] sm:$0xff]
        %v2386 = vld [vmem:[%s20] sm:$0x1]
        %v2388 = vlaneseq
        %v2389 = vshrl.u32 %v2388, 7
        %v2390 = vsub.s32 0, %v2389
        %v2391 = vrot.slane %v2386, %v2390
        %v2394 = vsel %vm1259, %v2380, 0
        %v2397 = vsel %vm1259, %v2381, 0
        %2399 = vmatprep.subr.mxu0 0.0
        %2400 = vmatpush1.msra.mxu0 %v2382
        %2401 = vmatprep.subr.mxu0 0.0
        %2402 = vmatpush1.msra.mxu0 %v2383
        %2403 = vmatprep.subr.mxu0 0.0
        %2404 = vmatpush1.msra.mxu0 %v2384
        %2405 = vmatprep.subr.mxu0 0.0
        %2406 = vmatpush1.msra.mxu0 %v2385
        %2407 = vmatprep.subr.mxu0 0.0
        %2408 = vmatpush1.msra.mxu0 0.0
        %2409 = vmatprep.subr.mxu0 0.0
        %2410 = vmatpush1.msra.mxu0 0.0
        %2411 = vmatprep.subr.mxu0 0.0
        %2412 = vmatpush1.msra.mxu0 0.0
        %2413 = vmatprep.subr.mxu0 0.0
        %2414 = vmatpush1.msra.mxu0 0.0
        %2415 = vmatprep.subr.mxu0 0.0
        %2416 = vmatpush1.msra.mxu0 0.0
        %2417 = vmatprep.subr.mxu0 0.0
        %2418 = vmatpush1.msra.mxu0 0.0
        %2419 = vmatprep.subr.mxu0 0.0
        %2420 = vmatpush1.msra.mxu0 0.0
        %2421 = vmatprep.subr.mxu0 0.0
        %2422 = vmatpush1.msra.mxu0 0.0
        %2423 = vmatprep.subr.mxu0 0.0
        %2424 = vmatpush1.msra.mxu0 0.0
        %2425 = vmatprep.subr.mxu0 0.0
        %2426 = vmatpush1.msra.mxu0 0.0
        %2427 = vmatprep.subr.mxu0 0.0
        %2428 = vmatpush1.msra.mxu0 0.0
        %2429 = vmatprep.subr.mxu0 0.0
        %2430 = vmatpush1.msra.mxu0 0.0
        %2431 = vmatprep.subr.mxu0 0.0
        %2432 = vmatpush1.msra.mxu0 0.0
        %2433 = vmatprep.subr.mxu0 0.0
        %2434 = vmatpush1.msra.mxu0 0.0
        %2435 = vmatprep.subr.mxu0 0.0
        %2436 = vmatpush1.msra.mxu0 0.0
        %2437 = vmatprep.subr.mxu0 0.0
        %2438 = vmatpush1.msra.mxu0 0.0
        %2439 = vmatprep.subr.mxu0 0.0
        %2440 = vmatpush1.msra.mxu0 0.0
        %2441 = vmatprep.subr.mxu0 0.0
        %2442 = vmatpush1.msra.mxu0 0.0
        %2443 = vmatprep.subr.mxu0 0.0
        %2444 = vmatpush1.msra.mxu0 0.0
        %2445 = vmatprep.subr.mxu0 0.0
        %2446 = vmatpush1.msra.mxu0 0.0
        %2447 = vmatprep.subr.mxu0 0.0
        %2448 = vmatpush1.msra.mxu0 0.0
        %2449 = vmatprep.subr.mxu0 0.0
        %2450 = vmatpush1.msra.mxu0 0.0
        %2451 = vmatprep.subr.mxu0 0.0
        %2452 = vmatpush1.msra.mxu0 0.0
        %2453 = vmatprep.subr.mxu0 0.0
        %2454 = vmatpush1.msra.mxu0 0.0
        %2455 = vmatprep.subr.mxu0 0.0
        %2456 = vmatpush1.msra.mxu0 0.0
        %2457 = vmatprep.subr.mxu0 0.0
        %2458 = vmatpush1.msra.mxu0 0.0
        %2459 = vmatprep.subr.mxu0 0.0
        %2460 = vmatpush1.msra.mxu0 0.0
        %2461 = vmatprep.subr.mxu0 0.0
        %2462 = vmatpush1.msra.mxu0 0.0
        %2463 = vmatprep.mubr.f32.mxu0 0.0
        %2464 = vmatmul.mubr.f32.gmra.mrb[0].mxu0 %v2394
        %v2465 = vpop.f32.mrb[0].mxu0
        %v2466 = vadd.f32 %v2391, %v2465
        %v2467 = vpop.f32.mrb[0].mxu0
        %2468 = vmatprep.mubr.f32.mxu0 0.0
        %2469 = vmatmul.mubr.f32.gmra.mrb[0].mxu0 %v2397
        %v2470 = vpop.f32.mrb[0].mxu0
        %v2471 = vadd.f32 %v2391, %v2470
        %v2472 = vpop.f32.mrb[0].mxu0
        %2473 = vdwg.mxu0
        %v2474 = vmul.f32 %v2466, 0.5
        %v2475 = vmul.f32 %v2471, 0.5
        %v2476 = vmul.f32 %v2466, 0.044715
        %v2477 = vmul.f32 %v2471, 0.044715
        %v2478 = vmul.f32 %v2476, %v2466
        %v2479 = vmul.f32 %v2477, %v2471
        %v2480 = vmul.f32 %v2478, %v2466
        %v2481 = vmul.f32 %v2479, %v2471
        %v2482 = vadd.f32 %v2466, %v2480
        %v2483 = vadd.f32 %v2471, %v2481
        %v2484 = vmul.f32 %v2482, 0.7978846
        %v2485 = vmul.f32 %v2483, 0.7978846
        %v2486 = vtanh.pop %v2484
        %v2487 = vtanh.pop %v2485
        %v2488 = vadd.f32 %v2486, 1.0
        %v2489 = vadd.f32 %v2487, 1.0
        %v2490 = vmul.f32 %v2474, %v2488
        %v2491 = vmul.f32 %v2475, %v2489
        %v2492 = vld [vmem:[%s21] sm:$0xff]
        %v2493 = vld [vmem:[%s21 + $0x8] sm:$0xff]
        %v2494 = vld [vmem:[%s21 + $0x10] sm:$0xff]
        %v2495 = vld [vmem:[%s21 + $0x18] sm:$0xff]
        %v2496 = vld [vmem:[%s21 + $0x20] sm:$0xff]
        %v2497 = vld [vmem:[%s21 + $0x28] sm:$0xff]
        %v2498 = vld [vmem:[%s21 + $0x30] sm:$0xff]
        %v2499 = vld [vmem:[%s21 + $0x38] sm:$0xff]
        %vm2500 = vcmask 523264
        %v2502 = vsel %vm2500, %v2490, 0
        %v2505 = vsel %vm2500, %v2491, 0
        %2507 = vmatprep.subr.mxu0 0.0
        %2508 = vmatpush1.msra.mxu0 %v2492
        %2509 = vmatprep.subr.mxu0 0.0
        %2510 = vmatpush1.msra.mxu0 %v2493
        %2511 = vmatprep.subr.mxu0 0.0
        %2512 = vmatpush1.msra.mxu0 %v2494
        %2513 = vmatprep.subr.mxu0 0.0
        %2514 = vmatpush1.msra.mxu0 %v2495
        %2515 = vmatprep.subr.mxu0 0.0
        %2516 = vmatpush1.msra.mxu0 %v2496
        %2517 = vmatprep.subr.mxu0 0.0
        %2518 = vmatpush1.msra.mxu0 %v2497
        %2519 = vmatprep.subr.mxu0 0.0
        %2520 = vmatpush1.msra.mxu0 %v2498
        %2521 = vmatprep.subr.mxu0 0.0
        %2522 = vmatpush1.msra.mxu0 %v2499
        %2523 = vmatprep.subr.mxu0 0.0
        %2524 = vmatpush1.msra.mxu0 0.0
        %2525 = vmatprep.subr.mxu0 0.0
        %2526 = vmatpush1.msra.mxu0 0.0
        %2527 = vmatprep.subr.mxu0 0.0
        %2528 = vmatpush1.msra.mxu0 0.0
        %2529 = vmatprep.subr.mxu0 0.0
        %2530 = vmatpush1.msra.mxu0 0.0
        %2531 = vmatprep.subr.mxu0 0.0
        %2532 = vmatpush1.msra.mxu0 0.0
        %2533 = vmatprep.subr.mxu0 0.0
        %2534 = vmatpush1.msra.mxu0 0.0
        %2535 = vmatprep.subr.mxu0 0.0
        %2536 = vmatpush1.msra.mxu0 0.0
        %2537 = vmatprep.subr.mxu0 0.0
        %2538 = vmatpush1.msra.mxu0 0.0
        %2539 = vmatprep.subr.mxu0 0.0
        %2540 = vmatpush1.msra.mxu0 0.0
        %2541 = vmatprep.subr.mxu0 0.0
        %2542 = vmatpush1.msra.mxu0 0.0
        %2543 = vmatprep.subr.mxu0 0.0
        %2544 = vmatpush1.msra.mxu0 0.0
        %2545 = vmatprep.subr.mxu0 0.0
        %2546 = vmatpush1.msra.mxu0 0.0
        %2547 = vmatprep.subr.mxu0 0.0
        %2548 = vmatpush1.msra.mxu0 0.0
        %2549 = vmatprep.subr.mxu0 0.0
        %2550 = vmatpush1.msra.mxu0 0.0
        %2551 = vmatprep.subr.mxu0 0.0
        %2552 = vmatpush1.msra.mxu0 0.0
        %2553 = vmatprep.subr.mxu0 0.0
        %2554 = vmatpush1.msra.mxu0 0.0
        %2555 = vmatprep.subr.mxu0 0.0
        %2556 = vmatpush1.msra.mxu0 0.0
        %2557 = vmatprep.subr.mxu0 0.0
        %2558 = vmatpush1.msra.mxu0 0.0
        %2559 = vmatprep.subr.mxu0 0.0
        %2560 = vmatpush1.msra.mxu0 0.0
        %2561 = vmatprep.subr.mxu0 0.0
        %2562 = vmatpush1.msra.mxu0 0.0
        %2563 = vmatprep.subr.mxu0 0.0
        %2564 = vmatpush1.msra.mxu0 0.0
        %2565 = vmatprep.subr.mxu0 0.0
        %2566 = vmatpush1.msra.mxu0 0.0
        %2567 = vmatprep.subr.mxu0 0.0
        %2568 = vmatpush1.msra.mxu0 0.0
        %2569 = vmatprep.subr.mxu0 0.0
        %2570 = vmatpush1.msra.mxu0 0.0
        %2571 = vmatprep.mubr.f32.mxu0 0.0
        %2572 = vmatmul.mubr.f32.gmra.mrb[0].mxu0 %v2502
        %v2573 = vpop.f32.mrb[0].mxu0
        %v2574 = vadd.f32 0.0, %v2573
        %v2575 = vpop.f32.mrb[0].mxu0
        %2576 = vmatprep.mubr.f32.mxu0 0.0
        %2577 = vmatmul.mubr.f32.gmra.mrb[0].mxu0 %v2505
        %v2578 = vpop.f32.mrb[0].mxu0
        %v2579 = vadd.f32 0.0, %v2578
        %v2580 = vpop.f32.mrb[0].mxu0
        %2581 = vdwg.mxu0
        %v2582 = vadd.f32 %v2336, %v2574
        %v2583 = vadd.f32 %v2337, %v2579
        %v2584 = vld [vmem:[%s22] sm:$0x1]
        %v2586 = vlaneseq
        %v2587 = vshrl.u32 %v2586, 7
        %v2588 = vsub.s32 0, %v2587
        %v2589 = vrot.slane %v2584, %v2588
        %v2591 = vadd.f32 %v2582, %v2589
        %v2592 = vadd.f32 %v2583, %v2589
        %s2593 = scalar_lea.vmem %s12, 1
        %v2594 = vld [vmem:[%s2593] sm:$0x1]
        %s2595 = scalar_lea.vmem %s13, 1
        %v2596 = vld [vmem:[%s2595] sm:$0x1]
        %v2597 = vsel %vm1259, %v2591, 0.0
        %2598 = vadd.xlane.f32.xlu0 %v2597
        %v2599 = vpop.xlane.xlu0 %2598
        %v2600 = vsel %vm1262, %v2592, 0.0
        %2601 = vadd.xlane.f32.xlu0 %v2600
        %v2602 = vpop.xlane.xlu0 %2601
        %v2603 = vmul.f32 %v2599, %v1274
        %v2604 = vmul.f32 %v2602, %v1274
        %v2605 = vsub.f32 %v2591, %v2603
        %v2606 = vsub.f32 %v2592, %v2604
        %v2607 = vmul.f32 %v2605, %v2605
        %v2608 = vmul.f32 %v2606, %v2606
        %v2609 = vsel %vm1259, %v2607, 0.0
        %2610 = vadd.xlane.f32.xlu0 %v2609
        %v2611 = vpop.xlane.xlu0 %2610
        %v2612 = vsel %vm1262, %v2608, 0.0
        %2613 = vadd.xlane.f32.xlu0 %v2612
        %v2614 = vpop.xlane.xlu0 %2613
        %v2615 = vmul.f32 %v2611, %v1274
        %v2616 = vmul.f32 %v2614, %v1274
        %v2617 = vadd.f32 %v2615, 1e-05
        %v2618 = vadd.f32 %v2616, 1e-05
        %v2619 = vrsqrt.pop %v2617
        %v2620 = vrsqrt.pop %v2618
        %v2621 = vmul.f32 %v2605, %v2619
        %v2622 = vmul.f32 %v2606, %v2620
        %v2624 = vlaneseq
        %v2625 = vshrl.u32 %v2624, 7
        %v2626 = vsub.s32 0, %v2625
        %v2627 = vrot.slane %v2594, %v2626
        %v2629 = vmul.f32 %v2621, %v2627
        %v2630 = vmul.f32 %v2622, %v2627
        %v2632 = vlaneseq
        %v2633 = vshrl.u32 %v2632, 7
        %v2634 = vsub.s32 0, %v2633
        %v2635 = vrot.slane %v2596, %v2634
        %v2637 = vadd.f32 %v2629, %v2635
        %v2638 = vadd.f32 %v2630, %v2635
        %s2639 = scalar_lea.vmem %s14, 32
        %v2640 = vld [vmem:[%s2639] sm:$0xff]
        %v2641 = vld [vmem:[%s2639 + $0x8] sm:$0xff]
        %v2642 = vld [vmem:[%s2639 + $0x10] sm:$0xff]
        %v2643 = vld [vmem:[%s2639 + $0x18] sm:$0xff]
        %v2645 = vsel %vm1259, %v2637, 0
        %v2648 = vsel %vm1259, %v2638, 0
        %2650 = vmatprep.subr.mxu0 0.0
        %2651 = vmatpush1.msra.mxu0 %v2640
        %2652 = vmatprep.subr.mxu0 0.0
        %2653 = vmatpush1.msra.mxu0 %v2641
        %2654 = vmatprep.subr.mxu0 0.0
        %2655 = vmatpush1.msra.mxu0 %v2642
        %2656 = vmatprep.subr.mxu0 0.0
        %2657 = vmatpush1.msra.mxu0 %v2643
        %2658 = vmatprep.subr.mxu0 0.0
        %2659 = vmatpush1.msra.mxu0 0.0
        %2660 = vmatprep.subr.mxu0 0.0
        %2661 = vmatpush1.msra.mxu0 0.0
        %2662 = vmatprep.subr.mxu0 0.0
        %2663 = vmatpush1.msra.mxu0 0.0
        %2664 = vmatprep.subr.mxu0 0.0
        %2665 = vmatpush1.msra.mxu0 0.0
        %2666 = vmatprep.subr.mxu0 0.0
        %2667 = vmatpush1.msra.mxu0 0.0
        %2668 = vmatprep.subr.mxu0 0.0
        %2669 = vmatpush1.msra.mxu0 0.0
        %2670 = vmatprep.subr.mxu0 0.0
        %2671 = vmatpush1.msra.mxu0 0.0
        %2672 = vmatprep.subr.mxu0 0.0
        %2673 = vmatpush1.msra.mxu0 0.0
        %2674 = vmatprep.subr.mxu0 0.0
        %2675 = vmatpush1.msra.mxu0 0.0
        %2676 = vmatprep.subr.mxu0 0.0
        %2677 = vmatpush1.msra.mxu0 0.0
        %2678 = vmatprep.subr.mxu0 0.0
        %2679 = vmatpush1.msra.mxu0 0.0
        %2680 = vmatprep.subr.mxu0 0.0
        %2681 = vmatpush1.msra.mxu0 0.0
        %2682 = vmatprep.subr.mxu0 0.0
        %2683 = vmatpush1.msra.mxu0 0.0
        %2684 = vmatprep.subr.mxu0 0.0
        %2685 = vmatpush1.msra.mxu0 0.0
        %2686 = vmatprep.subr.mxu0 0.0
        %2687 = vmatpush1.msra.mxu0 0.0
        %2688 = vmatprep.subr.mxu0 0.0
        %2689 = vmatpush1.msra.mxu0 0.0
        %2690 = vmatprep.subr.mxu0 0.0
        %2691 = vmatpush1.msra.mxu0 0.0
        %2692 = vmatprep.subr.mxu0 0.0
        %2693 = vmatpush1.msra.mxu0 0.0
        %2694 = vmatprep.subr.mxu0 0.0
        %2695 = vmatpush1.msra.mxu0 0.0
        %2696 = vmatprep.subr.mxu0 0.0
        %2697 = vmatpush1.msra.mxu0 0.0
        %2698 = vmatprep.subr.mxu0 0.0
        %2699 = vmatpush1.msra.mxu0 0.0
        %2700 = vmatprep.subr.mxu0 0.0
        %2701 = vmatpush1.msra.mxu0 0.0
        %2702 = vmatprep.subr.mxu0 0.0
        %2703 = vmatpush1.msra.mxu0 0.0
        %2704 = vmatprep.subr.mxu0 0.0
        %2705 = vmatpush1.msra.mxu0 0.0
        %2706 = vmatprep.subr.mxu0 0.0
        %2707 = vmatpush1.msra.mxu0 0.0
        %2708 = vmatprep.subr.mxu0 0.0
        %2709 = vmatpush1.msra.mxu0 0.0
        %2710 = vmatprep.subr.mxu0 0.0
        %2711 = vmatpush1.msra.mxu0 0.0
        %2712 = vmatprep.subr.mxu0 0.0
        %2713 = vmatpush1.msra.mxu0 0.0
        %2714 = vmatprep.mubr.f32.mxu0 0.0
        %2715 = vmatmul.mubr.f32.gmra.mrb[0].mxu0 %v2645
        %v2716 = vpop.f32.mrb[0].mxu0
        %v2717 = vadd.f32 0.0, %v2716
        %v2718 = vpop.f32.mrb[0].mxu0
        %2719 = vmatprep.mubr.f32.mxu0 0.0
        %2720 = vmatmul.mubr.f32.gmra.mrb[0].mxu0 %v2648
        %v2721 = vpop.f32.mrb[0].mxu0
        %v2722 = vadd.f32 0.0, %v2721
        %v2723 = vpop.f32.mrb[0].mxu0
        %2724 = vdwg.mxu0
        %2727 = vrot.lane.b32.xlu0 %v2717, 96
        %v2728 = vpop.permute.xlu0 %2727
        %2729 = vrot.lane.b32.xlu0 %v2722, 96
        %v2730 = vpop.permute.xlu0 %2729
        %v2731 = vsel %vm921, %v2717, 0
        %v2733 = vsel %vm921, %v2722, 0
        %v2735 = vsel %vm921, %v2728, 0
        %v2737 = vsel %vm921, %v2730, 0
        %2739 = vmatprep.subr.mxu0 0.0
        %2740 = vmatpush1.xpose.msra.mxu0 %v2735
        %2741 = vmatprep.subr.mxu0 0.0
        %2742 = vmatpush1.xpose.msra.mxu0 %v2737
        %2743 = vmatprep.subr.mxu0 0.0
        %2744 = vmatpush1.xpose.msra.mxu0 0.0
        %2745 = vmatprep.subr.mxu0 0.0
        %2746 = vmatpush1.xpose.msra.mxu0 0.0
        %2747 = vmatprep.subr.mxu0 0.0
        %2748 = vmatpush1.xpose.msra.mxu0 0.0
        %2749 = vmatprep.subr.mxu0 0.0
        %2750 = vmatpush1.xpose.msra.mxu0 0.0
        %2751 = vmatprep.subr.mxu0 0.0
        %2752 = vmatpush1.xpose.msra.mxu0 0.0
        %2753 = vmatprep.subr.mxu0 0.0
        %2754 = vmatpush1.xpose.msra.mxu0 0.0
        %2755 = vmatprep.subr.mxu0 0.0
        %2756 = vmatpush1.xpose.msra.mxu0 0.0
        %2757 = vmatprep.subr.mxu0 0.0
        %2758 = vmatpush1.xpose.msra.mxu0 0.0
        %2759 = vmatprep.subr.mxu0 0.0
        %2760 = vmatpush1.xpose.msra.mxu0 0.0
        %2761 = vmatprep.subr.mxu0 0.0
        %2762 = vmatpush1.xpose.msra.mxu0 0.0
        %2763 = vmatprep.subr.mxu0 0.0
        %2764 = vmatpush1.xpose.msra.mxu0 0.0
        %2765 = vmatprep.subr.mxu0 0.0
        %2766 = vmatpush1.xpose.msra.mxu0 0.0
        %2767 = vmatprep.subr.mxu0 0.0
        %2768 = vmatpush1.xpose.msra.mxu0 0.0
        %2769 = vmatprep.subr.mxu0 0.0
        %2770 = vmatpush1.xpose.msra.mxu0 0.0
        %2771 = vmatprep.subr.mxu0 0.0
        %2772 = vmatpush1.xpose.msra.mxu0 0.0
        %2773 = vmatprep.subr.mxu0 0.0
        %2774 = vmatpush1.xpose.msra.mxu0 0.0
        %2775 = vmatprep.subr.mxu0 0.0
        %2776 = vmatpush1.xpose.msra.mxu0 0.0
        %2777 = vmatprep.subr.mxu0 0.0
        %2778 = vmatpush1.xpose.msra.mxu0 0.0
        %2779 = vmatprep.subr.mxu0 0.0
        %2780 = vmatpush1.xpose.msra.mxu0 0.0
        %2781 = vmatprep.subr.mxu0 0.0
        %2782 = vmatpush1.xpose.msra.mxu0 0.0
        %2783 = vmatprep.subr.mxu0 0.0
        %2784 = vmatpush1.xpose.msra.mxu0 0.0
        %2785 = vmatprep.subr.mxu0 0.0
        %2786 = vmatpush1.xpose.msra.mxu0 0.0
        %2787 = vmatprep.subr.mxu0 0.0
        %2788 = vmatpush1.xpose.msra.mxu0 0.0
        %2789 = vmatprep.subr.mxu0 0.0
        %2790 = vmatpush1.xpose.msra.mxu0 0.0
        %2791 = vmatprep.subr.mxu0 0.0
        %2792 = vmatpush1.xpose.msra.mxu0 0.0
        %2793 = vmatprep.subr.mxu0 0.0
        %2794 = vmatpush1.xpose.msra.mxu0 0.0
        %2795 = vmatprep.subr.mxu0 0.0
        %2796 = vmatpush1.xpose.msra.mxu0 0.0
        %2797 = vmatprep.subr.mxu0 0.0
        %2798 = vmatpush1.xpose.msra.mxu0 0.0
        %2799 = vmatprep.subr.mxu0 0.0
        %2800 = vmatpush1.xpose.msra.mxu0 0.0
        %2801 = vmatprep.subr.mxu0 0.0
        %2802 = vmatpush1.xpose.msra.mxu0 0.0
        %2803 = vmatprep.mubr.f32.mxu0 0.0
        %2804 = vmatmul.mubr.f32.gmra.mrb[0].mxu0 %v2731
        %v2805 = vpop.f32.mrb[0].mxu0
        %v2806 = vadd.f32 0.0, %v2805
        %v2807 = vpop.f32.mrb[0].mxu0
        %2808 = vmatprep.mubr.f32.mxu0 0.0
        %2809 = vmatmul.mubr.f32.gmra.mrb[0].mxu0 %v2733
        %v2810 = vpop.f32.mrb[0].mxu0
        %v2811 = vadd.f32 0.0, %v2810
        %v2812 = vpop.f32.mrb[0].mxu0
        %2813 = vdwg.mxu0
        %v2814 = vsel %vm1485, %v2806, -inf
        %2815 = vmax.xlane.f32.xlu0 %v2814
        %v2816 = vpop.xlane.xlu0 %2815
        %v2817 = vsel %vm1489, %v2811, -inf
        %2818 = vmax.xlane.f32.xlu0 %v2817
        %v2819 = vpop.xlane.xlu0 %2818
        %v2820 = vsub.f32 %v2806, %v2816
        %v2821 = vsub.f32 %v2811, %v2819
        %v2822 = vmul.f32 %v2820, 1.442695
        %v2823 = vpow.pop %v2822
        %v2824 = vmul.f32 %v2821, 1.442695
        %v2825 = vpow.pop %v2824
        %v2826 = vsel %vm1485, %v2823, 0.0
        %2827 = vadd.xlane.f32.xlu0 %v2826
        %v2828 = vpop.xlane.xlu0 %2827
        %v2829 = vsel %vm1489, %v2825, 0.0
        %2830 = vadd.xlane.f32.xlu0 %v2829
        %v2831 = vpop.xlane.xlu0 %2830
        %v2832 = vrcp.pop %v2828
        %v2833 = vrcp.pop %v2831
        %v2834 = vmul.f32 %v2823, %v2832
        %v2835 = vmul.f32 %v2825, %v2833
        %2836 = vrot.lane.b32.xlu0 %v2717, 64
        %v2837 = vpop.permute.xlu0 %2836
        %2838 = vrot.lane.b32.xlu0 %v2722, 64
        %v2839 = vpop.permute.xlu0 %2838
        %v2842 = vsel %vm1485, %v2834, 0
        %v2845 = vsel %vm1485, %v2835, 0
        %v2847 = vsel %vm1520, %v2839, 0
        %2849 = vmatprep.subr.mxu0 0.0
        %2850 = vmatpush1.msra.mxu0 %v2837
        %2851 = vmatprep.subr.mxu0 0.0
        %2852 = vmatpush1.msra.mxu0 %v2847
        %2853 = vmatprep.subr.mxu0 0.0
        %2854 = vmatpush1.msra.mxu0 0.0
        %2855 = vmatprep.subr.mxu0 0.0
        %2856 = vmatpush1.msra.mxu0 0.0
        %2857 = vmatprep.subr.mxu0 0.0
        %2858 = vmatpush1.msra.mxu0 0.0
        %2859 = vmatprep.subr.mxu0 0.0
        %2860 = vmatpush1.msra.mxu0 0.0
        %2861 = vmatprep.subr.mxu0 0.0
        %2862 = vmatpush1.msra.mxu0 0.0
        %2863 = vmatprep.subr.mxu0 0.0
        %2864 = vmatpush1.msra.mxu0 0.0
        %2865 = vmatprep.subr.mxu0 0.0
        %2866 = vmatpush1.msra.mxu0 0.0
        %2867 = vmatprep.subr.mxu0 0.0
        %2868 = vmatpush1.msra.mxu0 0.0
        %2869 = vmatprep.subr.mxu0 0.0
        %2870 = vmatpush1.msra.mxu0 0.0
        %2871 = vmatprep.subr.mxu0 0.0
        %2872 = vmatpush1.msra.mxu0 0.0
        %2873 = vmatprep.subr.mxu0 0.0
        %2874 = vmatpush1.msra.mxu0 0.0
        %2875 = vmatprep.subr.mxu0 0.0
        %2876 = vmatpush1.msra.mxu0 0.0
        %2877 = vmatprep.subr.mxu0 0.0
        %2878 = vmatpush1.msra.mxu0 0.0
        %2879 = vmatprep.subr.mxu0 0.0
        %2880 = vmatpush1.msra.mxu0 0.0
        %2881 = vmatprep.subr.mxu0 0.0
        %2882 = vmatpush1.msra.mxu0 0.0
        %2883 = vmatprep.subr.mxu0 0.0
        %2884 = vmatpush1.msra.mxu0 0.0
        %2885 = vmatprep.subr.mxu0 0.0
        %2886 = vmatpush1.msra.mxu0 0.0
        %2887 = vmatprep.subr.mxu0 0.0
        %2888 = vmatpush1.msra.mxu0 0.0
        %2889 = vmatprep.subr.mxu0 0.0
        %2890 = vmatpush1.msra.mxu0 0.0
        %2891 = vmatprep.subr.mxu0 0.0
        %2892 = vmatpush1.msra.mxu0 0.0
        %2893 = vmatprep.subr.mxu0 0.0
        %2894 = vmatpush1.msra.mxu0 0.0
        %2895 = vmatprep.subr.mxu0 0.0
        %2896 = vmatpush1.msra.mxu0 0.0
        %2897 = vmatprep.subr.mxu0 0.0
        %2898 = vmatpush1.msra.mxu0 0.0
        %2899 = vmatprep.subr.mxu0 0.0
        %2900 = vmatpush1.msra.mxu0 0.0
        %2901 = vmatprep.subr.mxu0 0.0
        %2902 = vmatpush1.msra.mxu0 0.0
        %2903 = vmatprep.subr.mxu0 0.0
        %2904 = vmatpush1.msra.mxu0 0.0
        %2905 = vmatprep.subr.mxu0 0.0
        %2906 = vmatpush1.msra.mxu0 0.0
        %2907 = vmatprep.subr.mxu0 0.0
        %2908 = vmatpush1.msra.mxu0 0.0
        %2909 = vmatprep.subr.mxu0 0.0
        %2910 = vmatpush1.msra.mxu0 0.0
        %2911 = vmatprep.subr.mxu0 0.0
        %2912 = vmatpush1.msra.mxu0 0.0
        %2913 = vmatprep.mubr.f32.mxu0 0.0
        %2914 = vmatmul.mubr.f32.gmra.mrb[0].mxu0 %v2842
        %v2915 = vpop.f32.mrb[0].mxu0
        %v2916 = vadd.f32 0.0, %v2915
        %v2917 = vpop.f32.mrb[0].mxu0
        %2918 = vmatprep.mubr.f32.mxu0 0.0
        %2919 = vmatmul.mubr.f32.gmra.mrb[0].mxu0 %v2845
        %v2920 = vpop.f32.mrb[0].mxu0
        %v2921 = vadd.f32 0.0, %v2920
        %v2922 = vpop.f32.mrb[0].mxu0
        %2923 = vdwg.mxu0
        %2924 = vst.msk [vmem:[#allocation3] sm:$0xff] %vm921, %v2916
        %2925 = vst.msk [vmem:[#allocation3 + $0x8] sm:$0x1] %vm1599, %v2921
        %2926 = vrot.lane.b32.xlu0 %v2717, 120
        %v2927 = vpop.permute.xlu0 %2926
        %2928 = vrot.lane.b32.xlu0 %v2722, 120
        %v2929 = vpop.permute.xlu0 %2928
        %2930 = vrot.lane.b32.xlu0 %v2717, 88
        %v2931 = vpop.permute.xlu0 %2930
        %2932 = vrot.lane.b32.xlu0 %v2722, 88
        %v2933 = vpop.permute.xlu0 %2932
        %v2934 = vsel %vm921, %v2927, 0
        %v2936 = vsel %vm921, %v2929, 0
        %v2938 = vsel %vm921, %v2931, 0
        %v2940 = vsel %vm921, %v2933, 0
        %2942 = vmatprep.subr.mxu0 0.0
        %2943 = vmatpush1.xpose.msra.mxu0 %v2938
        %2944 = vmatprep.subr.mxu0 0.0
        %2945 = vmatpush1.xpose.msra.mxu0 %v2940
        %2946 = vmatprep.subr.mxu0 0.0
        %2947 = vmatpush1.xpose.msra.mxu0 0.0
        %2948 = vmatprep.subr.mxu0 0.0
        %2949 = vmatpush1.xpose.msra.mxu0 0.0
        %2950 = vmatprep.subr.mxu0 0.0
        %2951 = vmatpush1.xpose.msra.mxu0 0.0
        %2952 = vmatprep.subr.mxu0 0.0
        %2953 = vmatpush1.xpose.msra.mxu0 0.0
        %2954 = vmatprep.subr.mxu0 0.0
        %2955 = vmatpush1.xpose.msra.mxu0 0.0
        %2956 = vmatprep.subr.mxu0 0.0
        %2957 = vmatpush1.xpose.msra.mxu0 0.0
        %2958 = vmatprep.subr.mxu0 0.0
        %2959 = vmatpush1.xpose.msra.mxu0 0.0
        %2960 = vmatprep.subr.mxu0 0.0
        %2961 = vmatpush1.xpose.msra.mxu0 0.0
        %2962 = vmatprep.subr.mxu0 0.0
        %2963 = vmatpush1.xpose.msra.mxu0 0.0
        %2964 = vmatprep.subr.mxu0 0.0
        %2965 = vmatpush1.xpose.msra.mxu0 0.0
        %2966 = vmatprep.subr.mxu0 0.0
        %2967 = vmatpush1.xpose.msra.mxu0 0.0
        %2968 = vmatprep.subr.mxu0 0.0
        %2969 = vmatpush1.xpose.msra.mxu0 0.0
        %2970 = vmatprep.subr.mxu0 0.0
        %2971 = vmatpush1.xpose.msra.mxu0 0.0
        %2972 = vmatprep.subr.mxu0 0.0
        %2973 = vmatpush1.xpose.msra.mxu0 0.0
        %2974 = vmatprep.subr.mxu0 0.0
        %2975 = vmatpush1.xpose.msra.mxu0 0.0
        %2976 = vmatprep.subr.mxu0 0.0
        %2977 = vmatpush1.xpose.msra.mxu0 0.0
        %2978 = vmatprep.subr.mxu0 0.0
        %2979 = vmatpush1.xpose.msra.mxu0 0.0
        %2980 = vmatprep.subr.mxu0 0.0
        %2981 = vmatpush1.xpose.msra.mxu0 0.0
        %2982 = vmatprep.subr.mxu0 0.0
        %2983 = vmatpush1.xpose.msra.mxu0 0.0
        %2984 = vmatprep.subr.mxu0 0.0
        %2985 = vmatpush1.xpose.msra.mxu0 0.0
        %2986 = vmatprep.subr.mxu0 0.0
        %2987 = vmatpush1.xpose.msra.mxu0 0.0
        %2988 = vmatprep.subr.mxu0 0.0
        %2989 = vmatpush1.xpose.msra.mxu0 0.0
        %2990 = vmatprep.subr.mxu0 0.0
        %2991 = vmatpush1.xpose.msra.mxu0 0.0
        %2992 = vmatprep.subr.mxu0 0.0
        %2993 = vmatpush1.xpose.msra.mxu0 0.0
        %2994 = vmatprep.subr.mxu0 0.0
        %2995 = vmatpush1.xpose.msra.mxu0 0.0
        %2996 = vmatprep.subr.mxu0 0.0
        %2997 = vmatpush1.xpose.msra.mxu0 0.0
        %2998 = vmatprep.subr.mxu0 0.0
        %2999 = vmatpush1.xpose.msra.mxu0 0.0
        %3000 = vmatprep.subr.mxu0 0.0
        %3001 = vmatpush1.xpose.msra.mxu0 0.0
        %3002 = vmatprep.subr.mxu0 0.0
        %3003 = vmatpush1.xpose.msra.mxu0 0.0
        %3004 = vmatprep.subr.mxu0 0.0
        %3005 = vmatpush1.xpose.msra.mxu0 0.0
        %3006 = vmatprep.mubr.f32.mxu0 0.0
        %3007 = vmatmul.mubr.f32.gmra.mrb[0].mxu0 %v2934
        %v3008 = vpop.f32.mrb[0].mxu0
        %v3009 = vadd.f32 0.0, %v3008
        %v3010 = vpop.f32.mrb[0].mxu0
        %3011 = vmatprep.mubr.f32.mxu0 0.0
        %3012 = vmatmul.mubr.f32.gmra.mrb[0].mxu0 %v2936
        %v3013 = vpop.f32.mrb[0].mxu0
        %v3014 = vadd.f32 0.0, %v3013
        %v3015 = vpop.f32.mrb[0].mxu0
        %3016 = vdwg.mxu0
        %v3017 = vsel %vm1485, %v3009, -inf
        %3018 = vmax.xlane.f32.xlu0 %v3017
        %v3019 = vpop.xlane.xlu0 %3018
        %v3020 = vsel %vm1489, %v3014, -inf
        %3021 = vmax.xlane.f32.xlu0 %v3020
        %v3022 = vpop.xlane.xlu0 %3021
        %v3023 = vsub.f32 %v3009, %v3019
        %v3024 = vsub.f32 %v3014, %v3022
        %v3025 = vmul.f32 %v3023, 1.442695
        %v3026 = vpow.pop %v3025
        %v3027 = vmul.f32 %v3024, 1.442695
        %v3028 = vpow.pop %v3027
        %v3029 = vsel %vm1485, %v3026, 0.0
        %3030 = vadd.xlane.f32.xlu0 %v3029
        %v3031 = vpop.xlane.xlu0 %3030
        %v3032 = vsel %vm1489, %v3028, 0.0
        %3033 = vadd.xlane.f32.xlu0 %v3032
        %v3034 = vpop.xlane.xlu0 %3033
        %v3035 = vrcp.pop %v3031
        %v3036 = vrcp.pop %v3034
        %v3037 = vmul.f32 %v3026, %v3035
        %v3038 = vmul.f32 %v3028, %v3036
        %3039 = vrot.lane.b32.xlu0 %v2717, 56
        %v3040 = vpop.permute.xlu0 %3039
        %3041 = vrot.lane.b32.xlu0 %v2722, 56
        %v3042 = vpop.permute.xlu0 %3041
        %v3045 = vsel %vm1485, %v3037, 0
        %v3048 = vsel %vm1485, %v3038, 0
        %v3050 = vsel %vm1520, %v3042, 0
        %3052 = vmatprep.subr.mxu0 0.0
        %3053 = vmatpush1.msra.mxu0 %v3040
        %3054 = vmatprep.subr.mxu0 0.0
        %3055 = vmatpush1.msra.mxu0 %v3050
        %3056 = vmatprep.subr.mxu0 0.0
        %3057 = vmatpush1.msra.mxu0 0.0
        %3058 = vmatprep.subr.mxu0 0.0
        %3059 = vmatpush1.msra.mxu0 0.0
        %3060 = vmatprep.subr.mxu0 0.0
        %3061 = vmatpush1.msra.mxu0 0.0
        %3062 = vmatprep.subr.mxu0 0.0
        %3063 = vmatpush1.msra.mxu0 0.0
        %3064 = vmatprep.subr.mxu0 0.0
        %3065 = vmatpush1.msra.mxu0 0.0
        %3066 = vmatprep.subr.mxu0 0.0
        %3067 = vmatpush1.msra.mxu0 0.0
        %3068 = vmatprep.subr.mxu0 0.0
        %3069 = vmatpush1.msra.mxu0 0.0
        %3070 = vmatprep.subr.mxu0 0.0
        %3071 = vmatpush1.msra.mxu0 0.0
        %3072 = vmatprep.subr.mxu0 0.0
        %3073 = vmatpush1.msra.mxu0 0.0
        %3074 = vmatprep.subr.mxu0 0.0
        %3075 = vmatpush1.msra.mxu0 0.0
        %3076 = vmatprep.subr.mxu0 0.0
        %3077 = vmatpush1.msra.mxu0 0.0
        %3078 = vmatprep.subr.mxu0 0.0
        %3079 = vmatpush1.msra.mxu0 0.0
        %3080 = vmatprep.subr.mxu0 0.0
        %3081 = vmatpush1.msra.mxu0 0.0
        %3082 = vmatprep.subr.mxu0 0.0
        %3083 = vmatpush1.msra.mxu0 0.0
        %3084 = vmatprep.subr.mxu0 0.0
        %3085 = vmatpush1.msra.mxu0 0.0
        %3086 = vmatprep.subr.mxu0 0.0
        %3087 = vmatpush1.msra.mxu0 0.0
        %3088 = vmatprep.subr.mxu0 0.0
        %3089 = vmatpush1.msra.mxu0 0.0
        %3090 = vmatprep.subr.mxu0 0.0
        %3091 = vmatpush1.msra.mxu0 0.0
        %3092 = vmatprep.subr.mxu0 0.0
        %3093 = vmatpush1.msra.mxu0 0.0
        %3094 = vmatprep.subr.mxu0 0.0
        %3095 = vmatpush1.msra.mxu0 0.0
        %3096 = vmatprep.subr.mxu0 0.0
        %3097 = vmatpush1.msra.mxu0 0.0
        %3098 = vmatprep.subr.mxu0 0.0
        %3099 = vmatpush1.msra.mxu0 0.0
        %3100 = vmatprep.subr.mxu0 0.0
        %3101 = vmatpush1.msra.mxu0 0.0
        %3102 = vmatprep.subr.mxu0 0.0
        %3103 = vmatpush1.msra.mxu0 0.0
        %3104 = vmatprep.subr.mxu0 0.0
        %3105 = vmatpush1.msra.mxu0 0.0
        %3106 = vmatprep.subr.mxu0 0.0
        %3107 = vmatpush1.msra.mxu0 0.0
        %3108 = vmatprep.subr.mxu0 0.0
        %3109 = vmatpush1.msra.mxu0 0.0
        %3110 = vmatprep.subr.mxu0 0.0
        %3111 = vmatpush1.msra.mxu0 0.0
        %3112 = vmatprep.subr.mxu0 0.0
        %3113 = vmatpush1.msra.mxu0 0.0
        %3114 = vmatprep.subr.mxu0 0.0
        %3115 = vmatpush1.msra.mxu0 0.0
        %3116 = vmatprep.mubr.f32.mxu0 0.0
        %3117 = vmatmul.mubr.f32.gmra.mrb[0].mxu0 %v3045
        %v3118 = vpop.f32.mrb[0].mxu0
        %v3119 = vadd.f32 0.0, %v3118
        %v3120 = vpop.f32.mrb[0].mxu0
        %3121 = vmatprep.mubr.f32.mxu0 0.0
        %3122 = vmatmul.mubr.f32.gmra.mrb[0].mxu0 %v3048
        %v3123 = vpop.f32.mrb[0].mxu0
        %v3124 = vadd.f32 0.0, %v3123
        %v3125 = vpop.f32.mrb[0].mxu0
        %3126 = vdwg.mxu0
        %3129 = vrot.lane.b32.xlu0 %v3119, 8
        %v3130 = vpop.permute.xlu0 %3129
        %3131 = vrot.lane.b32.xlu0 %v3124, 8
        %v3132 = vpop.permute.xlu0 %3131
        %3135 = vst.msk [vmem:[#allocation3] sm:$0xff] %vm1810, %v3130
        %3136 = vst.msk [vmem:[#allocation3 + $0x8] sm:$0x1] %vm1812, %v3132
        %3137 = vrot.lane.b32.xlu0 %v2717, 112
        %v3138 = vpop.permute.xlu0 %3137
        %3139 = vrot.lane.b32.xlu0 %v2722, 112
        %v3140 = vpop.permute.xlu0 %3139
        %3141 = vrot.lane.b32.xlu0 %v2717, 80
        %v3142 = vpop.permute.xlu0 %3141
        %3143 = vrot.lane.b32.xlu0 %v2722, 80
        %v3144 = vpop.permute.xlu0 %3143
        %v3145 = vsel %vm921, %v3138, 0
        %v3147 = vsel %vm921, %v3140, 0
        %v3149 = vsel %vm921, %v3142, 0
        %v3151 = vsel %vm921, %v3144, 0
        %3153 = vmatprep.subr.mxu0 0.0
        %3154 = vmatpush1.xpose.msra.mxu0 %v3149
        %3155 = vmatprep.subr.mxu0 0.0
        %3156 = vmatpush1.xpose.msra.mxu0 %v3151
        %3157 = vmatprep.subr.mxu0 0.0
        %3158 = vmatpush1.xpose.msra.mxu0 0.0
        %3159 = vmatprep.subr.mxu0 0.0
        %3160 = vmatpush1.xpose.msra.mxu0 0.0
        %3161 = vmatprep.subr.mxu0 0.0
        %3162 = vmatpush1.xpose.msra.mxu0 0.0
        %3163 = vmatprep.subr.mxu0 0.0
        %3164 = vmatpush1.xpose.msra.mxu0 0.0
        %3165 = vmatprep.subr.mxu0 0.0
        %3166 = vmatpush1.xpose.msra.mxu0 0.0
        %3167 = vmatprep.subr.mxu0 0.0
        %3168 = vmatpush1.xpose.msra.mxu0 0.0
        %3169 = vmatprep.subr.mxu0 0.0
        %3170 = vmatpush1.xpose.msra.mxu0 0.0
        %3171 = vmatprep.subr.mxu0 0.0
        %3172 = vmatpush1.xpose.msra.mxu0 0.0
        %3173 = vmatprep.subr.mxu0 0.0
        %3174 = vmatpush1.xpose.msra.mxu0 0.0
        %3175 = vmatprep.subr.mxu0 0.0
        %3176 = vmatpush1.xpose.msra.mxu0 0.0
        %3177 = vmatprep.subr.mxu0 0.0
        %3178 = vmatpush1.xpose.msra.mxu0 0.0
        %3179 = vmatprep.subr.mxu0 0.0
        %3180 = vmatpush1.xpose.msra.mxu0 0.0
        %3181 = vmatprep.subr.mxu0 0.0
        %3182 = vmatpush1.xpose.msra.mxu0 0.0
        %3183 = vmatprep.subr.mxu0 0.0
        %3184 = vmatpush1.xpose.msra.mxu0 0.0
        %3185 = vmatprep.subr.mxu0 0.0
        %3186 = vmatpush1.xpose.msra.mxu0 0.0
        %3187 = vmatprep.subr.mxu0 0.0
        %3188 = vmatpush1.xpose.msra.mxu0 0.0
        %3189 = vmatprep.subr.mxu0 0.0
        %3190 = vmatpush1.xpose.msra.mxu0 0.0
        %3191 = vmatprep.subr.mxu0 0.0
        %3192 = vmatpush1.xpose.msra.mxu0 0.0
        %3193 = vmatprep.subr.mxu0 0.0
        %3194 = vmatpush1.xpose.msra.mxu0 0.0
        %3195 = vmatprep.subr.mxu0 0.0
        %3196 = vmatpush1.xpose.msra.mxu0 0.0
        %3197 = vmatprep.subr.mxu0 0.0
        %3198 = vmatpush1.xpose.msra.mxu0 0.0
        %3199 = vmatprep.subr.mxu0 0.0
        %3200 = vmatpush1.xpose.msra.mxu0 0.0
        %3201 = vmatprep.subr.mxu0 0.0
        %3202 = vmatpush1.xpose.msra.mxu0 0.0
        %3203 = vmatprep.subr.mxu0 0.0
        %3204 = vmatpush1.xpose.msra.mxu0 0.0
        %3205 = vmatprep.subr.mxu0 0.0
        %3206 = vmatpush1.xpose.msra.mxu0 0.0
        %3207 = vmatprep.subr.mxu0 0.0
        %3208 = vmatpush1.xpose.msra.mxu0 0.0
        %3209 = vmatprep.subr.mxu0 0.0
        %3210 = vmatpush1.xpose.msra.mxu0 0.0
        %3211 = vmatprep.subr.mxu0 0.0
        %3212 = vmatpush1.xpose.msra.mxu0 0.0
        %3213 = vmatprep.subr.mxu0 0.0
        %3214 = vmatpush1.xpose.msra.mxu0 0.0
        %3215 = vmatprep.subr.mxu0 0.0
        %3216 = vmatpush1.xpose.msra.mxu0 0.0
        %3217 = vmatprep.mubr.f32.mxu0 0.0
        %3218 = vmatmul.mubr.f32.gmra.mrb[0].mxu0 %v3145
        %v3219 = vpop.f32.mrb[0].mxu0
        %v3220 = vadd.f32 0.0, %v3219
        %v3221 = vpop.f32.mrb[0].mxu0
        %3222 = vmatprep.mubr.f32.mxu0 0.0
        %3223 = vmatmul.mubr.f32.gmra.mrb[0].mxu0 %v3147
        %v3224 = vpop.f32.mrb[0].mxu0
        %v3225 = vadd.f32 0.0, %v3224
        %v3226 = vpop.f32.mrb[0].mxu0
        %3227 = vdwg.mxu0
        %v3228 = vsel %vm1485, %v3220, -inf
        %3229 = vmax.xlane.f32.xlu0 %v3228
        %v3230 = vpop.xlane.xlu0 %3229
        %v3231 = vsel %vm1489, %v3225, -inf
        %3232 = vmax.xlane.f32.xlu0 %v3231
        %v3233 = vpop.xlane.xlu0 %3232
        %v3234 = vsub.f32 %v3220, %v3230
        %v3235 = vsub.f32 %v3225, %v3233
        %v3236 = vmul.f32 %v3234, 1.442695
        %v3237 = vpow.pop %v3236
        %v3238 = vmul.f32 %v3235, 1.442695
        %v3239 = vpow.pop %v3238
        %v3240 = vsel %vm1485, %v3237, 0.0
        %3241 = vadd.xlane.f32.xlu0 %v3240
        %v3242 = vpop.xlane.xlu0 %3241
        %v3243 = vsel %vm1489, %v3239, 0.0
        %3244 = vadd.xlane.f32.xlu0 %v3243
        %v3245 = vpop.xlane.xlu0 %3244
        %v3246 = vrcp.pop %v3242
        %v3247 = vrcp.pop %v3245
        %v3248 = vmul.f32 %v3237, %v3246
        %v3249 = vmul.f32 %v3239, %v3247
        %3250 = vrot.lane.b32.xlu0 %v2717, 48
        %v3251 = vpop.permute.xlu0 %3250
        %3252 = vrot.lane.b32.xlu0 %v2722, 48
        %v3253 = vpop.permute.xlu0 %3252
        %v3256 = vsel %vm1485, %v3248, 0
        %v3259 = vsel %vm1485, %v3249, 0
        %v3261 = vsel %vm1520, %v3253, 0
        %3263 = vmatprep.subr.mxu0 0.0
        %3264 = vmatpush1.msra.mxu0 %v3251
        %3265 = vmatprep.subr.mxu0 0.0
        %3266 = vmatpush1.msra.mxu0 %v3261
        %3267 = vmatprep.subr.mxu0 0.0
        %3268 = vmatpush1.msra.mxu0 0.0
        %3269 = vmatprep.subr.mxu0 0.0
        %3270 = vmatpush1.msra.mxu0 0.0
        %3271 = vmatprep.subr.mxu0 0.0
        %3272 = vmatpush1.msra.mxu0 0.0
        %3273 = vmatprep.subr.mxu0 0.0
        %3274 = vmatpush1.msra.mxu0 0.0
        %3275 = vmatprep.subr.mxu0 0.0
        %3276 = vmatpush1.msra.mxu0 0.0
        %3277 = vmatprep.subr.mxu0 0.0
        %3278 = vmatpush1.msra.mxu0 0.0
        %3279 = vmatprep.subr.mxu0 0.0
        %3280 = vmatpush1.msra.mxu0 0.0
        %3281 = vmatprep.subr.mxu0 0.0
        %3282 = vmatpush1.msra.mxu0 0.0
        %3283 = vmatprep.subr.mxu0 0.0
        %3284 = vmatpush1.msra.mxu0 0.0
        %3285 = vmatprep.subr.mxu0 0.0
        %3286 = vmatpush1.msra.mxu0 0.0
        %3287 = vmatprep.subr.mxu0 0.0
        %3288 = vmatpush1.msra.mxu0 0.0
        %3289 = vmatprep.subr.mxu0 0.0
        %3290 = vmatpush1.msra.mxu0 0.0
        %3291 = vmatprep.subr.mxu0 0.0
        %3292 = vmatpush1.msra.mxu0 0.0
        %3293 = vmatprep.subr.mxu0 0.0
        %3294 = vmatpush1.msra.mxu0 0.0
        %3295 = vmatprep.subr.mxu0 0.0
        %3296 = vmatpush1.msra.mxu0 0.0
        %3297 = vmatprep.subr.mxu0 0.0
        %3298 = vmatpush1.msra.mxu0 0.0
        %3299 = vmatprep.subr.mxu0 0.0
        %3300 = vmatpush1.msra.mxu0 0.0
        %3301 = vmatprep.subr.mxu0 0.0
        %3302 = vmatpush1.msra.mxu0 0.0
        %3303 = vmatprep.subr.mxu0 0.0
        %3304 = vmatpush1.msra.mxu0 0.0
        %3305 = vmatprep.subr.mxu0 0.0
        %3306 = vmatpush1.msra.mxu0 0.0
        %3307 = vmatprep.subr.mxu0 0.0
        %3308 = vmatpush1.msra.mxu0 0.0
        %3309 = vmatprep.subr.mxu0 0.0
        %3310 = vmatpush1.msra.mxu0 0.0
        %3311 = vmatprep.subr.mxu0 0.0
        %3312 = vmatpush1.msra.mxu0 0.0
        %3313 = vmatprep.subr.mxu0 0.0
        %3314 = vmatpush1.msra.mxu0 0.0
        %3315 = vmatprep.subr.mxu0 0.0
        %3316 = vmatpush1.msra.mxu0 0.0
        %3317 = vmatprep.subr.mxu0 0.0
        %3318 = vmatpush1.msra.mxu0 0.0
        %3319 = vmatprep.subr.mxu0 0.0
        %3320 = vmatpush1.msra.mxu0 0.0
        %3321 = vmatprep.subr.mxu0 0.0
        %3322 = vmatpush1.msra.mxu0 0.0
        %3323 = vmatprep.subr.mxu0 0.0
        %3324 = vmatpush1.msra.mxu0 0.0
        %3325 = vmatprep.subr.mxu0 0.0
        %3326 = vmatpush1.msra.mxu0 0.0
        %3327 = vmatprep.mubr.f32.mxu0 0.0
        %3328 = vmatmul.mubr.f32.gmra.mrb[0].mxu0 %v3256
        %v3329 = vpop.f32.mrb[0].mxu0
        %v3330 = vadd.f32 0.0, %v3329
        %v3331 = vpop.f32.mrb[0].mxu0
        %3332 = vmatprep.mubr.f32.mxu0 0.0
        %3333 = vmatmul.mubr.f32.gmra.mrb[0].mxu0 %v3259
        %v3334 = vpop.f32.mrb[0].mxu0
        %v3335 = vadd.f32 0.0, %v3334
        %v3336 = vpop.f32.mrb[0].mxu0
        %3337 = vdwg.mxu0
        %3340 = vrot.lane.b32.xlu0 %v3330, 16
        %v3341 = vpop.permute.xlu0 %3340
        %3342 = vrot.lane.b32.xlu0 %v3335, 16
        %v3343 = vpop.permute.xlu0 %3342
        %3346 = vst.msk [vmem:[#allocation3] sm:$0xff] %vm2023, %v3341
        %3347 = vst.msk [vmem:[#allocation3 + $0x8] sm:$0x1] %vm2025, %v3343
        %3348 = vrot.lane.b32.xlu0 %v2717, 104
        %v3349 = vpop.permute.xlu0 %3348
        %3350 = vrot.lane.b32.xlu0 %v2722, 104
        %v3351 = vpop.permute.xlu0 %3350
        %3352 = vrot.lane.b32.xlu0 %v2717, 72
        %v3353 = vpop.permute.xlu0 %3352
        %3354 = vrot.lane.b32.xlu0 %v2722, 72
        %v3355 = vpop.permute.xlu0 %3354
        %v3356 = vsel %vm921, %v3349, 0
        %v3358 = vsel %vm921, %v3351, 0
        %v3360 = vsel %vm921, %v3353, 0
        %v3362 = vsel %vm921, %v3355, 0
        %3364 = vmatprep.subr.mxu0 0.0
        %3365 = vmatpush1.xpose.msra.mxu0 %v3360
        %3366 = vmatprep.subr.mxu0 0.0
        %3367 = vmatpush1.xpose.msra.mxu0 %v3362
        %3368 = vmatprep.subr.mxu0 0.0
        %3369 = vmatpush1.xpose.msra.mxu0 0.0
        %3370 = vmatprep.subr.mxu0 0.0
        %3371 = vmatpush1.xpose.msra.mxu0 0.0
        %3372 = vmatprep.subr.mxu0 0.0
        %3373 = vmatpush1.xpose.msra.mxu0 0.0
        %3374 = vmatprep.subr.mxu0 0.0
        %3375 = vmatpush1.xpose.msra.mxu0 0.0
        %3376 = vmatprep.subr.mxu0 0.0
        %3377 = vmatpush1.xpose.msra.mxu0 0.0
        %3378 = vmatprep.subr.mxu0 0.0
        %3379 = vmatpush1.xpose.msra.mxu0 0.0
        %3380 = vmatprep.subr.mxu0 0.0
        %3381 = vmatpush1.xpose.msra.mxu0 0.0
        %3382 = vmatprep.subr.mxu0 0.0
        %3383 = vmatpush1.xpose.msra.mxu0 0.0
        %3384 = vmatprep.subr.mxu0 0.0
        %3385 = vmatpush1.xpose.msra.mxu0 0.0
        %3386 = vmatprep.subr.mxu0 0.0
        %3387 = vmatpush1.xpose.msra.mxu0 0.0
        %3388 = vmatprep.subr.mxu0 0.0
        %3389 = vmatpush1.xpose.msra.mxu0 0.0
        %3390 = vmatprep.subr.mxu0 0.0
        %3391 = vmatpush1.xpose.msra.mxu0 0.0
        %3392 = vmatprep.subr.mxu0 0.0
        %3393 = vmatpush1.xpose.msra.mxu0 0.0
        %3394 = vmatprep.subr.mxu0 0.0
        %3395 = vmatpush1.xpose.msra.mxu0 0.0
        %3396 = vmatprep.subr.mxu0 0.0
        %3397 = vmatpush1.xpose.msra.mxu0 0.0
        %3398 = vmatprep.subr.mxu0 0.0
        %3399 = vmatpush1.xpose.msra.mxu0 0.0
        %3400 = vmatprep.subr.mxu0 0.0
        %3401 = vmatpush1.xpose.msra.mxu0 0.0
        %3402 = vmatprep.subr.mxu0 0.0
        %3403 = vmatpush1.xpose.msra.mxu0 0.0
        %3404 = vmatprep.subr.mxu0 0.0
        %3405 = vmatpush1.xpose.msra.mxu0 0.0
        %3406 = vmatprep.subr.mxu0 0.0
        %3407 = vmatpush1.xpose.msra.mxu0 0.0
        %3408 = vmatprep.subr.mxu0 0.0
        %3409 = vmatpush1.xpose.msra.mxu0 0.0
        %3410 = vmatprep.subr.mxu0 0.0
        %3411 = vmatpush1.xpose.msra.mxu0 0.0
        %3412 = vmatprep.subr.mxu0 0.0
        %3413 = vmatpush1.xpose.msra.mxu0 0.0
        %3414 = vmatprep.subr.mxu0 0.0
        %3415 = vmatpush1.xpose.msra.mxu0 0.0
        %3416 = vmatprep.subr.mxu0 0.0
        %3417 = vmatpush1.xpose.msra.mxu0 0.0
        %3418 = vmatprep.subr.mxu0 0.0
        %3419 = vmatpush1.xpose.msra.mxu0 0.0
        %3420 = vmatprep.subr.mxu0 0.0
        %3421 = vmatpush1.xpose.msra.mxu0 0.0
        %3422 = vmatprep.subr.mxu0 0.0
        %3423 = vmatpush1.xpose.msra.mxu0 0.0
        %3424 = vmatprep.subr.mxu0 0.0
        %3425 = vmatpush1.xpose.msra.mxu0 0.0
        %3426 = vmatprep.subr.mxu0 0.0
        %3427 = vmatpush1.xpose.msra.mxu0 0.0
        %3428 = vmatprep.mubr.f32.mxu0 0.0
        %3429 = vmatmul.mubr.f32.gmra.mrb[0].mxu0 %v3356
        %v3430 = vpop.f32.mrb[0].mxu0
        %v3431 = vadd.f32 0.0, %v3430
        %v3432 = vpop.f32.mrb[0].mxu0
        %3433 = vmatprep.mubr.f32.mxu0 0.0
        %3434 = vmatmul.mubr.f32.gmra.mrb[0].mxu0 %v3358
        %v3435 = vpop.f32.mrb[0].mxu0
        %v3436 = vadd.f32 0.0, %v3435
        %v3437 = vpop.f32.mrb[0].mxu0
        %3438 = vdwg.mxu0
        %v3439 = vsel %vm1485, %v3431, -inf
        %3440 = vmax.xlane.f32.xlu0 %v3439
        %v3441 = vpop.xlane.xlu0 %3440
        %v3442 = vsel %vm1489, %v3436, -inf
        %3443 = vmax.xlane.f32.xlu0 %v3442
        %v3444 = vpop.xlane.xlu0 %3443
        %v3445 = vsub.f32 %v3431, %v3441
        %v3446 = vsub.f32 %v3436, %v3444
        %v3447 = vmul.f32 %v3445, 1.442695
        %v3448 = vpow.pop %v3447
        %v3449 = vmul.f32 %v3446, 1.442695
        %v3450 = vpow.pop %v3449
        %v3451 = vsel %vm1485, %v3448, 0.0
        %3452 = vadd.xlane.f32.xlu0 %v3451
        %v3453 = vpop.xlane.xlu0 %3452
        %v3454 = vsel %vm1489, %v3450, 0.0
        %3455 = vadd.xlane.f32.xlu0 %v3454
        %v3456 = vpop.xlane.xlu0 %3455
        %v3457 = vrcp.pop %v3453
        %v3458 = vrcp.pop %v3456
        %v3459 = vmul.f32 %v3448, %v3457
        %v3460 = vmul.f32 %v3450, %v3458
        %3461 = vrot.lane.b32.xlu0 %v2717, 40
        %v3462 = vpop.permute.xlu0 %3461
        %3463 = vrot.lane.b32.xlu0 %v2722, 40
        %v3464 = vpop.permute.xlu0 %3463
        %v3467 = vsel %vm1485, %v3459, 0
        %v3470 = vsel %vm1485, %v3460, 0
        %v3472 = vsel %vm1520, %v3464, 0
        %3474 = vmatprep.subr.mxu0 0.0
        %3475 = vmatpush1.msra.mxu0 %v3462
        %3476 = vmatprep.subr.mxu0 0.0
        %3477 = vmatpush1.msra.mxu0 %v3472
        %3478 = vmatprep.subr.mxu0 0.0
        %3479 = vmatpush1.msra.mxu0 0.0
        %3480 = vmatprep.subr.mxu0 0.0
        %3481 = vmatpush1.msra.mxu0 0.0
        %3482 = vmatprep.subr.mxu0 0.0
        %3483 = vmatpush1.msra.mxu0 0.0
        %3484 = vmatprep.subr.mxu0 0.0
        %3485 = vmatpush1.msra.mxu0 0.0
        %3486 = vmatprep.subr.mxu0 0.0
        %3487 = vmatpush1.msra.mxu0 0.0
        %3488 = vmatprep.subr.mxu0 0.0
        %3489 = vmatpush1.msra.mxu0 0.0
        %3490 = vmatprep.subr.mxu0 0.0
        %3491 = vmatpush1.msra.mxu0 0.0
        %3492 = vmatprep.subr.mxu0 0.0
        %3493 = vmatpush1.msra.mxu0 0.0
        %3494 = vmatprep.subr.mxu0 0.0
        %3495 = vmatpush1.msra.mxu0 0.0
        %3496 = vmatprep.subr.mxu0 0.0
        %3497 = vmatpush1.msra.mxu0 0.0
        %3498 = vmatprep.subr.mxu0 0.0
        %3499 = vmatpush1.msra.mxu0 0.0
        %3500 = vmatprep.subr.mxu0 0.0
        %3501 = vmatpush1.msra.mxu0 0.0
        %3502 = vmatprep.subr.mxu0 0.0
        %3503 = vmatpush1.msra.mxu0 0.0
        %3504 = vmatprep.subr.mxu0 0.0
        %3505 = vmatpush1.msra.mxu0 0.0
        %3506 = vmatprep.subr.mxu0 0.0
        %3507 = vmatpush1.msra.mxu0 0.0
        %3508 = vmatprep.subr.mxu0 0.0
        %3509 = vmatpush1.msra.mxu0 0.0
        %3510 = vmatprep.subr.mxu0 0.0
        %3511 = vmatpush1.msra.mxu0 0.0
        %3512 = vmatprep.subr.mxu0 0.0
        %3513 = vmatpush1.msra.mxu0 0.0
        %3514 = vmatprep.subr.mxu0 0.0
        %3515 = vmatpush1.msra.mxu0 0.0
        %3516 = vmatprep.subr.mxu0 0.0
        %3517 = vmatpush1.msra.mxu0 0.0
        %3518 = vmatprep.subr.mxu0 0.0
        %3519 = vmatpush1.msra.mxu0 0.0
        %3520 = vmatprep.subr.mxu0 0.0
        %3521 = vmatpush1.msra.mxu0 0.0
        %3522 = vmatprep.subr.mxu0 0.0
        %3523 = vmatpush1.msra.mxu0 0.0
        %3524 = vmatprep.subr.mxu0 0.0
        %3525 = vmatpush1.msra.mxu0 0.0
        %3526 = vmatprep.subr.mxu0 0.0
        %3527 = vmatpush1.msra.mxu0 0.0
        %3528 = vmatprep.subr.mxu0 0.0
        %3529 = vmatpush1.msra.mxu0 0.0
        %3530 = vmatprep.subr.mxu0 0.0
        %3531 = vmatpush1.msra.mxu0 0.0
        %3532 = vmatprep.subr.mxu0 0.0
        %3533 = vmatpush1.msra.mxu0 0.0
        %3534 = vmatprep.subr.mxu0 0.0
        %3535 = vmatpush1.msra.mxu0 0.0
        %3536 = vmatprep.subr.mxu0 0.0
        %3537 = vmatpush1.msra.mxu0 0.0
        %3538 = vmatprep.mubr.f32.mxu0 0.0
        %3539 = vmatmul.mubr.f32.gmra.mrb[0].mxu0 %v3467
        %v3540 = vpop.f32.mrb[0].mxu0
        %v3541 = vadd.f32 0.0, %v3540
        %v3542 = vpop.f32.mrb[0].mxu0
        %3543 = vmatprep.mubr.f32.mxu0 0.0
        %3544 = vmatmul.mubr.f32.gmra.mrb[0].mxu0 %v3470
        %v3545 = vpop.f32.mrb[0].mxu0
        %v3546 = vadd.f32 0.0, %v3545
        %v3547 = vpop.f32.mrb[0].mxu0
        %3548 = vdwg.mxu0
        %3551 = vrot.lane.b32.xlu0 %v3541, 24
        %v3552 = vpop.permute.xlu0 %3551
        %3553 = vrot.lane.b32.xlu0 %v3546, 24
        %v3554 = vpop.permute.xlu0 %3553
        %3557 = vst.msk [vmem:[#allocation3] sm:$0xff] %vm2236, %v3552
        %3558 = vst.msk [vmem:[#allocation3 + $0x8] sm:$0x1] %vm2238, %v3554
        %v3559 = vld [vmem:[#allocation3] sm:$0xff]
        %v3560 = vld [vmem:[#allocation3 + $0x8] sm:$0x1]
        %s3561 = scalar_lea.vmem %s15, 32
        %v3562 = vld [vmem:[%s3561] sm:$0xff]
        %v3563 = vld [vmem:[%s3561 + $0x8] sm:$0xff]
        %v3564 = vld [vmem:[%s3561 + $0x10] sm:$0xff]
        %v3565 = vld [vmem:[%s3561 + $0x18] sm:$0xff]
        %v3567 = vsel %vm1259, %v3559, 0
        %v3570 = vsel %vm1259, %v3560, 0
        %3572 = vmatprep.subr.mxu0 0.0
        %3573 = vmatpush1.msra.mxu0 %v3562
        %3574 = vmatprep.subr.mxu0 0.0
        %3575 = vmatpush1.msra.mxu0 %v3563
        %3576 = vmatprep.subr.mxu0 0.0
        %3577 = vmatpush1.msra.mxu0 %v3564
        %3578 = vmatprep.subr.mxu0 0.0
        %3579 = vmatpush1.msra.mxu0 %v3565
        %3580 = vmatprep.subr.mxu0 0.0
        %3581 = vmatpush1.msra.mxu0 0.0
        %3582 = vmatprep.subr.mxu0 0.0
        %3583 = vmatpush1.msra.mxu0 0.0
        %3584 = vmatprep.subr.mxu0 0.0
        %3585 = vmatpush1.msra.mxu0 0.0
        %3586 = vmatprep.subr.mxu0 0.0
        %3587 = vmatpush1.msra.mxu0 0.0
        %3588 = vmatprep.subr.mxu0 0.0
        %3589 = vmatpush1.msra.mxu0 0.0
        %3590 = vmatprep.subr.mxu0 0.0
        %3591 = vmatpush1.msra.mxu0 0.0
        %3592 = vmatprep.subr.mxu0 0.0
        %3593 = vmatpush1.msra.mxu0 0.0
        %3594 = vmatprep.subr.mxu0 0.0
        %3595 = vmatpush1.msra.mxu0 0.0
        %3596 = vmatprep.subr.mxu0 0.0
        %3597 = vmatpush1.msra.mxu0 0.0
        %3598 = vmatprep.subr.mxu0 0.0
        %3599 = vmatpush1.msra.mxu0 0.0
        %3600 = vmatprep.subr.mxu0 0.0
        %3601 = vmatpush1.msra.mxu0 0.0
        %3602 = vmatprep.subr.mxu0 0.0
        %3603 = vmatpush1.msra.mxu0 0.0
        %3604 = vmatprep.subr.mxu0 0.0
        %3605 = vmatpush1.msra.mxu0 0.0
        %3606 = vmatprep.subr.mxu0 0.0
        %3607 = vmatpush1.msra.mxu0 0.0
        %3608 = vmatprep.subr.mxu0 0.0
        %3609 = vmatpush1.msra.mxu0 0.0
        %3610 = vmatprep.subr.mxu0 0.0
        %3611 = vmatpush1.msra.mxu0 0.0
        %3612 = vmatprep.subr.mxu0 0.0
        %3613 = vmatpush1.msra.mxu0 0.0
        %3614 = vmatprep.subr.mxu0 0.0
        %3615 = vmatpush1.msra.mxu0 0.0
        %3616 = vmatprep.subr.mxu0 0.0
        %3617 = vmatpush1.msra.mxu0 0.0
        %3618 = vmatprep.subr.mxu0 0.0
        %3619 = vmatpush1.msra.mxu0 0.0
        %3620 = vmatprep.subr.mxu0 0.0
        %3621 = vmatpush1.msra.mxu0 0.0
        %3622 = vmatprep.subr.mxu0 0.0
        %3623 = vmatpush1.msra.mxu0 0.0
        %3624 = vmatprep.subr.mxu0 0.0
        %3625 = vmatpush1.msra.mxu0 0.0
        %3626 = vmatprep.subr.mxu0 0.0
        %3627 = vmatpush1.msra.mxu0 0.0
        %3628 = vmatprep.subr.mxu0 0.0
        %3629 = vmatpush1.msra.mxu0 0.0
        %3630 = vmatprep.subr.mxu0 0.0
        %3631 = vmatpush1.msra.mxu0 0.0
        %3632 = vmatprep.subr.mxu0 0.0
        %3633 = vmatpush1.msra.mxu0 0.0
        %3634 = vmatprep.subr.mxu0 0.0
        %3635 = vmatpush1.msra.mxu0 0.0
        %3636 = vmatprep.mubr.f32.mxu0 0.0
        %3637 = vmatmul.mubr.f32.gmra.mrb[0].mxu0 %v3567
        %v3638 = vpop.f32.mrb[0].mxu0
        %v3639 = vadd.f32 0.0, %v3638
        %v3640 = vpop.f32.mrb[0].mxu0
        %3641 = vmatprep.mubr.f32.mxu0 0.0
        %3642 = vmatmul.mubr.f32.gmra.mrb[0].mxu0 %v3570
        %v3643 = vpop.f32.mrb[0].mxu0
        %v3644 = vadd.f32 0.0, %v3643
        %v3645 = vpop.f32.mrb[0].mxu0
        %3646 = vdwg.mxu0
        %v3647 = vadd.f32 %v2591, %v3639
        %v3648 = vadd.f32 %v2592, %v3644
        %s3649 = scalar_lea.vmem %s16, 1
        %v3650 = vld [vmem:[%s3649] sm:$0x1]
        %v3652 = vlaneseq
        %v3653 = vshrl.u32 %v3652, 7
        %v3654 = vsub.s32 0, %v3653
        %v3655 = vrot.slane %v3650, %v3654
        %v3657 = vadd.f32 %v3647, %v3655
        %v3658 = vadd.f32 %v3648, %v3655
        %s3659 = scalar_lea.vmem %s17, 1
        %v3660 = vld [vmem:[%s3659] sm:$0x1]
        %s3661 = scalar_lea.vmem %s18, 1
        %v3662 = vld [vmem:[%s3661] sm:$0x1]
        %v3663 = vsel %vm1259, %v3657, 0.0
        %3664 = vadd.xlane.f32.xlu0 %v3663
        %v3665 = vpop.xlane.xlu0 %3664
        %v3666 = vsel %vm1262, %v3658, 0.0
        %3667 = vadd.xlane.f32.xlu0 %v3666
        %v3668 = vpop.xlane.xlu0 %3667
        %v3669 = vmul.f32 %v3665, %v1274
        %v3670 = vmul.f32 %v3668, %v1274
        %v3671 = vsub.f32 %v3657, %v3669
        %v3672 = vsub.f32 %v3658, %v3670
        %v3673 = vmul.f32 %v3671, %v3671
        %v3674 = vmul.f32 %v3672, %v3672
        %v3675 = vsel %vm1259, %v3673, 0.0
        %3676 = vadd.xlane.f32.xlu0 %v3675
        %v3677 = vpop.xlane.xlu0 %3676
        %v3678 = vsel %vm1262, %v3674, 0.0
        %3679 = vadd.xlane.f32.xlu0 %v3678
        %v3680 = vpop.xlane.xlu0 %3679
        %v3681 = vmul.f32 %v3677, %v1274
        %v3682 = vmul.f32 %v3680, %v1274
        %v3683 = vadd.f32 %v3681, 1e-05
        %v3684 = vadd.f32 %v3682, 1e-05
        %v3685 = vrsqrt.pop %v3683
        %v3686 = vrsqrt.pop %v3684
        %v3687 = vmul.f32 %v3671, %v3685
        %v3688 = vmul.f32 %v3672, %v3686
        %v3690 = vlaneseq
        %v3691 = vshrl.u32 %v3690, 7
        %v3692 = vsub.s32 0, %v3691
        %v3693 = vrot.slane %v3660, %v3692
        %v3695 = vmul.f32 %v3687, %v3693
        %v3696 = vmul.f32 %v3688, %v3693
        %v3698 = vlaneseq
        %v3699 = vshrl.u32 %v3698, 7
        %v3700 = vsub.s32 0, %v3699
        %v3701 = vrot.slane %v3662, %v3700
        %v3703 = vadd.f32 %v3695, %v3701
        %v3704 = vadd.f32 %v3696, %v3701
        %s3705 = scalar_lea.vmem %s19, 32
        %v3706 = vld [vmem:[%s3705] sm:$0xff]
        %v3707 = vld [vmem:[%s3705 + $0x8] sm:$0xff]
        %v3708 = vld [vmem:[%s3705 + $0x10] sm:$0xff]
        %v3709 = vld [vmem:[%s3705 + $0x18] sm:$0xff]
        %s3710 = scalar_lea.vmem %s20, 1
        %v3711 = vld [vmem:[%s3710] sm:$0x1]
        %v3713 = vlaneseq
        %v3714 = vshrl.u32 %v3713, 7
        %v3715 = vsub.s32 0, %v3714
        %v3716 = vrot.slane %v3711, %v3715
        %v3719 = vsel %vm1259, %v3703, 0
        %v3722 = vsel %vm1259, %v3704, 0
        %3724 = vmatprep.subr.mxu0 0.0
        %3725 = vmatpush1.msra.mxu0 %v3706
        %3726 = vmatprep.subr.mxu0 0.0
        %3727 = vmatpush1.msra.mxu0 %v3707
        %3728 = vmatprep.subr.mxu0 0.0
        %3729 = vmatpush1.msra.mxu0 %v3708
        %3730 = vmatprep.subr.mxu0 0.0
        %3731 = vmatpush1.msra.mxu0 %v3709
        %3732 = vmatprep.subr.mxu0 0.0
        %3733 = vmatpush1.msra.mxu0 0.0
        %3734 = vmatprep.subr.mxu0 0.0
        %3735 = vmatpush1.msra.mxu0 0.0
        %3736 = vmatprep.subr.mxu0 0.0
        %3737 = vmatpush1.msra.mxu0 0.0
        %3738 = vmatprep.subr.mxu0 0.0
        %3739 = vmatpush1.msra.mxu0 0.0
        %3740 = vmatprep.subr.mxu0 0.0
        %3741 = vmatpush1.msra.mxu0 0.0
        %3742 = vmatprep.subr.mxu0 0.0
        %3743 = vmatpush1.msra.mxu0 0.0
        %3744 = vmatprep.subr.mxu0 0.0
        %3745 = vmatpush1.msra.mxu0 0.0
        %3746 = vmatprep.subr.mxu0 0.0
        %3747 = vmatpush1.msra.mxu0 0.0
        %3748 = vmatprep.subr.mxu0 0.0
        %3749 = vmatpush1.msra.mxu0 0.0
        %3750 = vmatprep.subr.mxu0 0.0
        %3751 = vmatpush1.msra.mxu0 0.0
        %3752 = vmatprep.subr.mxu0 0.0
        %3753 = vmatpush1.msra.mxu0 0.0
        %3754 = vmatprep.subr.mxu0 0.0
        %3755 = vmatpush1.msra.mxu0 0.0
        %3756 = vmatprep.subr.mxu0 0.0
        %3757 = vmatpush1.msra.mxu0 0.0
        %3758 = vmatprep.subr.mxu0 0.0
        %3759 = vmatpush1.msra.mxu0 0.0
        %3760 = vmatprep.subr.mxu0 0.0
        %3761 = vmatpush1.msra.mxu0 0.0
        %3762 = vmatprep.subr.mxu0 0.0
        %3763 = vmatpush1.msra.mxu0 0.0
        %3764 = vmatprep.subr.mxu0 0.0
        %3765 = vmatpush1.msra.mxu0 0.0
        %3766 = vmatprep.subr.mxu0 0.0
        %3767 = vmatpush1.msra.mxu0 0.0
        %3768 = vmatprep.subr.mxu0 0.0
        %3769 = vmatpush1.msra.mxu0 0.0
        %3770 = vmatprep.subr.mxu0 0.0
        %3771 = vmatpush1.msra.mxu0 0.0
        %3772 = vmatprep.subr.mxu0 0.0
        %3773 = vmatpush1.msra.mxu0 0.0
        %3774 = vmatprep.subr.mxu0 0.0
        %3775 = vmatpush1.msra.mxu0 0.0
        %3776 = vmatprep.subr.mxu0 0.0
        %3777 = vmatpush1.msra.mxu0 0.0
        %3778 = vmatprep.subr.mxu0 0.0
        %3779 = vmatpush1.msra.mxu0 0.0
        %3780 = vmatprep.subr.mxu0 0.0
        %3781 = vmatpush1.msra.mxu0 0.0
        %3782 = vmatprep.subr.mxu0 0.0
        %3783 = vmatpush1.msra.mxu0 0.0
        %3784 = vmatprep.subr.mxu0 0.0
        %3785 = vmatpush1.msra.mxu0 0.0
        %3786 = vmatprep.subr.mxu0 0.0
        %3787 = vmatpush1.msra.mxu0 0.0
        %3788 = vmatprep.mubr.f32.mxu0 0.0
        %3789 = vmatmul.mubr.f32.gmra.mrb[0].mxu0 %v3719
        %v3790 = vpop.f32.mrb[0].mxu0
        %v3791 = vadd.f32 %v3716, %v3790
        %v3792 = vpop.f32.mrb[0].mxu0
        %3793 = vmatprep.mubr.f32.mxu0 0.0
        %3794 = vmatmul.mubr.f32.gmra.mrb[0].mxu0 %v3722
        %v3795 = vpop.f32.mrb[0].mxu0
        %v3796 = vadd.f32 %v3716, %v3795
        %v3797 = vpop.f32.mrb[0].mxu0
        %3798 = vdwg.mxu0
        %v3799 = vmul.f32 %v3791, 0.5
        %v3800 = vmul.f32 %v3796, 0.5
        %v3801 = vmul.f32 %v3791, 0.044715
        %v3802 = vmul.f32 %v3796, 0.044715
        %v3803 = vmul.f32 %v3801, %v3791
        %v3804 = vmul.f32 %v3802, %v3796
        %v3805 = vmul.f32 %v3803, %v3791
        %v3806 = vmul.f32 %v3804, %v3796
        %v3807 = vadd.f32 %v3791, %v3805
        %v3808 = vadd.f32 %v3796, %v3806
        %v3809 = vmul.f32 %v3807, 0.7978846
        %v3810 = vmul.f32 %v3808, 0.7978846
        %v3811 = vtanh.pop %v3809
        %v3812 = vtanh.pop %v3810
        %v3813 = vadd.f32 %v3811, 1.0
        %v3814 = vadd.f32 %v3812, 1.0
        %v3815 = vmul.f32 %v3799, %v3813
        %v3816 = vmul.f32 %v3800, %v3814
        %s3817 = scalar_lea.vmem %s21, 64
        %v3818 = vld [vmem:[%s3817] sm:$0xff]
        %v3819 = vld [vmem:[%s3817 + $0x8] sm:$0xff]
        %v3820 = vld [vmem:[%s3817 + $0x10] sm:$0xff]
        %v3821 = vld [vmem:[%s3817 + $0x18] sm:$0xff]
        %v3822 = vld [vmem:[%s3817 + $0x20] sm:$0xff]
        %v3823 = vld [vmem:[%s3817 + $0x28] sm:$0xff]
        %v3824 = vld [vmem:[%s3817 + $0x30] sm:$0xff]
        %v3825 = vld [vmem:[%s3817 + $0x38] sm:$0xff]
        %v3827 = vsel %vm2500, %v3815, 0
        %v3830 = vsel %vm2500, %v3816, 0
        %3832 = vmatprep.subr.mxu0 0.0
        %3833 = vmatpush1.msra.mxu0 %v3818
        %3834 = vmatprep.subr.mxu0 0.0
        %3835 = vmatpush1.msra.mxu0 %v3819
        %3836 = vmatprep.subr.mxu0 0.0
        %3837 = vmatpush1.msra.mxu0 %v3820
        %3838 = vmatprep.subr.mxu0 0.0
        %3839 = vmatpush1.msra.mxu0 %v3821
        %3840 = vmatprep.subr.mxu0 0.0
        %3841 = vmatpush1.msra.mxu0 %v3822
        %3842 = vmatprep.subr.mxu0 0.0
        %3843 = vmatpush1.msra.mxu0 %v3823
        %3844 = vmatprep.subr.mxu0 0.0
        %3845 = vmatpush1.msra.mxu0 %v3824
        %3846 = vmatprep.subr.mxu0 0.0
        %3847 = vmatpush1.msra.mxu0 %v3825
        %3848 = vmatprep.subr.mxu0 0.0
        %3849 = vmatpush1.msra.mxu0 0.0
        %3850 = vmatprep.subr.mxu0 0.0
        %3851 = vmatpush1.msra.mxu0 0.0
        %3852 = vmatprep.subr.mxu0 0.0
        %3853 = vmatpush1.msra.mxu0 0.0
        %3854 = vmatprep.subr.mxu0 0.0
        %3855 = vmatpush1.msra.mxu0 0.0
        %3856 = vmatprep.subr.mxu0 0.0
        %3857 = vmatpush1.msra.mxu0 0.0
        %3858 = vmatprep.subr.mxu0 0.0
        %3859 = vmatpush1.msra.mxu0 0.0
        %3860 = vmatprep.subr.mxu0 0.0
        %3861 = vmatpush1.msra.mxu0 0.0
        %3862 = vmatprep.subr.mxu0 0.0
        %3863 = vmatpush1.msra.mxu0 0.0
        %3864 = vmatprep.subr.mxu0 0.0
        %3865 = vmatpush1.msra.mxu0 0.0
        %3866 = vmatprep.subr.mxu0 0.0
        %3867 = vmatpush1.msra.mxu0 0.0
        %3868 = vmatprep.subr.mxu0 0.0
        %3869 = vmatpush1.msra.mxu0 0.0
        %3870 = vmatprep.subr.mxu0 0.0
        %3871 = vmatpush1.msra.mxu0 0.0
        %3872 = vmatprep.subr.mxu0 0.0
        %3873 = vmatpush1.msra.mxu0 0.0
        %3874 = vmatprep.subr.mxu0 0.0
        %3875 = vmatpush1.msra.mxu0 0.0
        %3876 = vmatprep.subr.mxu0 0.0
        %3877 = vmatpush1.msra.mxu0 0.0
        %3878 = vmatprep.subr.mxu0 0.0
        %3879 = vmatpush1.msra.mxu0 0.0
        %3880 = vmatprep.subr.mxu0 0.0
        %3881 = vmatpush1.msra.mxu0 0.0
        %3882 = vmatprep.subr.mxu0 0.0
        %3883 = vmatpush1.msra.mxu0 0.0
        %3884 = vmatprep.subr.mxu0 0.0
        %3885 = vmatpush1.msra.mxu0 0.0
        %3886 = vmatprep.subr.mxu0 0.0
        %3887 = vmatpush1.msra.mxu0 0.0
        %3888 = vmatprep.subr.mxu0 0.0
        %3889 = vmatpush1.msra.mxu0 0.0
        %3890 = vmatprep.subr.mxu0 0.0
        %3891 = vmatpush1.msra.mxu0 0.0
        %3892 = vmatprep.subr.mxu0 0.0
        %3893 = vmatpush1.msra.mxu0 0.0
        %3894 = vmatprep.subr.mxu0 0.0
        %3895 = vmatpush1.msra.mxu0 0.0
        %3896 = vmatprep.mubr.f32.mxu0 0.0
        %3897 = vmatmul.mubr.f32.gmra.mrb[0].mxu0 %v3827
        %v3898 = vpop.f32.mrb[0].mxu0
        %v3899 = vpop.f32.mrb[0].mxu0
        %3900 = vmatprep.mubr.f32.mxu0 0.0
        %3901 = vmatmul.mubr.f32.gmra.mrb[0].mxu0 %v3830
        %v3902 = vpop.f32.mrb[0].mxu0
        %v3903 = vadd.f32 0.0, %v3902
        %v3904 = vpop.f32.mrb[0].mxu0
        %3905 = vdwg.mxu0
        %v3906 = vadd.f32 %v3658, %v3903
        %s3907 = scalar_lea.vmem %s22, 1
        %v3908 = vld [vmem:[%s3907] sm:$0x1]
        %v3910 = vlaneseq
        %v3911 = vshrl.u32 %v3910, 7
        %v3912 = vsub.s32 0, %v3911
        %v3913 = vrot.slane %v3908, %v3912
        %v3915 = vadd.f32 %v3906, %v3913
        %v3916 = vld [vmem:[%s23] sm:$0x1]
        %v3917 = vld [vmem:[%s24] sm:$0x1]
        %v3918 = vsel %vm1262, %v3915, 0.0
        %3919 = vadd.xlane.f32.xlu0 %v3918
        %v3920 = vpop.xlane.xlu0 %3919
        %v3921 = vmul.f32 %v3920, %v1274
        %v3922 = vsub.f32 %v3915, %v3921
        %v3923 = vmul.f32 %v3922, %v3922
        %v3924 = vsel %vm1262, %v3923, 0.0
        %3925 = vadd.xlane.f32.xlu0 %v3924
        %v3926 = vpop.xlane.xlu0 %3925
        %v3927 = vmul.f32 %v3926, %v1274
        %v3928 = vadd.f32 %v3927, 1e-05
        %v3929 = vrsqrt.pop %v3928
        %v3930 = vmul.f32 %v3922, %v3929
        %v3931 = vmul.f32 %v3930, %v3916
        %v3932 = vadd.f32 %v3931, %v3917
        %v3933 = vld [vmem:[%s25] sm:$0xff]
        %v3934 = vld [vmem:[%s25 + $0x8] sm:$0xff]
        %v3935 = vld [vmem:[%s25 + $0x10] sm:$0xff]
        %v3936 = vld [vmem:[%s25 + $0x18] sm:$0xff]
        %v3937 = vld [vmem:[%s26] sm:$0x1]
        %v3939 = vsel %vm1259, %v3932, 0
        %3941 = vmatprep.subr.mxu0 0.0
        %3942 = vmatpush1.msra.mxu0 %v3933
        %3943 = vmatprep.subr.mxu0 0.0
        %3944 = vmatpush1.msra.mxu0 %v3934
        %3945 = vmatprep.subr.mxu0 0.0
        %3946 = vmatpush1.msra.mxu0 %v3935
        %3947 = vmatprep.subr.mxu0 0.0
        %3948 = vmatpush1.msra.mxu0 %v3936
        %3949 = vmatprep.subr.mxu0 0.0
        %3950 = vmatpush1.msra.mxu0 0.0
        %3951 = vmatprep.subr.mxu0 0.0
        %3952 = vmatpush1.msra.mxu0 0.0
        %3953 = vmatprep.subr.mxu0 0.0
        %3954 = vmatpush1.msra.mxu0 0.0
        %3955 = vmatprep.subr.mxu0 0.0
        %3956 = vmatpush1.msra.mxu0 0.0
        %3957 = vmatprep.subr.mxu0 0.0
        %3958 = vmatpush1.msra.mxu0 0.0
        %3959 = vmatprep.subr.mxu0 0.0
        %3960 = vmatpush1.msra.mxu0 0.0
        %3961 = vmatprep.subr.mxu0 0.0
        %3962 = vmatpush1.msra.mxu0 0.0
        %3963 = vmatprep.subr.mxu0 0.0
        %3964 = vmatpush1.msra.mxu0 0.0
        %3965 = vmatprep.subr.mxu0 0.0
        %3966 = vmatpush1.msra.mxu0 0.0
        %3967 = vmatprep.subr.mxu0 0.0
        %3968 = vmatpush1.msra.mxu0 0.0
        %3969 = vmatprep.subr.mxu0 0.0
        %3970 = vmatpush1.msra.mxu0 0.0
        %3971 = vmatprep.subr.mxu0 0.0
        %3972 = vmatpush1.msra.mxu0 0.0
        %3973 = vmatprep.subr.mxu0 0.0
        %3974 = vmatpush1.msra.mxu0 0.0
        %3975 = vmatprep.subr.mxu0 0.0
        %3976 = vmatpush1.msra.mxu0 0.0
        %3977 = vmatprep.subr.mxu0 0.0
        %3978 = vmatpush1.msra.mxu0 0.0
        %3979 = vmatprep.subr.mxu0 0.0
        %3980 = vmatpush1.msra.mxu0 0.0
        %3981 = vmatprep.subr.mxu0 0.0
        %3982 = vmatpush1.msra.mxu0 0.0
        %3983 = vmatprep.subr.mxu0 0.0
        %3984 = vmatpush1.msra.mxu0 0.0
        %3985 = vmatprep.subr.mxu0 0.0
        %3986 = vmatpush1.msra.mxu0 0.0
        %3987 = vmatprep.subr.mxu0 0.0
        %3988 = vmatpush1.msra.mxu0 0.0
        %3989 = vmatprep.subr.mxu0 0.0
        %3990 = vmatpush1.msra.mxu0 0.0
        %3991 = vmatprep.subr.mxu0 0.0
        %3992 = vmatpush1.msra.mxu0 0.0
        %3993 = vmatprep.subr.mxu0 0.0
        %3994 = vmatpush1.msra.mxu0 0.0
        %3995 = vmatprep.subr.mxu0 0.0
        %3996 = vmatpush1.msra.mxu0 0.0
        %3997 = vmatprep.subr.mxu0 0.0
        %3998 = vmatpush1.msra.mxu0 0.0
        %3999 = vmatprep.subr.mxu0 0.0
        %4000 = vmatpush1.msra.mxu0 0.0
        %4001 = vmatprep.subr.mxu0 0.0
        %4002 = vmatpush1.msra.mxu0 0.0
        %4003 = vmatprep.subr.mxu0 0.0
        %4004 = vmatpush1.msra.mxu0 0.0
        %4005 = vmatprep.mubr.f32.mxu0 0.0
        %4006 = vmatmul.mubr.f32.gmra.mrb[0].mxu0 %v3939
        %v4007 = vpop.f32.mrb[0].mxu0
        %v4008 = vadd.f32 %v3937, %v4007
        %v4009 = vpop.f32.mrb[0].mxu0
        %4010 = vdwg.mxu0
        %vm4011 = vcmask 32768
        %4012 = vst.msk [vmem:[%s810] sm:$0x1] %vm4011, %v4008
        %s4013 = sand.u32 %s621, 1
        %s4014 = scalar_lea.sflag [#allocation5], %s4013
        %s4015 = sand.u32 %s621, 1
        %s4016 = scalar_lea.vmem [#allocation4], %s4015
        // Predicated region
        $region129: #{tpu_custom_call.1} parent=127 // pred_check
          %p4017 = pneg %p631
        $region130: #{tpu_custom_call.1} parent=127 // pred_check_branch
          %4019 = sbr.rel (%p4017) target = $region132
        $region131: #{tpu_custom_call.1} parent=127 // pred_region
          %s4021 = ssub.s32 16, 16
          %4022 = vsyncadd %s4014, %s4021
          %s4023 = smul.addr %s41, 16
          %s4024 = scalar_lea.hbm %s27, %s4023
          %s4026 = sshll.u32 %s4016, 4
          %s4027 = int_to_ptr.vmem [resolvable:$true] %s4026
          %4029 = dma.vmem_to_hbm [thread:$0]  %s4027, 16, %s4024, %s4014
        $region132: #{tpu_custom_call.1} parent=127 // pred_fallthru
          _
      $region128: #{tpu_custom_call.1} parent=5 // pred_fallthru
        _
      %p4030 = scmp.le.s32.totalorder 2, %s36
      // Predicated region
      $region133: #{tpu_custom_call.1} parent=5 // pred_check
        %p4031 = pneg %p4030
      $region134: #{tpu_custom_call.1} parent=5 // pred_check_branch
        %4033 = sbr.rel (%p4031) target = $region136
      $region135: #{tpu_custom_call.1} parent=5 // pred_region
        %s4034 = ssub.s32 %s36, 2
        // Predicated region
        $region137: #{tpu_custom_call.1} parent=135 // pred_check
          %p4035 = pneg %p637
        $region138: #{tpu_custom_call.1} parent=135 // pred_check_branch
          %4037 = sbr.rel (%p4035) target = $region140
        $region139: #{tpu_custom_call.1} parent=135 // pred_region
          %s4038 = sand.u32 %s622, 1
          %s4039 = scalar_lea.sflag [#allocation5], %s4038
          %s4040 = sand.u32 %s622, 1
          %s4041 = scalar_lea.vmem [#allocation4], %s4040
          %4042 = dma.done %s4039, 16
        $region140: #{tpu_custom_call.1} parent=135 // pred_fallthru
          _
      $region136: #{tpu_custom_call.1} parent=5 // pred_fallthru
        _
    $region6: #{tpu_custom_call.1} parent=1 // loop_footer
      %s40 = sadd.s32 1, %s36
    $region7: #{tpu_custom_call.1} parent=1 // loop_footer_branch
      %35 = sbr.rel target = $region3
    $region8: #{tpu_custom_call.1} parent=1 // loop_exit
      _
    %4043 = vsyncpa [#allocation5], 1
    %s4044 = scalar_lea.sflag [#allocation5], 1
    %4045 = vsyncpa %s4044, 1

</llo_original>
